<compile_context>
chip_gen: v7x
topology: tpu7x:2x2x1
jax: 0.10.0
libtpu: 0.0.40
codegen_flags: <defaults>
</compile_context>

<pallas_src>
import jax
import jax.numpy as jnp
from jax.experimental import pallas as pl
from jax.experimental.pallas import tpu as pltpu


# ----------------------------------------------------------------------------
# Kernel
# ----------------------------------------------------------------------------
def retain_kernel(
    # inputs
    x_ref, mask_ref, wbig_ref, gibias_ref, whh_ref, bhhn_ref,
    walpha_ref, balpha_ref, wbeta_ref, bbeta_ref, wout_ref, bout_ref,
    # outputs
    logit_ref, alpha_ref, beta_ref,
    # scratch
    emb_sc, gi_sc, h_sc,
):
  T, Bt, Din = x_ref.shape
  Ep = emb_sc.shape[-1]            # padded dim_emb (multiple of 128)
  G = gi_sc.shape[-1]              # 3 * (Hap + Hbp)
  Htotp = h_sc.shape[-1]           # Hap + Hbp (each a multiple of 128)
  Hap = walpha_ref.shape[1]        # padded dim_alpha
  Hbp = Htotp - Hap                # padded dim_beta
  E = beta_ref.shape[-1]           # true dim_emb
  f32 = jnp.float32
  bf16 = jnp.bfloat16

  # ---- 1) fused embedding + input-side GRU gate projections (time-chunked) ----
  #      bih (all gates) and bhh (r, z gates) are pre-folded into gibias.
  wbig = wbig_ref[...]             # (Din, Ep + G) bf16
  gib = gibias_ref[...]            # (1, G) f32
  TC = T if T <= 8 else 8          # chunk bounds the f32 matmul temporary
  for t0 in range(0, T, TC):
    tc = min(TC, T - t0)
    xc = x_ref[pl.ds(t0, tc)]                                   # (tc, Bt, Din) bf16
    eg = jnp.dot(xc.reshape(tc * Bt, Din), wbig,
                 preferred_element_type=f32)                    # (tc*Bt, Ep+G)
    emb_sc[pl.ds(t0, tc)] = eg[:, :Ep].reshape(tc, Bt, Ep).astype(bf16)
    gi_sc[pl.ds(t0, tc)] = (eg[:, Ep:] + gib).reshape(tc, Bt, G).astype(bf16)

  # ---- 2) fused alpha+beta GRU recurrence (block-diagonal Whh) ----
  whh = whh_ref[...]                                            # (Htotp, G) bf16
  bhh_n = jnp.broadcast_to(bhhn_ref[...], (Bt, Htotp))          # hoisted broadcast

  def step(t, h):
    gi_t = gi_sc[t]                                             # (Bt, G) bf16, biases folded
    gh = jnp.dot(h.astype(bf16), whh, preferred_element_type=f32)
    r = jax.nn.sigmoid(gi_t[:, :Htotp] + gh[:, :Htotp])
    z = jax.nn.sigmoid(gi_t[:, Htotp:2 * Htotp] + gh[:, Htotp:2 * Htotp])
    n = jnp.tanh(gi_t[:, 2 * Htotp:] + r * (gh[:, 2 * Htotp:] + bhh_n))
    h_new = (1.0 - z) * n + z * h
    h_sc[t] = h_new                                             # [h_alpha | h_beta]
    return h_new

  unroll = True if T <= 16 else 4
  jax.lax.fori_loop(0, T, step, jnp.zeros((Bt, Htotp), f32), unroll=unroll)

  mask_tm = mask_ref[...]                                       # (T, Bt)

  # ---- 3) alpha = masked softmax over time of <h_a, w_alpha> + b_alpha ----
  #      VPU multiply + lane reduce instead of an N=1 MXU matmul.
  h_a = h_sc[:, :, :Hap]                                        # (T, Bt, Hap) f32
  e = jnp.sum(h_a * walpha_ref[...][None, :, :], axis=-1) + balpha_ref[...]
  neg_big = jnp.float32(-1e30)
  e_max = jnp.max(jnp.where(mask_tm > 0, e, neg_big), axis=0, keepdims=True)
  p = jnp.where(mask_tm > 0, jnp.exp(e - e_max), 0.0)           # max-shift cancels in alpha
  denom = jnp.maximum(jnp.sum(p, axis=0, keepdims=True), 1e-30)
  alpha_tm = p / denom
  alpha_ref[...] = alpha_tm

  # ---- 4) beta = tanh((h_b @ W_beta + b_beta) * mask) ----
  h_b = h_sc[:, :, Hap:]                                        # (T, Bt, Hbp) f32
  beta_lin = jnp.dot(h_b.reshape(T * Bt, Hbp).astype(bf16), wbeta_ref[...],
                     preferred_element_type=f32) + bbeta_ref[...]
  beta_tm = jnp.tanh(beta_lin.reshape(T, Bt, Ep) * mask_tm[:, :, None])
  beta_ref[...] = beta_tm[:, :, :E].astype(beta_ref.dtype)      # bf16 HBM write

  # ---- 5) context = sum_t alpha * beta * emb ; logit = context @ W_out + b ----
  ctx = jnp.sum(alpha_tm[:, :, None] * beta_tm * emb_sc[...], axis=0)   # (Bt, Ep) f32
  logit_ref[...] = jnp.dot(ctx.astype(bf16), wout_ref[...],
                           preferred_element_type=f32) + bout_ref[...]


# ----------------------------------------------------------------------------
# Tiling / VMEM helpers
# ----------------------------------------------------------------------------
def _round_up(v, m):
  return ((v + m - 1) // m) * m


def _tpu_vmem_capacity():
  try:
    return int(pltpu.get_tpu_info().vmem_capacity_bytes)
  except Exception:
    return 64 * 1024 * 1024          # conservative (v7x per-core VMEM)


def _device_kind():
  try:
    return jax.devices()[0].device_kind.lower()
  except Exception:
    return ""


def _pick_batch_tile(B):
  """Returns (bt, B_pad): sublane-aligned batch tile and padded batch size."""
  B8 = _round_up(max(B, 1), 8)
  if B8 <= 128:
    return B8, B8                    # single block; mask block == full batch dim
  # Multi-block path: bt must be a multiple of 128 so the (T, bt) blocks stay
  # lane-legal. bt=128 by default (>=2 grid steps -> v7x megacore, fits 64 MiB);
  # bt=256 only on v6e-class parts (>=100 MiB VMEM) when it reduces grid steps.
  candidates = [128]
  if _tpu_vmem_capacity() >= (100 << 20) and "v6" in _device_kind():
    candidates.append(256)
  bt = min(candidates, key=lambda t: (_round_up(B8, t), -t))
  return bt, _round_up(B8, bt)


def _vmem_limit_bytes(T, bt, Din, Ep, G, Htotp, Hbp, E, C):
  TC = T if T <= 8 else 8
  scratch = T * bt * (Ep * 2 + G * 2 + Htotp * 4)
  io = 2 * (T * bt * (Din * 2 + 4 + 4 + E * 2) + bt * C * 4)
  weights = 2 * (Din * (Ep + G) * 2 + G * 4 + Htotp * G * 2 + Htotp * 4
                 + (Ep + G) * 4 + Hbp * Ep * 2 + Ep * 4 + Ep * C * 2 + C * 4)
  temps = TC * bt * (Ep + G) * 4 + 4 * T * bt * Ep * 4 + T * bt * Hbp * 4
  need = scratch + io + weights + temps
  cap = _tpu_vmem_capacity()
  return int(min(max(int(need * 1.25), 32 * 1024 * 1024), int(cap * 0.9)))


# ----------------------------------------------------------------------------
# Wrapper
# ----------------------------------------------------------------------------
def retain_forward(x, lengths, params):
  """x: (B, T, dim_input) batch-first (PyTorch convention). Returns (logit, alpha, beta)."""
  B, T, Din = x.shape
  E = params["W_emb"].shape[1]
  Ha = params["Whh_a"].shape[0]
  Hb = params["Whh_b"].shape[0]
  C = params["W_out"].shape[1]
  f32, bf16 = jnp.float32, jnp.bfloat16

  # 128-lane-aligned gate slabs so all per-step slices in the recurrence are free.
  Ep = _round_up(E, 128)
  Hap = _round_up(Ha, 128)
  Hbp = _round_up(Hb, 128)
  Htotp = Hap + Hbp
  G = 3 * Htotp

  bt, B_pad = _pick_batch_tile(B)
  if B_pad != B:
    x = jnp.pad(x, ((0, B_pad - B), (0, 0), (0, 0)))
    lengths = jnp.pad(lengths, (0, B_pad - B))      # padded rows get length 0

  # mask built directly time-major (no transpose); x transpose+bf16 cast fuse in XLA.
  mask_tm = (jnp.arange(T)[:, None] < lengths[None, :]).astype(f32)   # (T, B_pad)
  x_tm = jnp.transpose(x, (1, 0, 2)).astype(bf16)                     # (T, B_pad, Din)

  # ---- fuse the two GRUs: gate-major layout [r_a r_b | z_a z_b | n_a n_b] ----
  def gates(w, H):
    return w[:, :H], w[:, H:2 * H], w[:, 2 * H:]

  def pad2(a, r, c):
    return jnp.pad(a, ((0, r - a.shape[0]), (0, c - a.shape[1])))

  def padrow(v, n):
    return jnp.pad(v, ((0, 0), (0, n - v.shape[1])))

  ra_i, za_i, na_i = gates(params["Wih_a"], Ha)
  rb_i, zb_i, nb_i = gates(params["Wih_b"], Hb)

  def slab(a_blk, b_blk):
    return jnp.concatenate([pad2(a_blk, a_blk.shape[0], Hap),
                            pad2(b_blk, b_blk.shape[0], Hbp)], axis=1)

  wih_cat = jnp.concatenate([slab(ra_i, rb_i), slab(za_i, zb_i), slab(na_i, nb_i)],
                            axis=1)                                   # (E, G)

  # fused x -> [emb | gi] weight: one (T*Bt, Din) x (Din, Ep+G) matmul in-kernel
  w_emb = params["W_emb"]                                             # (Din, E)
  w_big = jnp.concatenate([pad2(w_emb, Din, Ep), w_emb @ wih_cat], axis=1)

  ra_h, za_h, na_h = gates(params["Whh_a"], Ha)
  rb_h, zb_h, nb_h = gates(params["Whh_b"], Hb)

  def blk(a_blk, b_blk):
    a_p = pad2(a_blk, Hap, Hap)
    b_p = pad2(b_blk, Hbp, Hbp)
    top = jnp.concatenate([a_p, jnp.zeros((Hap, Hbp), f32)], axis=1)
    bot = jnp.concatenate([jnp.zeros((Hbp, Hap), f32), b_p], axis=1)
    return jnp.concatenate([top, bot], axis=0)                        # (Htotp, Htotp)

  whh_cat = jnp.concatenate([blk(ra_h, rb_h), blk(za_h, zb_h), blk(na_h, nb_h)],
                            axis=1)                                   # (Htotp, G)

  bra_i, bza_i, bna_i = gates(params["bih_a"], Ha)
  brb_i, bzb_i, bnb_i = gates(params["bih_b"], Hb)
  bra_h, bza_h, bna_h = gates(params["bhh_a"], Ha)
  brb_h, bzb_h, bnb_h = gates(params["bhh_b"], Hb)
  # fold bih (all gates) + bhh (r, z gates) into the precomputed input-slab bias
  gi_bias = jnp.concatenate(
      [padrow(bra_i + bra_h, Hap), padrow(brb_i + brb_h, Hbp),
       padrow(bza_i + bza_h, Hap), padrow(bzb_i + bzb_h, Hbp),
       padrow(bna_i, Hap), padrow(bnb_i, Hbp)], axis=1)               # (1, G)
  bhh_n = jnp.concatenate([padrow(bna_h, Hap), padrow(bnb_h, Hbp)], axis=1)  # (1, Htotp)

  w_alpha_row = padrow(jnp.transpose(params["w_alpha"], (1, 0)), Hap)  # (1, Hap)
  w_beta = pad2(params["W_beta"], Hbp, Ep)                             # (Hbp, Ep)
  b_beta = padrow(params["b_beta"], Ep)                                # (1, Ep)
  w_out = pad2(params["W_out"], Ep, C)                                 # (Ep, C)

  grid = (B_pad // bt,)
  vmem_limit = _vmem_limit_bytes(T, bt, Din, Ep, G, Htotp, Hbp, E, C)

  def full_spec(a):
    n = a.ndim
    return pl.BlockSpec(tuple(a.shape), lambda b, n=n: (0,) * n)

  args = (
      x_tm, mask_tm,
      w_big.astype(bf16), gi_bias,
      whh_cat.astype(bf16), bhh_n,
      w_alpha_row, params["b_alpha"],
      w_beta.astype(bf16), b_beta,
      w_out.astype(bf16), params["b_out"],
  )

  in_specs = [
      pl.BlockSpec((T, bt, Din), lambda b: (0, b, 0)),   # x (time-major)
      pl.BlockSpec((T, bt), lambda b: (0, b)),           # mask (time-major)
  ] + [full_spec(a) for a in args[2:]]                   # weights: whole array per step

  logit, alpha_tm, beta_tm_bf = pl.pallas_call(
      retain_kernel,
      grid=grid,
      out_shape=(
          jax.ShapeDtypeStruct((B_pad, C), f32),
          jax.ShapeDtypeStruct((T, B_pad), f32),
          jax.ShapeDtypeStruct((T, B_pad, E), bf16),     # bf16 halves the largest HBM write
      ),
      in_specs=in_specs,
      out_specs=(
          pl.BlockSpec((bt, C), lambda b: (b, 0)),
          pl.BlockSpec((T, bt), lambda b: (0, b)),
          pl.BlockSpec((T, bt, E), lambda b: (0, b, 0)),
      ),
      scratch_shapes=[
          pltpu.VMEM((T, bt, Ep), bf16),       # emb (bf16 storage)
          pltpu.VMEM((T, bt, G), bf16),        # input-side gate projections (bf16 storage)
          pltpu.VMEM((T, bt, Htotp), f32),     # fused GRU hidden states [h_a | h_b]
      ],
      compiler_params=pltpu.CompilerParams(
          dimension_semantics=("parallel",),
          vmem_limit_bytes=vmem_limit),
  )(*args)

  # wrapper-side relayout to batch-first (transpose + upcast fuse in XLA)
  logit = logit[:B]
  alpha = jnp.transpose(alpha_tm, (1, 0))[:B, :, None]                 # (B, T, 1)
  beta = jnp.transpose(beta_tm_bf, (1, 0, 2)).astype(f32)[:B]          # (B, T, E)
  return logit, alpha, beta


# ----------------------------------------------------------------------------
# Pure-JAX f32 reference (for validation)
# ----------------------------------------------------------------------------
def retain_reference(x, lengths, params):
  B, T, Din = x.shape
  mask = (jnp.arange(T)[None, :] < lengths[:, None]).astype(jnp.float32)
  emb = x @ params["W_emb"]                              # (B, T, E)

  def run_gru(inp, wih, whh, bih, bhh):
    H = whh.shape[0]

    def step(h, x_t):
      gi = x_t @ wih + bih
      gh = h @ whh + bhh
      r = jax.nn.sigmoid(gi[:, :H] + gh[:, :H])
      z = jax.nn.sigmoid(gi[:, H:2 * H] + gh[:, H:2 * H])
      n = jnp.tanh(gi[:, 2 * H:] + r * gh[:, 2 * H:])
      h_new = (1.0 - z) * n + z * h
      return h_new, h_new

    _, hs = jax.lax.scan(step, jnp.zeros((B, H), jnp.float32),
                         jnp.swapaxes(inp, 0, 1))
    return jnp.swapaxes(hs, 0, 1)                        # (B, T, H)

  g = run_gru(emb, params["Wih_a"], params["Whh_a"], params["bih_a"], params["bhh_a"])
  e = g @ params["w_alpha"] + params["b_alpha"]          # (B, T, 1)
  masked_exp = jnp.exp(e) * mask[:, :, None]
  alpha = masked_exp / jnp.sum(masked_exp, axis=1, keepdims=True)

  h = run_gru(emb, params["Wih_b"], params["Whh_b"], params["bih_b"], params["bhh_b"])
  beta = jnp.tanh((h @ params["W_beta"] + params["b_beta"]) * mask[:, :, None])

  context = jnp.einsum("btl,bte->be", alpha, beta * emb)
  logit = context @ params["W_out"] + params["b_out"]
  return logit, alpha, beta


def make_params(key, dim_input, dim_emb, dim_alpha, dim_beta, dim_output):
  """Deterministic synthetic parameters (shapes match the PyTorch module)."""
  ks = jax.random.split(key, 12)

  def xavier(k, shape):
    fan_in, fan_out = shape
    std = (2.0 / (fan_in + fan_out)) ** 0.5
    return (std * jax.random.normal(k, shape)).astype(jnp.float32)

  def gru_w(k, in_dim, hid):
    scale = 1.0 / (hid ** 0.5)
    return (scale * jax.random.normal(k, (in_dim, 3 * hid))).astype(jnp.float32)

  return {
      "W_emb": xavier(ks[0], (dim_input, dim_emb)),
      "Wih_a": gru_w(ks[1], dim_emb, dim_alpha),
      "Whh_a": gru_w(ks[2], dim_alpha, dim_alpha),
      "bih_a": (0.1 * jax.random.normal(ks[3], (1, 3 * dim_alpha))).astype(jnp.float32),
      "bhh_a": (0.1 * jax.random.normal(ks[4], (1, 3 * dim_alpha))).astype(jnp.float32),
      "w_alpha": xavier(ks[5], (dim_alpha, 1)),
      "b_alpha": jnp.zeros((1, 1), jnp.float32),
      "Wih_b": gru_w(ks[6], dim_emb, dim_beta),
      "Whh_b": gru_w(ks[7], dim_beta, dim_beta),
      "bih_b": (0.1 * jax.random.normal(ks[8], (1, 3 * dim_beta))).astype(jnp.float32),
      "bhh_b": (0.1 * jax.random.normal(ks[9], (1, 3 * dim_beta))).astype(jnp.float32),
      "W_beta": xavier(ks[10], (dim_beta, dim_emb)),
      "b_beta": jnp.zeros((1, dim_emb), jnp.float32),
      "W_out": xavier(ks[11], (dim_emb, dim_output)),
      "b_out": jnp.zeros((1, dim_output), jnp.float32),
  }


if __name__ == "__main__":
  B, T = 4, 8
  dim_input, dim_emb, dim_alpha, dim_beta, dim_output = 40, 32, 32, 32, 2

  key = jax.random.PRNGKey(0)
  k_x, k_p = jax.random.split(key)
  x = jax.random.normal(k_x, (B, T, dim_input), dtype=jnp.float32)
  lengths = jnp.array([8, 5, 3, 6], dtype=jnp.int32)
  params = make_params(k_p, dim_input, dim_emb, dim_alpha, dim_beta, dim_output)

  logit, alpha, beta = jax.jit(retain_forward)(x, lengths, params)
  jax.block_until_ready((logit, alpha, beta))

  # sanity check against a pure-JAX f32 reference; kernel uses bf16 MXU operands /
  # bf16 scratch with f32 accumulation, so tolerances are correspondingly loose.
  logit_r, alpha_r, beta_r = retain_reference(x, lengths, params)
  assert jnp.allclose(logit, logit_r, atol=5e-2, rtol=5e-2)
  assert jnp.allclose(alpha, alpha_r, atol=5e-2, rtol=5e-2)
  assert jnp.allclose(beta, beta_r, atol=5e-2, rtol=5e-2)
  assert logit.shape == (B, dim_output)
  assert alpha.shape == (B, T, 1)
  assert beta.shape == (B, T, dim_emb)

  print("KERNEL_OK")
</pallas_src>

<mosaic_0001>
module attributes {stable_mosaic.version = 11 : i64} {
  func.func @retain_kernel(%arg0: i32, %arg1: memref<8x8x40xbf16, #tpu.memory_space<vmem>>, %arg2: memref<8x8xf32, #tpu.memory_space<vmem>>, %arg3: memref<40x896xbf16, #tpu.memory_space<vmem>>, %arg4: memref<1x768xf32, #tpu.memory_space<vmem>>, %arg5: memref<256x768xbf16, #tpu.memory_space<vmem>>, %arg6: memref<1x256xf32, #tpu.memory_space<vmem>>, %arg7: memref<1x128xf32, #tpu.memory_space<vmem>>, %arg8: memref<1x1xf32, #tpu.memory_space<vmem>>, %arg9: memref<128x128xbf16, #tpu.memory_space<vmem>>, %arg10: memref<1x128xf32, #tpu.memory_space<vmem>>, %arg11: memref<128x2xbf16, #tpu.memory_space<vmem>>, %arg12: memref<1x2xf32, #tpu.memory_space<vmem>>, %arg13: memref<8x2xf32, #tpu.memory_space<vmem>>, %arg14: memref<8x8xf32, #tpu.memory_space<vmem>>, %arg15: memref<8x8x32xbf16, #tpu.memory_space<vmem>>, %arg16: memref<8x8x128xbf16, #tpu.memory_space<vmem>>, %arg17: memref<8x8x768xbf16, #tpu.memory_space<vmem>>, %arg18: memref<8x8x256xf32, #tpu.memory_space<vmem>>) attributes {dimension_semantics = [#tpu.dimension_semantics<parallel>], iteration_bounds = array<i64: 1>, scalar_prefetch = 0 : i64, scratch_operands = 3 : i64, tpu.core_type = #tpu.core_type<tc>, window_params = [{transform_indices = @transform_0, window_bounds = array<i64: 8, 8, 40>}, {transform_indices = @transform_1, window_bounds = array<i64: 8, 8>}, {pipeline_mode = #tpu.pipeline_mode<synchronous>, transform_indices = @transform_2, window_bounds = array<i64: 40, 896>}, {pipeline_mode = #tpu.pipeline_mode<synchronous>, transform_indices = @transform_3, window_bounds = array<i64: 1, 768>}, {pipeline_mode = #tpu.pipeline_mode<synchronous>, transform_indices = @transform_4, window_bounds = array<i64: 256, 768>}, {pipeline_mode = #tpu.pipeline_mode<synchronous>, transform_indices = @transform_5, window_bounds = array<i64: 1, 256>}, {pipeline_mode = #tpu.pipeline_mode<synchronous>, transform_indices = @transform_6, window_bounds = array<i64: 1, 128>}, {pipeline_mode = #tpu.pipeline_mode<synchronous>, transform_indices = @transform_7, window_bounds = array<i64: 1, 1>}, {pipeline_mode = #tpu.pipeline_mode<synchronous>, transform_indices = @transform_8, window_bounds = array<i64: 128, 128>}, {pipeline_mode = #tpu.pipeline_mode<synchronous>, transform_indices = @transform_9, window_bounds = array<i64: 1, 128>}, {pipeline_mode = #tpu.pipeline_mode<synchronous>, transform_indices = @transform_10, window_bounds = array<i64: 128, 2>}, {pipeline_mode = #tpu.pipeline_mode<synchronous>, transform_indices = @transform_11, window_bounds = array<i64: 1, 2>}, {transform_indices = @transform_12, window_bounds = array<i64: 8, 2>}, {transform_indices = @transform_13, window_bounds = array<i64: 8, 8>}, {transform_indices = @transform_14, window_bounds = array<i64: 8, 8, 32>}]} {
    %c0 = arith.constant 0 : index
    %c0_0 = arith.constant 0 : index
    %0 = vector.load %arg3[%c0, %c0_0] : memref<40x896xbf16, #tpu.memory_space<vmem>>, vector<40x896xbf16>
    %c0_1 = arith.constant 0 : index
    %c0_2 = arith.constant 0 : index
    %1 = vector.load %arg4[%c0_1, %c0_2] : memref<1x768xf32, #tpu.memory_space<vmem>>, vector<1x768xf32>
    %c0_3 = arith.constant 0 : index
    %c0_4 = arith.constant 0 : index
    %c0_5 = arith.constant 0 : index
    %2 = vector.load %arg1[%c0_3, %c0_4, %c0_5] : memref<8x8x40xbf16, #tpu.memory_space<vmem>>, vector<8x8x40xbf16>
    %3 = vector.shape_cast %2 : vector<8x8x40xbf16> to vector<64x40xbf16>
    %cst = arith.constant dense<0.000000e+00> : vector<64x896xf32>
    %4 = tpu.matmul %3, %0, %cst {dimension_numbers = #tpu.dot_dimension_numbers<[1], [0], [0], [1], [0, 0, 1, 1], [], []>} : vector<64x40xbf16>, vector<40x896xbf16>, vector<64x896xf32> -> vector<64x896xf32>
    %5 = vector.extract_strided_slice %4 {offsets = [0, 0], sizes = [64, 128], strides = [1, 1]} : vector<64x896xf32> to vector<64x128xf32>
    %6 = vector.shape_cast %5 : vector<64x128xf32> to vector<8x8x128xf32>
    %7 = arith.truncf %6 : vector<8x8x128xf32> to vector<8x8x128xbf16>
    %c0_6 = arith.constant 0 : index
    %c0_7 = arith.constant 0 : index
    %c0_8 = arith.constant 0 : index
    %8 = vector.load %arg16[%c0_6, %c0_7, %c0_8] : memref<8x8x128xbf16, #tpu.memory_space<vmem>>, vector<8x8x128xbf16>
    tpu.vector_store %arg16[%c0_6, %c0_7, %c0_8], %7 {strides = array<i32>} : memref<8x8x128xbf16, #tpu.memory_space<vmem>>, vector<8x8x128xbf16>,
    %9 = vector.extract_strided_slice %4 {offsets = [0, 128], sizes = [64, 768], strides = [1, 1]} : vector<64x896xf32> to vector<64x768xf32>
    %10 = vector.broadcast %1 : vector<1x768xf32> to vector<64x768xf32>
    %11 = arith.addf %9, %10 : vector<64x768xf32>
    %12 = vector.shape_cast %11 : vector<64x768xf32> to vector<8x8x768xf32>
    %13 = arith.truncf %12 : vector<8x8x768xf32> to vector<8x8x768xbf16>
    %c0_9 = arith.constant 0 : index
    %c0_10 = arith.constant 0 : index
    %c0_11 = arith.constant 0 : index
    %14 = vector.load %arg17[%c0_9, %c0_10, %c0_11] : memref<8x8x768xbf16, #tpu.memory_space<vmem>>, vector<8x8x768xbf16>
    tpu.vector_store %arg17[%c0_9, %c0_10, %c0_11], %13 {strides = array<i32>} : memref<8x8x768xbf16, #tpu.memory_space<vmem>>, vector<8x8x768xbf16>,
    %c0_12 = arith.constant 0 : index
    %c0_13 = arith.constant 0 : index
    %15 = vector.load %arg5[%c0_12, %c0_13] : memref<256x768xbf16, #tpu.memory_space<vmem>>, vector<256x768xbf16>
    %c0_14 = arith.constant 0 : index
    %c0_15 = arith.constant 0 : index
    %16 = vector.load %arg6[%c0_14, %c0_15] : memref<1x256xf32, #tpu.memory_space<vmem>>, vector<1x256xf32>
    %17 = vector.shape_cast %16 : vector<1x256xf32> to vector<1x256xf32>
    %18 = vector.broadcast %17 : vector<1x256xf32> to vector<8x256xf32>
    %cst_16 = arith.constant 0.000000e+00 : f32
    %19 = vector.broadcast %cst_16 : f32 to vector<8x256xf32>
    %c0_i32 = arith.constant 0 : i32
    %20 = arith.index_cast %c0_i32 : i32 to index
    %c0_17 = arith.constant 0 : index
    %c0_18 = arith.constant 0 : index
    %21 = vector.load %arg17[%20, %c0_17, %c0_18] : memref<8x8x768xbf16, #tpu.memory_space<vmem>>, vector<1x8x768xbf16>
    %22 = vector.shape_cast %21 : vector<1x8x768xbf16> to vector<8x768xbf16>
    %23 = arith.truncf %19 : vector<8x256xf32> to vector<8x256xbf16>
    %cst_19 = arith.constant dense<0.000000e+00> : vector<8x768xf32>
    %24 = tpu.matmul %23, %15, %cst_19 {dimension_numbers = #tpu.dot_dimension_numbers<[1], [0], [0], [1], [0, 0, 1, 1], [], []>} : vector<8x256xbf16>, vector<256x768xbf16>, vector<8x768xf32> -> vector<8x768xf32>
    %25 = vector.extract_strided_slice %22 {offsets = [0, 0], sizes = [8, 256], strides = [1, 1]} : vector<8x768xbf16> to vector<8x256xbf16>
    %26 = vector.extract_strided_slice %24 {offsets = [0, 0], sizes = [8, 256], strides = [1, 1]} : vector<8x768xf32> to vector<8x256xf32>
    %27 = arith.extf %25 : vector<8x256xbf16> to vector<8x256xf32>
    %28 = arith.addf %27, %26 : vector<8x256xf32>
    %29 = arith.negf %28 : vector<8x256xf32>
    %30 = math.exp %29 : vector<8x256xf32>
    %cst_20 = arith.constant 1.000000e+00 : f32
    %31 = vector.broadcast %cst_20 : f32 to vector<8x256xf32>
    %32 = arith.addf %31, %30 : vector<8x256xf32>
    %33 = arith.divf %31, %32 : vector<8x256xf32>
    %34 = vector.extract_strided_slice %22 {offsets = [0, 256], sizes = [8, 256], strides = [1, 1]} : vector<8x768xbf16> to vector<8x256xbf16>
    %35 = vector.extract_strided_slice %24 {offsets = [0, 256], sizes = [8, 256], strides = [1, 1]} : vector<8x768xf32> to vector<8x256xf32>
    %36 = arith.extf %34 : vector<8x256xbf16> to vector<8x256xf32>
    %37 = arith.addf %36, %35 : vector<8x256xf32>
    %38 = arith.negf %37 : vector<8x256xf32>
    %39 = math.exp %38 : vector<8x256xf32>
    %cst_21 = arith.constant 1.000000e+00 : f32
    %40 = vector.broadcast %cst_21 : f32 to vector<8x256xf32>
    %41 = arith.addf %40, %39 : vector<8x256xf32>
    %42 = arith.divf %40, %41 : vector<8x256xf32>
    %43 = vector.extract_strided_slice %22 {offsets = [0, 512], sizes = [8, 256], strides = [1, 1]} : vector<8x768xbf16> to vector<8x256xbf16>
    %44 = vector.extract_strided_slice %24 {offsets = [0, 512], sizes = [8, 256], strides = [1, 1]} : vector<8x768xf32> to vector<8x256xf32>
    %45 = arith.addf %44, %18 : vector<8x256xf32>
    %46 = arith.mulf %33, %45 : vector<8x256xf32>
    %47 = arith.extf %43 : vector<8x256xbf16> to vector<8x256xf32>
    %48 = arith.addf %47, %46 : vector<8x256xf32>
    %49 = math.tanh %48 : vector<8x256xf32>
    %cst_22 = arith.constant 1.000000e+00 : f32
    %50 = vector.broadcast %cst_22 : f32 to vector<8x256xf32>
    %51 = arith.subf %50, %42 : vector<8x256xf32>
    %52 = arith.mulf %51, %49 : vector<8x256xf32>
    %53 = arith.mulf %42, %19 : vector<8x256xf32>
    %54 = arith.addf %52, %53 : vector<8x256xf32>
    %55 = arith.index_cast %c0_i32 : i32 to index
    %c0_23 = arith.constant 0 : index
    %c0_24 = arith.constant 0 : index
    %56 = vector.load %arg18[%55, %c0_23, %c0_24] : memref<8x8x256xf32, #tpu.memory_space<vmem>>, vector<1x8x256xf32>
    %57 = vector.shape_cast %56 : vector<1x8x256xf32> to vector<8x256xf32>
    %58 = vector.shape_cast %54 : vector<8x256xf32> to vector<1x8x256xf32>
    tpu.vector_store %arg18[%55, %c0_23, %c0_24], %58 {strides = array<i32>} : memref<8x8x256xf32, #tpu.memory_space<vmem>>, vector<1x8x256xf32>,
    %c1_i32 = arith.constant 1 : i32
    %59 = arith.index_cast %c1_i32 : i32 to index
    %c0_25 = arith.constant 0 : index
    %c0_26 = arith.constant 0 : index
    %60 = vector.load %arg17[%59, %c0_25, %c0_26] : memref<8x8x768xbf16, #tpu.memory_space<vmem>>, vector<1x8x768xbf16>
    %61 = vector.shape_cast %60 : vector<1x8x768xbf16> to vector<8x768xbf16>
    %62 = arith.truncf %54 : vector<8x256xf32> to vector<8x256xbf16>
    %cst_27 = arith.constant dense<0.000000e+00> : vector<8x768xf32>
    %63 = tpu.matmul %62, %15, %cst_27 {dimension_numbers = #tpu.dot_dimension_numbers<[1], [0], [0], [1], [0, 0, 1, 1], [], []>} : vector<8x256xbf16>, vector<256x768xbf16>, vector<8x768xf32> -> vector<8x768xf32>
    %64 = vector.extract_strided_slice %61 {offsets = [0, 0], sizes = [8, 256], strides = [1, 1]} : vector<8x768xbf16> to vector<8x256xbf16>
    %65 = vector.extract_strided_slice %63 {offsets = [0, 0], sizes = [8, 256], strides = [1, 1]} : vector<8x768xf32> to vector<8x256xf32>
    %66 = arith.extf %64 : vector<8x256xbf16> to vector<8x256xf32>
    %67 = arith.addf %66, %65 : vector<8x256xf32>
    %68 = arith.negf %67 : vector<8x256xf32>
    %69 = math.exp %68 : vector<8x256xf32>
    %cst_28 = arith.constant 1.000000e+00 : f32
    %70 = vector.broadcast %cst_28 : f32 to vector<8x256xf32>
    %71 = arith.addf %70, %69 : vector<8x256xf32>
    %72 = arith.divf %70, %71 : vector<8x256xf32>
    %73 = vector.extract_strided_slice %61 {offsets = [0, 256], sizes = [8, 256], strides = [1, 1]} : vector<8x768xbf16> to vector<8x256xbf16>
    %74 = vector.extract_strided_slice %63 {offsets = [0, 256], sizes = [8, 256], strides = [1, 1]} : vector<8x768xf32> to vector<8x256xf32>
    %75 = arith.extf %73 : vector<8x256xbf16> to vector<8x256xf32>
    %76 = arith.addf %75, %74 : vector<8x256xf32>
    %77 = arith.negf %76 : vector<8x256xf32>
    %78 = math.exp %77 : vector<8x256xf32>
    %cst_29 = arith.constant 1.000000e+00 : f32
    %79 = vector.broadcast %cst_29 : f32 to vector<8x256xf32>
    %80 = arith.addf %79, %78 : vector<8x256xf32>
    %81 = arith.divf %79, %80 : vector<8x256xf32>
    %82 = vector.extract_strided_slice %61 {offsets = [0, 512], sizes = [8, 256], strides = [1, 1]} : vector<8x768xbf16> to vector<8x256xbf16>
    %83 = vector.extract_strided_slice %63 {offsets = [0, 512], sizes = [8, 256], strides = [1, 1]} : vector<8x768xf32> to vector<8x256xf32>
    %84 = arith.addf %83, %18 : vector<8x256xf32>
    %85 = arith.mulf %72, %84 : vector<8x256xf32>
    %86 = arith.extf %82 : vector<8x256xbf16> to vector<8x256xf32>
    %87 = arith.addf %86, %85 : vector<8x256xf32>
    %88 = math.tanh %87 : vector<8x256xf32>
    %cst_30 = arith.constant 1.000000e+00 : f32
    %89 = vector.broadcast %cst_30 : f32 to vector<8x256xf32>
    %90 = arith.subf %89, %81 : vector<8x256xf32>
    %91 = arith.mulf %90, %88 : vector<8x256xf32>
    %92 = arith.mulf %81, %54 : vector<8x256xf32>
    %93 = arith.addf %91, %92 : vector<8x256xf32>
    %94 = arith.index_cast %c1_i32 : i32 to index
    %c0_31 = arith.constant 0 : index
    %c0_32 = arith.constant 0 : index
    %95 = vector.load %arg18[%94, %c0_31, %c0_32] : memref<8x8x256xf32, #tpu.memory_space<vmem>>, vector<1x8x256xf32>
    %96 = vector.shape_cast %95 : vector<1x8x256xf32> to vector<8x256xf32>
    %97 = vector.shape_cast %93 : vector<8x256xf32> to vector<1x8x256xf32>
    tpu.vector_store %arg18[%94, %c0_31, %c0_32], %97 {strides = array<i32>} : memref<8x8x256xf32, #tpu.memory_space<vmem>>, vector<1x8x256xf32>,
    %c2_i32 = arith.constant 2 : i32
    %98 = arith.index_cast %c2_i32 : i32 to index
    %c0_33 = arith.constant 0 : index
    %c0_34 = arith.constant 0 : index
    %99 = vector.load %arg17[%98, %c0_33, %c0_34] : memref<8x8x768xbf16, #tpu.memory_space<vmem>>, vector<1x8x768xbf16>
    %100 = vector.shape_cast %99 : vector<1x8x768xbf16> to vector<8x768xbf16>
    %101 = arith.truncf %93 : vector<8x256xf32> to vector<8x256xbf16>
    %cst_35 = arith.constant dense<0.000000e+00> : vector<8x768xf32>
    %102 = tpu.matmul %101, %15, %cst_35 {dimension_numbers = #tpu.dot_dimension_numbers<[1], [0], [0], [1], [0, 0, 1, 1], [], []>} : vector<8x256xbf16>, vector<256x768xbf16>, vector<8x768xf32> -> vector<8x768xf32>
    %103 = vector.extract_strided_slice %100 {offsets = [0, 0], sizes = [8, 256], strides = [1, 1]} : vector<8x768xbf16> to vector<8x256xbf16>
    %104 = vector.extract_strided_slice %102 {offsets = [0, 0], sizes = [8, 256], strides = [1, 1]} : vector<8x768xf32> to vector<8x256xf32>
    %105 = arith.extf %103 : vector<8x256xbf16> to vector<8x256xf32>
    %106 = arith.addf %105, %104 : vector<8x256xf32>
    %107 = arith.negf %106 : vector<8x256xf32>
    %108 = math.exp %107 : vector<8x256xf32>
    %cst_36 = arith.constant 1.000000e+00 : f32
    %109 = vector.broadcast %cst_36 : f32 to vector<8x256xf32>
    %110 = arith.addf %109, %108 : vector<8x256xf32>
    %111 = arith.divf %109, %110 : vector<8x256xf32>
    %112 = vector.extract_strided_slice %100 {offsets = [0, 256], sizes = [8, 256], strides = [1, 1]} : vector<8x768xbf16> to vector<8x256xbf16>
    %113 = vector.extract_strided_slice %102 {offsets = [0, 256], sizes = [8, 256], strides = [1, 1]} : vector<8x768xf32> to vector<8x256xf32>
    %114 = arith.extf %112 : vector<8x256xbf16> to vector<8x256xf32>
    %115 = arith.addf %114, %113 : vector<8x256xf32>
    %116 = arith.negf %115 : vector<8x256xf32>
    %117 = math.exp %116 : vector<8x256xf32>
    %cst_37 = arith.constant 1.000000e+00 : f32
    %118 = vector.broadcast %cst_37 : f32 to vector<8x256xf32>
    %119 = arith.addf %118, %117 : vector<8x256xf32>
    %120 = arith.divf %118, %119 : vector<8x256xf32>
    %121 = vector.extract_strided_slice %100 {offsets = [0, 512], sizes = [8, 256], strides = [1, 1]} : vector<8x768xbf16> to vector<8x256xbf16>
    %122 = vector.extract_strided_slice %102 {offsets = [0, 512], sizes = [8, 256], strides = [1, 1]} : vector<8x768xf32> to vector<8x256xf32>
    %123 = arith.addf %122, %18 : vector<8x256xf32>
    %124 = arith.mulf %111, %123 : vector<8x256xf32>
    %125 = arith.extf %121 : vector<8x256xbf16> to vector<8x256xf32>
    %126 = arith.addf %125, %124 : vector<8x256xf32>
    %127 = math.tanh %126 : vector<8x256xf32>
    %cst_38 = arith.constant 1.000000e+00 : f32
    %128 = vector.broadcast %cst_38 : f32 to vector<8x256xf32>
    %129 = arith.subf %128, %120 : vector<8x256xf32>
    %130 = arith.mulf %129, %127 : vector<8x256xf32>
    %131 = arith.mulf %120, %93 : vector<8x256xf32>
    %132 = arith.addf %130, %131 : vector<8x256xf32>
    %133 = arith.index_cast %c2_i32 : i32 to index
    %c0_39 = arith.constant 0 : index
    %c0_40 = arith.constant 0 : index
    %134 = vector.load %arg18[%133, %c0_39, %c0_40] : memref<8x8x256xf32, #tpu.memory_space<vmem>>, vector<1x8x256xf32>
    %135 = vector.shape_cast %134 : vector<1x8x256xf32> to vector<8x256xf32>
    %136 = vector.shape_cast %132 : vector<8x256xf32> to vector<1x8x256xf32>
    tpu.vector_store %arg18[%133, %c0_39, %c0_40], %136 {strides = array<i32>} : memref<8x8x256xf32, #tpu.memory_space<vmem>>, vector<1x8x256xf32>,
    %c3_i32 = arith.constant 3 : i32
    %137 = arith.index_cast %c3_i32 : i32 to index
    %c0_41 = arith.constant 0 : index
    %c0_42 = arith.constant 0 : index
    %138 = vector.load %arg17[%137, %c0_41, %c0_42] : memref<8x8x768xbf16, #tpu.memory_space<vmem>>, vector<1x8x768xbf16>
    %139 = vector.shape_cast %138 : vector<1x8x768xbf16> to vector<8x768xbf16>
    %140 = arith.truncf %132 : vector<8x256xf32> to vector<8x256xbf16>
    %cst_43 = arith.constant dense<0.000000e+00> : vector<8x768xf32>
    %141 = tpu.matmul %140, %15, %cst_43 {dimension_numbers = #tpu.dot_dimension_numbers<[1], [0], [0], [1], [0, 0, 1, 1], [], []>} : vector<8x256xbf16>, vector<256x768xbf16>, vector<8x768xf32> -> vector<8x768xf32>
    %142 = vector.extract_strided_slice %139 {offsets = [0, 0], sizes = [8, 256], strides = [1, 1]} : vector<8x768xbf16> to vector<8x256xbf16>
    %143 = vector.extract_strided_slice %141 {offsets = [0, 0], sizes = [8, 256], strides = [1, 1]} : vector<8x768xf32> to vector<8x256xf32>
    %144 = arith.extf %142 : vector<8x256xbf16> to vector<8x256xf32>
    %145 = arith.addf %144, %143 : vector<8x256xf32>
    %146 = arith.negf %145 : vector<8x256xf32>
    %147 = math.exp %146 : vector<8x256xf32>
    %cst_44 = arith.constant 1.000000e+00 : f32
    %148 = vector.broadcast %cst_44 : f32 to vector<8x256xf32>
    %149 = arith.addf %148, %147 : vector<8x256xf32>
    %150 = arith.divf %148, %149 : vector<8x256xf32>
    %151 = vector.extract_strided_slice %139 {offsets = [0, 256], sizes = [8, 256], strides = [1, 1]} : vector<8x768xbf16> to vector<8x256xbf16>
    %152 = vector.extract_strided_slice %141 {offsets = [0, 256], sizes = [8, 256], strides = [1, 1]} : vector<8x768xf32> to vector<8x256xf32>
    %153 = arith.extf %151 : vector<8x256xbf16> to vector<8x256xf32>
    %154 = arith.addf %153, %152 : vector<8x256xf32>
    %155 = arith.negf %154 : vector<8x256xf32>
    %156 = math.exp %155 : vector<8x256xf32>
    %cst_45 = arith.constant 1.000000e+00 : f32
    %157 = vector.broadcast %cst_45 : f32 to vector<8x256xf32>
    %158 = arith.addf %157, %156 : vector<8x256xf32>
    %159 = arith.divf %157, %158 : vector<8x256xf32>
    %160 = vector.extract_strided_slice %139 {offsets = [0, 512], sizes = [8, 256], strides = [1, 1]} : vector<8x768xbf16> to vector<8x256xbf16>
    %161 = vector.extract_strided_slice %141 {offsets = [0, 512], sizes = [8, 256], strides = [1, 1]} : vector<8x768xf32> to vector<8x256xf32>
    %162 = arith.addf %161, %18 : vector<8x256xf32>
    %163 = arith.mulf %150, %162 : vector<8x256xf32>
    %164 = arith.extf %160 : vector<8x256xbf16> to vector<8x256xf32>
    %165 = arith.addf %164, %163 : vector<8x256xf32>
    %166 = math.tanh %165 : vector<8x256xf32>
    %cst_46 = arith.constant 1.000000e+00 : f32
    %167 = vector.broadcast %cst_46 : f32 to vector<8x256xf32>
    %168 = arith.subf %167, %159 : vector<8x256xf32>
    %169 = arith.mulf %168, %166 : vector<8x256xf32>
    %170 = arith.mulf %159, %132 : vector<8x256xf32>
    %171 = arith.addf %169, %170 : vector<8x256xf32>
    %172 = arith.index_cast %c3_i32 : i32 to index
    %c0_47 = arith.constant 0 : index
    %c0_48 = arith.constant 0 : index
    %173 = vector.load %arg18[%172, %c0_47, %c0_48] : memref<8x8x256xf32, #tpu.memory_space<vmem>>, vector<1x8x256xf32>
    %174 = vector.shape_cast %173 : vector<1x8x256xf32> to vector<8x256xf32>
    %175 = vector.shape_cast %171 : vector<8x256xf32> to vector<1x8x256xf32>
    tpu.vector_store %arg18[%172, %c0_47, %c0_48], %175 {strides = array<i32>} : memref<8x8x256xf32, #tpu.memory_space<vmem>>, vector<1x8x256xf32>,
    %c4_i32 = arith.constant 4 : i32
    %176 = arith.index_cast %c4_i32 : i32 to index
    %c0_49 = arith.constant 0 : index
    %c0_50 = arith.constant 0 : index
    %177 = vector.load %arg17[%176, %c0_49, %c0_50] : memref<8x8x768xbf16, #tpu.memory_space<vmem>>, vector<1x8x768xbf16>
    %178 = vector.shape_cast %177 : vector<1x8x768xbf16> to vector<8x768xbf16>
    %179 = arith.truncf %171 : vector<8x256xf32> to vector<8x256xbf16>
    %cst_51 = arith.constant dense<0.000000e+00> : vector<8x768xf32>
    %180 = tpu.matmul %179, %15, %cst_51 {dimension_numbers = #tpu.dot_dimension_numbers<[1], [0], [0], [1], [0, 0, 1, 1], [], []>} : vector<8x256xbf16>, vector<256x768xbf16>, vector<8x768xf32> -> vector<8x768xf32>
    %181 = vector.extract_strided_slice %178 {offsets = [0, 0], sizes = [8, 256], strides = [1, 1]} : vector<8x768xbf16> to vector<8x256xbf16>
    %182 = vector.extract_strided_slice %180 {offsets = [0, 0], sizes = [8, 256], strides = [1, 1]} : vector<8x768xf32> to vector<8x256xf32>
    %183 = arith.extf %181 : vector<8x256xbf16> to vector<8x256xf32>
    %184 = arith.addf %183, %182 : vector<8x256xf32>
    %185 = arith.negf %184 : vector<8x256xf32>
    %186 = math.exp %185 : vector<8x256xf32>
    %cst_52 = arith.constant 1.000000e+00 : f32
    %187 = vector.broadcast %cst_52 : f32 to vector<8x256xf32>
    %188 = arith.addf %187, %186 : vector<8x256xf32>
    %189 = arith.divf %187, %188 : vector<8x256xf32>
    %190 = vector.extract_strided_slice %178 {offsets = [0, 256], sizes = [8, 256], strides = [1, 1]} : vector<8x768xbf16> to vector<8x256xbf16>
    %191 = vector.extract_strided_slice %180 {offsets = [0, 256], sizes = [8, 256], strides = [1, 1]} : vector<8x768xf32> to vector<8x256xf32>
    %192 = arith.extf %190 : vector<8x256xbf16> to vector<8x256xf32>
    %193 = arith.addf %192, %191 : vector<8x256xf32>
    %194 = arith.negf %193 : vector<8x256xf32>
    %195 = math.exp %194 : vector<8x256xf32>
    %cst_53 = arith.constant 1.000000e+00 : f32
    %196 = vector.broadcast %cst_53 : f32 to vector<8x256xf32>
    %197 = arith.addf %196, %195 : vector<8x256xf32>
    %198 = arith.divf %196, %197 : vector<8x256xf32>
    %199 = vector.extract_strided_slice %178 {offsets = [0, 512], sizes = [8, 256], strides = [1, 1]} : vector<8x768xbf16> to vector<8x256xbf16>
    %200 = vector.extract_strided_slice %180 {offsets = [0, 512], sizes = [8, 256], strides = [1, 1]} : vector<8x768xf32> to vector<8x256xf32>
    %201 = arith.addf %200, %18 : vector<8x256xf32>
    %202 = arith.mulf %189, %201 : vector<8x256xf32>
    %203 = arith.extf %199 : vector<8x256xbf16> to vector<8x256xf32>
    %204 = arith.addf %203, %202 : vector<8x256xf32>
    %205 = math.tanh %204 : vector<8x256xf32>
    %cst_54 = arith.constant 1.000000e+00 : f32
    %206 = vector.broadcast %cst_54 : f32 to vector<8x256xf32>
    %207 = arith.subf %206, %198 : vector<8x256xf32>
    %208 = arith.mulf %207, %205 : vector<8x256xf32>
    %209 = arith.mulf %198, %171 : vector<8x256xf32>
    %210 = arith.addf %208, %209 : vector<8x256xf32>
    %211 = arith.index_cast %c4_i32 : i32 to index
    %c0_55 = arith.constant 0 : index
    %c0_56 = arith.constant 0 : index
    %212 = vector.load %arg18[%211, %c0_55, %c0_56] : memref<8x8x256xf32, #tpu.memory_space<vmem>>, vector<1x8x256xf32>
    %213 = vector.shape_cast %212 : vector<1x8x256xf32> to vector<8x256xf32>
    %214 = vector.shape_cast %210 : vector<8x256xf32> to vector<1x8x256xf32>
    tpu.vector_store %arg18[%211, %c0_55, %c0_56], %214 {strides = array<i32>} : memref<8x8x256xf32, #tpu.memory_space<vmem>>, vector<1x8x256xf32>,
    %c5_i32 = arith.constant 5 : i32
    %215 = arith.index_cast %c5_i32 : i32 to index
    %c0_57 = arith.constant 0 : index
    %c0_58 = arith.constant 0 : index
    %216 = vector.load %arg17[%215, %c0_57, %c0_58] : memref<8x8x768xbf16, #tpu.memory_space<vmem>>, vector<1x8x768xbf16>
    %217 = vector.shape_cast %216 : vector<1x8x768xbf16> to vector<8x768xbf16>
    %218 = arith.truncf %210 : vector<8x256xf32> to vector<8x256xbf16>
    %cst_59 = arith.constant dense<0.000000e+00> : vector<8x768xf32>
    %219 = tpu.matmul %218, %15, %cst_59 {dimension_numbers = #tpu.dot_dimension_numbers<[1], [0], [0], [1], [0, 0, 1, 1], [], []>} : vector<8x256xbf16>, vector<256x768xbf16>, vector<8x768xf32> -> vector<8x768xf32>
    %220 = vector.extract_strided_slice %217 {offsets = [0, 0], sizes = [8, 256], strides = [1, 1]} : vector<8x768xbf16> to vector<8x256xbf16>
    %221 = vector.extract_strided_slice %219 {offsets = [0, 0], sizes = [8, 256], strides = [1, 1]} : vector<8x768xf32> to vector<8x256xf32>
    %222 = arith.extf %220 : vector<8x256xbf16> to vector<8x256xf32>
    %223 = arith.addf %222, %221 : vector<8x256xf32>
    %224 = arith.negf %223 : vector<8x256xf32>
    %225 = math.exp %224 : vector<8x256xf32>
    %cst_60 = arith.constant 1.000000e+00 : f32
    %226 = vector.broadcast %cst_60 : f32 to vector<8x256xf32>
    %227 = arith.addf %226, %225 : vector<8x256xf32>
    %228 = arith.divf %226, %227 : vector<8x256xf32>
    %229 = vector.extract_strided_slice %217 {offsets = [0, 256], sizes = [8, 256], strides = [1, 1]} : vector<8x768xbf16> to vector<8x256xbf16>
    %230 = vector.extract_strided_slice %219 {offsets = [0, 256], sizes = [8, 256], strides = [1, 1]} : vector<8x768xf32> to vector<8x256xf32>
    %231 = arith.extf %229 : vector<8x256xbf16> to vector<8x256xf32>
    %232 = arith.addf %231, %230 : vector<8x256xf32>
    %233 = arith.negf %232 : vector<8x256xf32>
    %234 = math.exp %233 : vector<8x256xf32>
    %cst_61 = arith.constant 1.000000e+00 : f32
    %235 = vector.broadcast %cst_61 : f32 to vector<8x256xf32>
    %236 = arith.addf %235, %234 : vector<8x256xf32>
    %237 = arith.divf %235, %236 : vector<8x256xf32>
    %238 = vector.extract_strided_slice %217 {offsets = [0, 512], sizes = [8, 256], strides = [1, 1]} : vector<8x768xbf16> to vector<8x256xbf16>
    %239 = vector.extract_strided_slice %219 {offsets = [0, 512], sizes = [8, 256], strides = [1, 1]} : vector<8x768xf32> to vector<8x256xf32>
    %240 = arith.addf %239, %18 : vector<8x256xf32>
    %241 = arith.mulf %228, %240 : vector<8x256xf32>
    %242 = arith.extf %238 : vector<8x256xbf16> to vector<8x256xf32>
    %243 = arith.addf %242, %241 : vector<8x256xf32>
    %244 = math.tanh %243 : vector<8x256xf32>
    %cst_62 = arith.constant 1.000000e+00 : f32
    %245 = vector.broadcast %cst_62 : f32 to vector<8x256xf32>
    %246 = arith.subf %245, %237 : vector<8x256xf32>
    %247 = arith.mulf %246, %244 : vector<8x256xf32>
    %248 = arith.mulf %237, %210 : vector<8x256xf32>
    %249 = arith.addf %247, %248 : vector<8x256xf32>
    %250 = arith.index_cast %c5_i32 : i32 to index
    %c0_63 = arith.constant 0 : index
    %c0_64 = arith.constant 0 : index
    %251 = vector.load %arg18[%250, %c0_63, %c0_64] : memref<8x8x256xf32, #tpu.memory_space<vmem>>, vector<1x8x256xf32>
    %252 = vector.shape_cast %251 : vector<1x8x256xf32> to vector<8x256xf32>
    %253 = vector.shape_cast %249 : vector<8x256xf32> to vector<1x8x256xf32>
    tpu.vector_store %arg18[%250, %c0_63, %c0_64], %253 {strides = array<i32>} : memref<8x8x256xf32, #tpu.memory_space<vmem>>, vector<1x8x256xf32>,
    %c6_i32 = arith.constant 6 : i32
    %254 = arith.index_cast %c6_i32 : i32 to index
    %c0_65 = arith.constant 0 : index
    %c0_66 = arith.constant 0 : index
    %255 = vector.load %arg17[%254, %c0_65, %c0_66] : memref<8x8x768xbf16, #tpu.memory_space<vmem>>, vector<1x8x768xbf16>
    %256 = vector.shape_cast %255 : vector<1x8x768xbf16> to vector<8x768xbf16>
    %257 = arith.truncf %249 : vector<8x256xf32> to vector<8x256xbf16>
    %cst_67 = arith.constant dense<0.000000e+00> : vector<8x768xf32>
    %258 = tpu.matmul %257, %15, %cst_67 {dimension_numbers = #tpu.dot_dimension_numbers<[1], [0], [0], [1], [0, 0, 1, 1], [], []>} : vector<8x256xbf16>, vector<256x768xbf16>, vector<8x768xf32> -> vector<8x768xf32>
    %259 = vector.extract_strided_slice %256 {offsets = [0, 0], sizes = [8, 256], strides = [1, 1]} : vector<8x768xbf16> to vector<8x256xbf16>
    %260 = vector.extract_strided_slice %258 {offsets = [0, 0], sizes = [8, 256], strides = [1, 1]} : vector<8x768xf32> to vector<8x256xf32>
    %261 = arith.extf %259 : vector<8x256xbf16> to vector<8x256xf32>
    %262 = arith.addf %261, %260 : vector<8x256xf32>
    %263 = arith.negf %262 : vector<8x256xf32>
    %264 = math.exp %263 : vector<8x256xf32>
    %cst_68 = arith.constant 1.000000e+00 : f32
    %265 = vector.broadcast %cst_68 : f32 to vector<8x256xf32>
    %266 = arith.addf %265, %264 : vector<8x256xf32>
    %267 = arith.divf %265, %266 : vector<8x256xf32>
    %268 = vector.extract_strided_slice %256 {offsets = [0, 256], sizes = [8, 256], strides = [1, 1]} : vector<8x768xbf16> to vector<8x256xbf16>
    %269 = vector.extract_strided_slice %258 {offsets = [0, 256], sizes = [8, 256], strides = [1, 1]} : vector<8x768xf32> to vector<8x256xf32>
    %270 = arith.extf %268 : vector<8x256xbf16> to vector<8x256xf32>
    %271 = arith.addf %270, %269 : vector<8x256xf32>
    %272 = arith.negf %271 : vector<8x256xf32>
    %273 = math.exp %272 : vector<8x256xf32>
    %cst_69 = arith.constant 1.000000e+00 : f32
    %274 = vector.broadcast %cst_69 : f32 to vector<8x256xf32>
    %275 = arith.addf %274, %273 : vector<8x256xf32>
    %276 = arith.divf %274, %275 : vector<8x256xf32>
    %277 = vector.extract_strided_slice %256 {offsets = [0, 512], sizes = [8, 256], strides = [1, 1]} : vector<8x768xbf16> to vector<8x256xbf16>
    %278 = vector.extract_strided_slice %258 {offsets = [0, 512], sizes = [8, 256], strides = [1, 1]} : vector<8x768xf32> to vector<8x256xf32>
    %279 = arith.addf %278, %18 : vector<8x256xf32>
    %280 = arith.mulf %267, %279 : vector<8x256xf32>
    %281 = arith.extf %277 : vector<8x256xbf16> to vector<8x256xf32>
    %282 = arith.addf %281, %280 : vector<8x256xf32>
    %283 = math.tanh %282 : vector<8x256xf32>
    %cst_70 = arith.constant 1.000000e+00 : f32
    %284 = vector.broadcast %cst_70 : f32 to vector<8x256xf32>
    %285 = arith.subf %284, %276 : vector<8x256xf32>
    %286 = arith.mulf %285, %283 : vector<8x256xf32>
    %287 = arith.mulf %276, %249 : vector<8x256xf32>
    %288 = arith.addf %286, %287 : vector<8x256xf32>
    %289 = arith.index_cast %c6_i32 : i32 to index
    %c0_71 = arith.constant 0 : index
    %c0_72 = arith.constant 0 : index
    %290 = vector.load %arg18[%289, %c0_71, %c0_72] : memref<8x8x256xf32, #tpu.memory_space<vmem>>, vector<1x8x256xf32>
    %291 = vector.shape_cast %290 : vector<1x8x256xf32> to vector<8x256xf32>
    %292 = vector.shape_cast %288 : vector<8x256xf32> to vector<1x8x256xf32>
    tpu.vector_store %arg18[%289, %c0_71, %c0_72], %292 {strides = array<i32>} : memref<8x8x256xf32, #tpu.memory_space<vmem>>, vector<1x8x256xf32>,
    %c7_i32 = arith.constant 7 : i32
    %293 = arith.index_cast %c7_i32 : i32 to index
    %c0_73 = arith.constant 0 : index
    %c0_74 = arith.constant 0 : index
    %294 = vector.load %arg17[%293, %c0_73, %c0_74] : memref<8x8x768xbf16, #tpu.memory_space<vmem>>, vector<1x8x768xbf16>
    %295 = vector.shape_cast %294 : vector<1x8x768xbf16> to vector<8x768xbf16>
    %296 = arith.truncf %288 : vector<8x256xf32> to vector<8x256xbf16>
    %cst_75 = arith.constant dense<0.000000e+00> : vector<8x768xf32>
    %297 = tpu.matmul %296, %15, %cst_75 {dimension_numbers = #tpu.dot_dimension_numbers<[1], [0], [0], [1], [0, 0, 1, 1], [], []>} : vector<8x256xbf16>, vector<256x768xbf16>, vector<8x768xf32> -> vector<8x768xf32>
    %298 = vector.extract_strided_slice %295 {offsets = [0, 0], sizes = [8, 256], strides = [1, 1]} : vector<8x768xbf16> to vector<8x256xbf16>
    %299 = vector.extract_strided_slice %297 {offsets = [0, 0], sizes = [8, 256], strides = [1, 1]} : vector<8x768xf32> to vector<8x256xf32>
    %300 = arith.extf %298 : vector<8x256xbf16> to vector<8x256xf32>
    %301 = arith.addf %300, %299 : vector<8x256xf32>
    %302 = arith.negf %301 : vector<8x256xf32>
    %303 = math.exp %302 : vector<8x256xf32>
    %cst_76 = arith.constant 1.000000e+00 : f32
    %304 = vector.broadcast %cst_76 : f32 to vector<8x256xf32>
    %305 = arith.addf %304, %303 : vector<8x256xf32>
    %306 = arith.divf %304, %305 : vector<8x256xf32>
    %307 = vector.extract_strided_slice %295 {offsets = [0, 256], sizes = [8, 256], strides = [1, 1]} : vector<8x768xbf16> to vector<8x256xbf16>
    %308 = vector.extract_strided_slice %297 {offsets = [0, 256], sizes = [8, 256], strides = [1, 1]} : vector<8x768xf32> to vector<8x256xf32>
    %309 = arith.extf %307 : vector<8x256xbf16> to vector<8x256xf32>
    %310 = arith.addf %309, %308 : vector<8x256xf32>
    %311 = arith.negf %310 : vector<8x256xf32>
    %312 = math.exp %311 : vector<8x256xf32>
    %cst_77 = arith.constant 1.000000e+00 : f32
    %313 = vector.broadcast %cst_77 : f32 to vector<8x256xf32>
    %314 = arith.addf %313, %312 : vector<8x256xf32>
    %315 = arith.divf %313, %314 : vector<8x256xf32>
    %316 = vector.extract_strided_slice %295 {offsets = [0, 512], sizes = [8, 256], strides = [1, 1]} : vector<8x768xbf16> to vector<8x256xbf16>
    %317 = vector.extract_strided_slice %297 {offsets = [0, 512], sizes = [8, 256], strides = [1, 1]} : vector<8x768xf32> to vector<8x256xf32>
    %318 = arith.addf %317, %18 : vector<8x256xf32>
    %319 = arith.mulf %306, %318 : vector<8x256xf32>
    %320 = arith.extf %316 : vector<8x256xbf16> to vector<8x256xf32>
    %321 = arith.addf %320, %319 : vector<8x256xf32>
    %322 = math.tanh %321 : vector<8x256xf32>
    %cst_78 = arith.constant 1.000000e+00 : f32
    %323 = vector.broadcast %cst_78 : f32 to vector<8x256xf32>
    %324 = arith.subf %323, %315 : vector<8x256xf32>
    %325 = arith.mulf %324, %322 : vector<8x256xf32>
    %326 = arith.mulf %315, %288 : vector<8x256xf32>
    %327 = arith.addf %325, %326 : vector<8x256xf32>
    %328 = arith.index_cast %c7_i32 : i32 to index
    %c0_79 = arith.constant 0 : index
    %c0_80 = arith.constant 0 : index
    %329 = vector.load %arg18[%328, %c0_79, %c0_80] : memref<8x8x256xf32, #tpu.memory_space<vmem>>, vector<1x8x256xf32>
    %330 = vector.shape_cast %329 : vector<1x8x256xf32> to vector<8x256xf32>
    %331 = vector.shape_cast %327 : vector<8x256xf32> to vector<1x8x256xf32>
    tpu.vector_store %arg18[%328, %c0_79, %c0_80], %331 {strides = array<i32>} : memref<8x8x256xf32, #tpu.memory_space<vmem>>, vector<1x8x256xf32>,
    %c8_i32 = arith.constant 8 : i32
    %c0_81 = arith.constant 0 : index
    %c0_82 = arith.constant 0 : index
    %332 = vector.load %arg2[%c0_81, %c0_82] : memref<8x8xf32, #tpu.memory_space<vmem>>, vector<8x8xf32>
    %c0_83 = arith.constant 0 : index
    %c0_84 = arith.constant 0 : index
    %c0_85 = arith.constant 0 : index
    %333 = vector.load %arg18[%c0_83, %c0_84, %c0_85] : memref<8x8x256xf32, #tpu.memory_space<vmem>>, vector<8x8x128xf32>
    %c0_86 = arith.constant 0 : index
    %c0_87 = arith.constant 0 : index
    %334 = vector.load %arg7[%c0_86, %c0_87] : memref<1x128xf32, #tpu.memory_space<vmem>>, vector<1x128xf32>
    %335 = vector.shape_cast %334 : vector<1x128xf32> to vector<1x1x128xf32>
    %336 = vector.broadcast %335 : vector<1x1x128xf32> to vector<8x8x128xf32>
    %337 = arith.mulf %333, %336 : vector<8x8x128xf32>
    %cst_88 = arith.constant dense<0.000000e+00> : vector<8x8xf32>
    %338 = vector.multi_reduction <add>, %337, %cst_88 [2] : vector<8x8x128xf32> to vector<8x8xf32>
    %c0_89 = arith.constant 0 : index
    %c0_90 = arith.constant 0 : index
    %339 = vector.load %arg8[%c0_89, %c0_90] : memref<1x1xf32, #tpu.memory_space<vmem>>, vector<1x1xf32>
    %340 = vector.broadcast %339 : vector<1x1xf32> to vector<8x8xf32>
    %341 = arith.addf %338, %340 : vector<8x8xf32>
    %cst_91 = arith.constant 0.000000e+00 : f32
    %342 = vector.broadcast %cst_91 : f32 to vector<8x8xf32>
    %343 = arith.cmpf ogt, %332, %342 : vector<8x8xf32>
    %cst_92 = arith.constant -1.000000e+30 : f32
    %344 = vector.broadcast %cst_92 : f32 to vector<8x8xf32>
    %345 = arith.select %343, %341, %344 : vector<8x8xi1>, vector<8x8xf32>
    %cst_93 = arith.constant dense<0xFF800000> : vector<8xf32>
    %346 = vector.multi_reduction <maximumf>, %345, %cst_93 [0] : vector<8x8xf32> to vector<8xf32>
    %347 = vector.shape_cast %346 : vector<8xf32> to vector<1x8xf32>
    %cst_94 = arith.constant 0.000000e+00 : f32
    %348 = vector.broadcast %cst_94 : f32 to vector<8x8xf32>
    %349 = arith.cmpf ogt, %332, %348 : vector<8x8xf32>
    %350 = vector.broadcast %347 : vector<1x8xf32> to vector<8x8xf32>
    %351 = arith.subf %341, %350 : vector<8x8xf32>
    %352 = math.exp %351 : vector<8x8xf32>
    %cst_95 = arith.constant 0.000000e+00 : f32
    %353 = vector.broadcast %cst_95 : f32 to vector<8x8xf32>
    %354 = arith.select %349, %352, %353 : vector<8x8xi1>, vector<8x8xf32>
    %cst_96 = arith.constant dense<0.000000e+00> : vector<8xf32>
    %355 = vector.multi_reduction <add>, %354, %cst_96 [0] : vector<8x8xf32> to vector<8xf32>
    %356 = vector.shape_cast %355 : vector<8xf32> to vector<1x8xf32>
    %cst_97 = arith.constant 1.000000e-30 : f32
    %357 = vector.broadcast %cst_97 : f32 to vector<1x8xf32>
    %358 = arith.maximumf %356, %357 : vector<1x8xf32>
    %359 = vector.broadcast %358 : vector<1x8xf32> to vector<8x8xf32>
    %360 = arith.divf %354, %359 : vector<8x8xf32>
    %c0_98 = arith.constant 0 : index
    %c0_99 = arith.constant 0 : index
    %361 = vector.load %arg14[%c0_98, %c0_99] : memref<8x8xf32, #tpu.memory_space<vmem>>, vector<8x8xf32>
    tpu.vector_store %arg14[%c0_98, %c0_99], %360 {strides = array<i32>} : memref<8x8xf32, #tpu.memory_space<vmem>>, vector<8x8xf32>,
    %c0_100 = arith.constant 0 : index
    %c0_101 = arith.constant 0 : index
    %c128 = arith.constant 128 : index
    %362 = vector.load %arg18[%c0_100, %c0_101, %c128] : memref<8x8x256xf32, #tpu.memory_space<vmem>>, vector<8x8x128xf32>
    %363 = vector.shape_cast %362 : vector<8x8x128xf32> to vector<64x128xf32>
    %364 = arith.truncf %363 : vector<64x128xf32> to vector<64x128xbf16>
    %c0_102 = arith.constant 0 : index
    %c0_103 = arith.constant 0 : index
    %365 = vector.load %arg9[%c0_102, %c0_103] : memref<128x128xbf16, #tpu.memory_space<vmem>>, vector<128x128xbf16>
    %cst_104 = arith.constant dense<0.000000e+00> : vector<64x128xf32>
    %366 = tpu.matmul %364, %365, %cst_104 {dimension_numbers = #tpu.dot_dimension_numbers<[1], [0], [0], [1], [0, 0, 1, 1], [], []>} : vector<64x128xbf16>, vector<128x128xbf16>, vector<64x128xf32> -> vector<64x128xf32>
    %c0_105 = arith.constant 0 : index
    %c0_106 = arith.constant 0 : index
    %367 = vector.load %arg10[%c0_105, %c0_106] : memref<1x128xf32, #tpu.memory_space<vmem>>, vector<1x128xf32>
    %368 = vector.broadcast %367 : vector<1x128xf32> to vector<64x128xf32>
    %369 = arith.addf %366, %368 : vector<64x128xf32>
    %370 = vector.shape_cast %369 : vector<64x128xf32> to vector<8x8x128xf32>
    %371 = vector.shape_cast %332 : vector<8x8xf32> to vector<8x8x1xf32>
    %372 = vector.broadcast %371 : vector<8x8x1xf32> to vector<8x8x128xf32>
    %373 = arith.mulf %370, %372 : vector<8x8x128xf32>
    %374 = math.tanh %373 : vector<8x8x128xf32>
    %375 = vector.extract_strided_slice %374 {offsets = [0, 0, 0], sizes = [8, 8, 32], strides = [1, 1, 1]} : vector<8x8x128xf32> to vector<8x8x32xf32>
    %376 = arith.truncf %375 : vector<8x8x32xf32> to vector<8x8x32xbf16>
    %c0_107 = arith.constant 0 : index
    %c0_108 = arith.constant 0 : index
    %c0_109 = arith.constant 0 : index
    %377 = vector.load %arg15[%c0_107, %c0_108, %c0_109] : memref<8x8x32xbf16, #tpu.memory_space<vmem>>, vector<8x8x32xbf16>
    tpu.vector_store %arg15[%c0_107, %c0_108, %c0_109], %376 {strides = array<i32>} : memref<8x8x32xbf16, #tpu.memory_space<vmem>>, vector<8x8x32xbf16>,
    %378 = vector.shape_cast %360 : vector<8x8xf32> to vector<8x8x1xf32>
    %379 = vector.broadcast %378 : vector<8x8x1xf32> to vector<8x8x128xf32>
    %380 = arith.mulf %379, %374 : vector<8x8x128xf32>
    %c0_110 = arith.constant 0 : index
    %c0_111 = arith.constant 0 : index
    %c0_112 = arith.constant 0 : index
    %381 = vector.load %arg16[%c0_110, %c0_111, %c0_112] : memref<8x8x128xbf16, #tpu.memory_space<vmem>>, vector<8x8x128xbf16>
    %382 = arith.extf %381 : vector<8x8x128xbf16> to vector<8x8x128xf32>
    %383 = arith.mulf %380, %382 : vector<8x8x128xf32>
    %cst_113 = arith.constant dense<0.000000e+00> : vector<8x128xf32>
    %384 = vector.multi_reduction <add>, %383, %cst_113 [0] : vector<8x8x128xf32> to vector<8x128xf32>
    %385 = arith.truncf %384 : vector<8x128xf32> to vector<8x128xbf16>
    %c0_114 = arith.constant 0 : index
    %c0_115 = arith.constant 0 : index
    %386 = vector.load %arg11[%c0_114, %c0_115] : memref<128x2xbf16, #tpu.memory_space<vmem>>, vector<128x2xbf16>
    %cst_116 = arith.constant dense<0.000000e+00> : vector<8x2xf32>
    %387 = tpu.matmul %385, %386, %cst_116 {dimension_numbers = #tpu.dot_dimension_numbers<[1], [0], [0], [1], [0, 0, 1, 1], [], []>} : vector<8x128xbf16>, vector<128x2xbf16>, vector<8x2xf32> -> vector<8x2xf32>
    %c0_117 = arith.constant 0 : index
    %c0_118 = arith.constant 0 : index
    %388 = vector.load %arg12[%c0_117, %c0_118] : memref<1x2xf32, #tpu.memory_space<vmem>>, vector<1x2xf32>
    %389 = vector.broadcast %388 : vector<1x2xf32> to vector<8x2xf32>
    %390 = arith.addf %387, %389 : vector<8x2xf32>
    %c0_119 = arith.constant 0 : index
    %c0_120 = arith.constant 0 : index
    %391 = vector.load %arg13[%c0_119, %c0_120] : memref<8x2xf32, #tpu.memory_space<vmem>>, vector<8x2xf32>
    tpu.vector_store %arg13[%c0_119, %c0_120], %390 {strides = array<i32>} : memref<8x2xf32, #tpu.memory_space<vmem>>, vector<8x2xf32>,
    return
  }
  func.func @transform_0(%arg0: i32) -> (i32, i32, i32) {
    %c0_i32 = arith.constant 0 : i32
    %c0_i32_0 = arith.constant 0 : i32
    %c0_i32_1 = arith.constant 0 : i32
    return %c0_i32, %arg0, %c0_i32_0 : i32, i32, i32
  }
  func.func @transform_1(%arg0: i32) -> (i32, i32) {
    %c0_i32 = arith.constant 0 : i32
    %c0_i32_0 = arith.constant 0 : i32
    return %c0_i32, %arg0 : i32, i32
  }
  func.func @transform_2(%arg0: i32) -> (i32, i32) {
    %c0_i32 = arith.constant 0 : i32
    %c0_i32_0 = arith.constant 0 : i32
    %c0_i32_1 = arith.constant 0 : i32
    return %c0_i32, %c0_i32_0 : i32, i32
  }
  func.func @transform_3(%arg0: i32) -> (i32, i32) {
    %c0_i32 = arith.constant 0 : i32
    %c0_i32_0 = arith.constant 0 : i32
    %c0_i32_1 = arith.constant 0 : i32
    return %c0_i32, %c0_i32_0 : i32, i32
  }
  func.func @transform_4(%arg0: i32) -> (i32, i32) {
    %c0_i32 = arith.constant 0 : i32
    %c0_i32_0 = arith.constant 0 : i32
    %c0_i32_1 = arith.constant 0 : i32
    return %c0_i32, %c0_i32_0 : i32, i32
  }
  func.func @transform_5(%arg0: i32) -> (i32, i32) {
    %c0_i32 = arith.constant 0 : i32
    %c0_i32_0 = arith.constant 0 : i32
    %c0_i32_1 = arith.constant 0 : i32
    return %c0_i32, %c0_i32_0 : i32, i32
  }
  func.func @transform_6(%arg0: i32) -> (i32, i32) {
    %c0_i32 = arith.constant 0 : i32
    %c0_i32_0 = arith.constant 0 : i32
    %c0_i32_1 = arith.constant 0 : i32
    return %c0_i32, %c0_i32_0 : i32, i32
  }
  func.func @transform_7(%arg0: i32) -> (i32, i32) {
    %c0_i32 = arith.constant 0 : i32
    %c0_i32_0 = arith.constant 0 : i32
    %c0_i32_1 = arith.constant 0 : i32
    return %c0_i32, %c0_i32_0 : i32, i32
  }
  func.func @transform_8(%arg0: i32) -> (i32, i32) {
    %c0_i32 = arith.constant 0 : i32
    %c0_i32_0 = arith.constant 0 : i32
    %c0_i32_1 = arith.constant 0 : i32
    return %c0_i32, %c0_i32_0 : i32, i32
  }
  func.func @transform_9(%arg0: i32) -> (i32, i32) {
    %c0_i32 = arith.constant 0 : i32
    %c0_i32_0 = arith.constant 0 : i32
    %c0_i32_1 = arith.constant 0 : i32
    return %c0_i32, %c0_i32_0 : i32, i32
  }
  func.func @transform_10(%arg0: i32) -> (i32, i32) {
    %c0_i32 = arith.constant 0 : i32
    %c0_i32_0 = arith.constant 0 : i32
    %c0_i32_1 = arith.constant 0 : i32
    return %c0_i32, %c0_i32_0 : i32, i32
  }
  func.func @transform_11(%arg0: i32) -> (i32, i32) {
    %c0_i32 = arith.constant 0 : i32
    %c0_i32_0 = arith.constant 0 : i32
    %c0_i32_1 = arith.constant 0 : i32
    return %c0_i32, %c0_i32_0 : i32, i32
  }
  func.func @transform_12(%arg0: i32) -> (i32, i32) {
    %c0_i32 = arith.constant 0 : i32
    %c0_i32_0 = arith.constant 0 : i32
    return %arg0, %c0_i32 : i32, i32
  }
  func.func @transform_13(%arg0: i32) -> (i32, i32) {
    %c0_i32 = arith.constant 0 : i32
    %c0_i32_0 = arith.constant 0 : i32
    return %c0_i32, %arg0 : i32, i32
  }
  func.func @transform_14(%arg0: i32) -> (i32, i32, i32) {
    %c0_i32 = arith.constant 0 : i32
    %c0_i32_0 = arith.constant 0 : i32
    %c0_i32_1 = arith.constant 0 : i32
    return %c0_i32, %arg0, %c0_i32_0 : i32, i32, i32
  }
}

</mosaic_0001>

<llo_original>
// kernel: retain_forward.1
$region0: #{retain_forward.1}
  #allocation0 [shape = 'u32[]', space=smem, size = 0x4, offset = 0x4, fixed_abs, tag = 'smem constant byte address 0x4 - core index']
  #allocation1 [shape = 'u32[144,128]{1,0:T(1,128)}', space=vmem, size = 0x12000, scoped, tag = 'internal scratch']
  #allocation2 [shape = 'bf16[8,8,128]{2,1,0:T(8,128)(2,1)}', space=vmem, size = 0x4000, scoped, tag = 'scratch operand']
  #allocation3 [shape = 'bf16[8,8,768]{2,1,0:T(8,128)(2,1)}', space=vmem, size = 0x18000, scoped, tag = 'scratch operand']
  #allocation4 [shape = 'f32[8,8,256]{2,1,0:T(8,128)}', space=vmem, size = 0x10000, scoped, tag = 'scratch operand']
  #allocation5 [shape = 'f32[1,1]{1,0:T(1,128)S(1)}', space=vmem, size = 0x200, scoped, tag = 'scoped memory for retain_forward.1']
  %s0 = inlined_call_operand.vmem [shape: bf16[8,8,40], index: 0, kind: input, shape index: {}]
  %s1 = inlined_call_operand.vmem [shape: f32[8,8], index: 1, kind: input, shape index: {}]
  %s2 = inlined_call_operand.vmem [shape: bf16[40,896], index: 2, kind: input, shape index: {}]
  %s3 = inlined_call_operand.vmem [shape: f32[1,768], index: 3, kind: input, shape index: {}]
  %s4 = inlined_call_operand.vmem [shape: bf16[256,768], index: 4, kind: input, shape index: {}]
  %s5 = inlined_call_operand.vmem [shape: f32[1,256], index: 5, kind: input, shape index: {}]
  %s6 = inlined_call_operand.vmem [shape: f32[1,128], index: 6, kind: input, shape index: {}]
  %s7 = inlined_call_operand.<no memory space> [shape: f32[1,1], index: 7, kind: input, shape index: {}]
  %s8 = inlined_call_operand.vmem [shape: bf16[128,128], index: 8, kind: input, shape index: {}]
  %s9 = inlined_call_operand.vmem [shape: f32[1,128], index: 9, kind: input, shape index: {}]
  %s10 = inlined_call_operand.vmem [shape: bf16[128,2], index: 10, kind: input, shape index: {}]
  %s11 = inlined_call_operand.vmem [shape: f32[1,2], index: 11, kind: input, shape index: {}]
  %s12 = inlined_call_operand.vmem [shape: f32[8,2], index: 12, kind: output, shape index: {0}]
  %s13 = inlined_call_operand.vmem [shape: f32[8,8], index: 13, kind: output, shape index: {1}]
  %s14 = inlined_call_operand.vmem [shape: bf16[8,8,32], index: 14, kind: output, shape index: {2}]
  %15 = xla_tuple %s12, %s13, %s14
  %s16 = sld [smem:[#allocation0]]
  $region74: #{retain_forward.1} parent=0
    _
  %s18 = ssub.s32 1, %s16
  %s19 = scalar_select 0, %s18, %s16
  %v20 = vstv %s7
  %21 = vst [vmem:[#allocation5] sm:$0x1] %v20
  // Predicated region
  $region2: #{retain_forward.1} parent=0 // pred_check
    _
  $region3: #{retain_forward.1} parent=0 // pred_check_branch
    %23 = sbr.rel (0) target = $region5
  $region4: #{retain_forward.1} parent=0 // pred_region
    _
  $region5: #{retain_forward.1} parent=0 // pred_fallthru
    _
  // Predicated region
  $region6: #{retain_forward.1} parent=0 // pred_check
    _
  $region7: #{retain_forward.1} parent=0 // pred_check_branch
    %25 = sbr.rel (0) target = $region9
  $region8: #{retain_forward.1} parent=0 // pred_region
    _
  $region9: #{retain_forward.1} parent=0 // pred_fallthru
    _
  // Predicated region
  $region10: #{retain_forward.1} parent=0 // pred_check
    _
  $region11: #{retain_forward.1} parent=0 // pred_check_branch
    %27 = sbr.rel (0) target = $region13
  $region12: #{retain_forward.1} parent=0 // pred_region
    _
  $region13: #{retain_forward.1} parent=0 // pred_fallthru
    _
  // Predicated region
  $region14: #{retain_forward.1} parent=0 // pred_check
    _
  $region15: #{retain_forward.1} parent=0 // pred_check_branch
    %29 = sbr.rel (0) target = $region17
  $region16: #{retain_forward.1} parent=0 // pred_region
    _
  $region17: #{retain_forward.1} parent=0 // pred_fallthru
    _
  // Predicated region
  $region18: #{retain_forward.1} parent=0 // pred_check
    _
  $region19: #{retain_forward.1} parent=0 // pred_check_branch
    %31 = sbr.rel (0) target = $region21
  $region20: #{retain_forward.1} parent=0 // pred_region
    _
  $region21: #{retain_forward.1} parent=0 // pred_fallthru
    _
  // Predicated region
  $region22: #{retain_forward.1} parent=0 // pred_check
    _
  $region23: #{retain_forward.1} parent=0 // pred_check_branch
    %33 = sbr.rel (0) target = $region25
  $region24: #{retain_forward.1} parent=0 // pred_region
    _
  $region25: #{retain_forward.1} parent=0 // pred_fallthru
    _
  // Predicated region
  $region26: #{retain_forward.1} parent=0 // pred_check
    _
  $region27: #{retain_forward.1} parent=0 // pred_check_branch
    %35 = sbr.rel (0) target = $region29
  $region28: #{retain_forward.1} parent=0 // pred_region
    _
  $region29: #{retain_forward.1} parent=0 // pred_fallthru
    _
  // Predicated region
  $region30: #{retain_forward.1} parent=0 // pred_check
    _
  $region31: #{retain_forward.1} parent=0 // pred_check_branch
    %37 = sbr.rel (0) target = $region33
  $region32: #{retain_forward.1} parent=0 // pred_region
    _
  $region33: #{retain_forward.1} parent=0 // pred_fallthru
    _
  // Predicated region
  $region34: #{retain_forward.1} parent=0 // pred_check
    _
  $region35: #{retain_forward.1} parent=0 // pred_check_branch
    %39 = sbr.rel (0) target = $region37
  $region36: #{retain_forward.1} parent=0 // pred_region
    _
  $region37: #{retain_forward.1} parent=0 // pred_fallthru
    _
  // Predicated region
  $region38: #{retain_forward.1} parent=0 // pred_check
    _
  $region39: #{retain_forward.1} parent=0 // pred_check_branch
    %41 = sbr.rel (0) target = $region41
  $region40: #{retain_forward.1} parent=0 // pred_region
    _
  $region41: #{retain_forward.1} parent=0 // pred_fallthru
    _
  // Predicated region
  $region42: #{retain_forward.1} parent=0 // pred_check
    _
  $region43: #{retain_forward.1} parent=0 // pred_check_branch
    %43 = sbr.rel (0) target = $region45
  $region44: #{retain_forward.1} parent=0 // pred_region
    _
  $region45: #{retain_forward.1} parent=0 // pred_fallthru
    _
  // Predicated region
  $region46: #{retain_forward.1} parent=0 // pred_check
    _
  $region47: #{retain_forward.1} parent=0 // pred_check_branch
    %45 = sbr.rel (0) target = $region49
  $region48: #{retain_forward.1} parent=0 // pred_region
    _
  $region49: #{retain_forward.1} parent=0 // pred_fallthru
    _
  %v47 = vld [vmem:[%s2] sm:$0xff]
  %v48 = vld [vmem:[%s2 + $0x8] sm:$0xff]
  %v49 = vld [vmem:[%s2 + $0x10] sm:$0xff]
  %v50 = vld [vmem:[%s2 + $0x18] sm:$0xf]
  %v51 = vld [vmem:[%s2 + $0x1c] sm:$0xff]
  %v52 = vld [vmem:[%s2 + $0x24] sm:$0xff]
  %v53 = vld [vmem:[%s2 + $0x2c] sm:$0xff]
  %v54 = vld [vmem:[%s2 + $0x34] sm:$0xf]
  %v55 = vld [vmem:[%s2 + $0x38] sm:$0xff]
  %v56 = vld [vmem:[%s2 + $0x40] sm:$0xff]
  %v57 = vld [vmem:[%s2 + $0x48] sm:$0xff]
  %v58 = vld [vmem:[%s2 + $0x50] sm:$0xf]
  %v59 = vld [vmem:[%s2 + $0x54] sm:$0xff]
  %v60 = vld [vmem:[%s2 + $0x5c] sm:$0xff]
  %v61 = vld [vmem:[%s2 + $0x64] sm:$0xff]
  %v62 = vld [vmem:[%s2 + $0x6c] sm:$0xf]
  %v63 = vld [vmem:[%s2 + $0x70] sm:$0xff]
  %v64 = vld [vmem:[%s2 + $0x78] sm:$0xff]
  %v65 = vld [vmem:[%s2 + $0x80] sm:$0xff]
  %v66 = vld [vmem:[%s2 + $0x88] sm:$0xf]
  %v67 = vld [vmem:[%s3] sm:$0x3f]
  %v68 = vld [vmem:[%s0] sm:$0xf]
  %v69 = vld [vmem:[%s0 + $0x4] sm:$0xf]
  %v70 = vld [vmem:[%s0 + $0x8] sm:$0xf]
  %v71 = vld [vmem:[%s0 + $0xc] sm:$0xf]
  %v72 = vld [vmem:[%s0 + $0x10] sm:$0xf]
  %v73 = vld [vmem:[%s0 + $0x14] sm:$0xf]
  %v74 = vld [vmem:[%s0 + $0x18] sm:$0xf]
  %v75 = vld [vmem:[%s0 + $0x1c] sm:$0xf]
  %v84 = vunpack.c.l.b16 %v68
  %v85 = vunpack.c.l.b16 %v69
  %v86 = vunpack.c.l.b16 %v70
  %v87 = vunpack.c.l.b16 %v71
  %v88 = vunpack.c.l.b16 %v72
  %v89 = vunpack.c.l.b16 %v73
  %v90 = vunpack.c.l.b16 %v74
  %v91 = vunpack.c.l.b16 %v75
  %v92 = vpack.c.b16 %v85, %v84
  %v93 = vpack.c.b16 %v87, %v86
  %v94 = vpack.c.b16 %v89, %v88
  %v95 = vpack.c.b16 %v91, %v90
  %v116 = vunpack.c.l.b16 %v47
  %v117 = vunpack.c.h.b16 %v47
  %v118 = vunpack.c.l.b16 %v48
  %v119 = vunpack.c.h.b16 %v48
  %v120 = vunpack.c.l.b16 %v49
  %v121 = vunpack.c.h.b16 %v49
  %v122 = vunpack.c.l.b16 %v50
  %v123 = vunpack.c.l.b16 %v51
  %v124 = vunpack.c.h.b16 %v51
  %v125 = vunpack.c.l.b16 %v52
  %v126 = vunpack.c.h.b16 %v52
  %v127 = vunpack.c.l.b16 %v53
  %v128 = vunpack.c.h.b16 %v53
  %v129 = vunpack.c.l.b16 %v54
  %v130 = vunpack.c.l.b16 %v55
  %v131 = vunpack.c.h.b16 %v55
  %v132 = vunpack.c.l.b16 %v56
  %v133 = vunpack.c.h.b16 %v56
  %v134 = vunpack.c.l.b16 %v57
  %v135 = vunpack.c.h.b16 %v57
  %v136 = vunpack.c.l.b16 %v58
  %v137 = vunpack.c.l.b16 %v59
  %v138 = vunpack.c.h.b16 %v59
  %v139 = vunpack.c.l.b16 %v60
  %v140 = vunpack.c.h.b16 %v60
  %v141 = vunpack.c.l.b16 %v61
  %v142 = vunpack.c.h.b16 %v61
  %v143 = vunpack.c.l.b16 %v62
  %v144 = vunpack.c.l.b16 %v63
  %v145 = vunpack.c.h.b16 %v63
  %v146 = vunpack.c.l.b16 %v64
  %v147 = vunpack.c.h.b16 %v64
  %v148 = vunpack.c.l.b16 %v65
  %v149 = vunpack.c.h.b16 %v65
  %v150 = vunpack.c.l.b16 %v66
  %v151 = vpack.c.b16 %v123, %v116
  %v152 = vpack.c.b16 %v124, %v117
  %v153 = vpack.c.b16 %v125, %v118
  %v154 = vpack.c.b16 %v126, %v119
  %v155 = vpack.c.b16 %v127, %v120
  %v156 = vpack.c.b16 %v128, %v121
  %v157 = vpack.c.b16 %v129, %v122
  %v158 = vpack.c.b16 %v137, %v130
  %v159 = vpack.c.b16 %v138, %v131
  %v160 = vpack.c.b16 %v139, %v132
  %v161 = vpack.c.b16 %v140, %v133
  %v162 = vpack.c.b16 %v141, %v134
  %v163 = vpack.c.b16 %v142, %v135
  %v164 = vpack.c.b16 %v143, %v136
  %v165 = vpack.c.b16 %v144, %v144
  %v166 = vpack.c.b16 %v145, %v145
  %v167 = vpack.c.b16 %v146, %v146
  %v168 = vpack.c.b16 %v147, %v147
  %v169 = vpack.c.b16 %v148, %v148
  %v170 = vpack.c.b16 %v149, %v149
  %v171 = vpack.c.b16 %v150, %v150
  %vm186 = vcmask 326656
  %v188 = vsel %vm186, %v92, 0
  %v191 = vsel %vm186, %v93, 0
  %v194 = vsel %vm186, %v94, 0
  %v197 = vsel %vm186, %v95, 0
  %vm199 = vcmask 1043456
  %v201 = vsel %vm199, %v165, 0
  %v204 = vsel %vm199, %v166, 0
  %v207 = vsel %vm199, %v167, 0
  %v210 = vsel %vm199, %v168, 0
  %v213 = vsel %vm199, %v169, 0
  %v216 = vsel %vm199, %v170, 0
  %v219 = vsel %vm199, %v171, 0
  %221 = vmatprep.subr.bf16.mxu0 %v152
  %222 = vmatpush1.bf16.msra.mxu0 %v151
  %223 = vmatprep.subr.bf16.mxu0 %v159
  %224 = vmatpush1.bf16.msra.mxu0 %v158
  %225 = vmatprep.subr.bf16.mxu0 %v204
  %226 = vmatpush1.bf16.msra.mxu0 %v201
  %227 = vmatprep.subr.bf16.mxu0 0
  %228 = vmatpush1.bf16.msra.mxu0 0
  %229 = vmatprep.subr.bf16.mxu0 0
  %230 = vmatpush1.bf16.msra.mxu0 0
  %231 = vmatprep.subr.bf16.mxu0 0
  %232 = vmatpush1.bf16.msra.mxu0 0
  %233 = vmatprep.subr.bf16.mxu0 0
  %234 = vmatpush1.bf16.msra.mxu0 0
  %235 = vmatprep.subr.bf16.mxu0 0
  %236 = vmatpush1.bf16.msra.mxu0 0
  %237 = vmatprep.subr.bf16.mxu0 0
  %238 = vmatpush1.bf16.msra.mxu0 0
  %239 = vmatprep.subr.bf16.mxu0 0
  %240 = vmatpush1.bf16.msra.mxu0 0
  %241 = vmatprep.subr.bf16.mxu0 0
  %242 = vmatpush1.bf16.msra.mxu0 0
  %243 = vmatprep.subr.bf16.mxu0 0
  %244 = vmatpush1.bf16.msra.mxu0 0
  %245 = vmatprep.subr.bf16.mxu0 0
  %246 = vmatpush1.bf16.msra.mxu0 0
  %247 = vmatprep.subr.bf16.mxu0 0
  %248 = vmatpush1.bf16.msra.mxu0 0
  %249 = vmatprep.subr.bf16.mxu0 0
  %250 = vmatpush1.bf16.msra.mxu0 0
  %251 = vmatprep.subr.bf16.mxu0 0
  %252 = vmatpush1.bf16.msra.mxu0 0
  %253 = vmatprep.mubr.bf16.mxu0 0
  %254 = vmatmul.mubr.bf16.gmra.mrb[0].mxu0 %v188
  %v255 = vpop.f32.mrb[0].mxu0
  %v256 = vadd.f32 0.0, %v255
  %v257 = vpop.f32.mrb[0].mxu0
  %v258 = vadd.f32 0.0, %v257
  %v259 = vpop.f32.mrb[0].mxu0
  %v260 = vadd.f32 0.0, %v259
  %v261 = vpop.f32.mrb[0].mxu0
  %v262 = vadd.f32 0.0, %v261
  %263 = vmatprep.mubr.bf16.mxu0 0
  %264 = vmatmul.mubr.bf16.gmra.mrb[0].mxu0 %v191
  %v265 = vpop.f32.mrb[0].mxu0
  %v266 = vadd.f32 0.0, %v265
  %v267 = vpop.f32.mrb[0].mxu0
  %v268 = vadd.f32 0.0, %v267
  %v269 = vpop.f32.mrb[0].mxu0
  %v270 = vadd.f32 0.0, %v269
  %v271 = vpop.f32.mrb[0].mxu0
  %v272 = vadd.f32 0.0, %v271
  %273 = vmatprep.mubr.bf16.mxu0 0
  %274 = vmatmul.mubr.bf16.gmra.mrb[0].mxu0 %v194
  %v275 = vpop.f32.mrb[0].mxu0
  %v276 = vadd.f32 0.0, %v275
  %v277 = vpop.f32.mrb[0].mxu0
  %v278 = vadd.f32 0.0, %v277
  %v279 = vpop.f32.mrb[0].mxu0
  %v280 = vadd.f32 0.0, %v279
  %v281 = vpop.f32.mrb[0].mxu0
  %v282 = vadd.f32 0.0, %v281
  %283 = vmatprep.mubr.bf16.mxu0 0
  %284 = vmatmul.mubr.bf16.gmra.mrb[0].mxu0 %v197
  %v285 = vpop.f32.mrb[0].mxu0
  %v286 = vadd.f32 0.0, %v285
  %v287 = vpop.f32.mrb[0].mxu0
  %v288 = vadd.f32 0.0, %v287
  %v289 = vpop.f32.mrb[0].mxu0
  %v290 = vadd.f32 0.0, %v289
  %v291 = vpop.f32.mrb[0].mxu0
  %v292 = vadd.f32 0.0, %v291
  %293 = vdwg.mxu0
  %294 = vmatprep.subr.bf16.mxu0 %v154
  %295 = vmatpush1.bf16.msra.mxu0 %v153
  %296 = vmatprep.subr.bf16.mxu0 %v161
  %297 = vmatpush1.bf16.msra.mxu0 %v160
  %298 = vmatprep.subr.bf16.mxu0 %v210
  %299 = vmatpush1.bf16.msra.mxu0 %v207
  %300 = vmatprep.subr.bf16.mxu0 0
  %301 = vmatpush1.bf16.msra.mxu0 0
  %302 = vmatprep.subr.bf16.mxu0 0
  %303 = vmatpush1.bf16.msra.mxu0 0
  %304 = vmatprep.subr.bf16.mxu0 0
  %305 = vmatpush1.bf16.msra.mxu0 0
  %306 = vmatprep.subr.bf16.mxu0 0
  %307 = vmatpush1.bf16.msra.mxu0 0
  %308 = vmatprep.subr.bf16.mxu0 0
  %309 = vmatpush1.bf16.msra.mxu0 0
  %310 = vmatprep.subr.bf16.mxu0 0
  %311 = vmatpush1.bf16.msra.mxu0 0
  %312 = vmatprep.subr.bf16.mxu0 0
  %313 = vmatpush1.bf16.msra.mxu0 0
  %314 = vmatprep.subr.bf16.mxu0 0
  %315 = vmatpush1.bf16.msra.mxu0 0
  %316 = vmatprep.subr.bf16.mxu0 0
  %317 = vmatpush1.bf16.msra.mxu0 0
  %318 = vmatprep.subr.bf16.mxu0 0
  %319 = vmatpush1.bf16.msra.mxu0 0
  %320 = vmatprep.subr.bf16.mxu0 0
  %321 = vmatpush1.bf16.msra.mxu0 0
  %322 = vmatprep.subr.bf16.mxu0 0
  %323 = vmatpush1.bf16.msra.mxu0 0
  %324 = vmatprep.subr.bf16.mxu0 0
  %325 = vmatpush1.bf16.msra.mxu0 0
  %326 = vmatprep.mubr.bf16.mxu0 0
  %327 = vmatmul.mubr.bf16.gmra.mrb[0].mxu0 %v188
  %v328 = vpop.f32.mrb[0].mxu0
  %v329 = vadd.f32 0.0, %v328
  %v330 = vpop.f32.mrb[0].mxu0
  %v331 = vadd.f32 0.0, %v330
  %v332 = vpop.f32.mrb[0].mxu0
  %v333 = vadd.f32 0.0, %v332
  %v334 = vpop.f32.mrb[0].mxu0
  %v335 = vadd.f32 0.0, %v334
  %336 = vmatprep.mubr.bf16.mxu0 0
  %337 = vmatmul.mubr.bf16.gmra.mrb[0].mxu0 %v191
  %v338 = vpop.f32.mrb[0].mxu0
  %v339 = vadd.f32 0.0, %v338
  %v340 = vpop.f32.mrb[0].mxu0
  %v341 = vadd.f32 0.0, %v340
  %v342 = vpop.f32.mrb[0].mxu0
  %v343 = vadd.f32 0.0, %v342
  %v344 = vpop.f32.mrb[0].mxu0
  %v345 = vadd.f32 0.0, %v344
  %346 = vmatprep.mubr.bf16.mxu0 0
  %347 = vmatmul.mubr.bf16.gmra.mrb[0].mxu0 %v194
  %v348 = vpop.f32.mrb[0].mxu0
  %v349 = vadd.f32 0.0, %v348
  %v350 = vpop.f32.mrb[0].mxu0
  %v351 = vadd.f32 0.0, %v350
  %v352 = vpop.f32.mrb[0].mxu0
  %v353 = vadd.f32 0.0, %v352
  %v354 = vpop.f32.mrb[0].mxu0
  %v355 = vadd.f32 0.0, %v354
  %356 = vmatprep.mubr.bf16.mxu0 0
  %357 = vmatmul.mubr.bf16.gmra.mrb[0].mxu0 %v197
  %v358 = vpop.f32.mrb[0].mxu0
  %v359 = vadd.f32 0.0, %v358
  %v360 = vpop.f32.mrb[0].mxu0
  %v361 = vadd.f32 0.0, %v360
  %v362 = vpop.f32.mrb[0].mxu0
  %v363 = vadd.f32 0.0, %v362
  %v364 = vpop.f32.mrb[0].mxu0
  %v365 = vadd.f32 0.0, %v364
  %366 = vdwg.mxu0
  %367 = vmatprep.subr.bf16.mxu0 %v156
  %368 = vmatpush1.bf16.msra.mxu0 %v155
  %369 = vmatprep.subr.bf16.mxu0 %v163
  %370 = vmatpush1.bf16.msra.mxu0 %v162
  %371 = vmatprep.subr.bf16.mxu0 %v216
  %372 = vmatpush1.bf16.msra.mxu0 %v213
  %373 = vmatprep.subr.bf16.mxu0 0
  %374 = vmatpush1.bf16.msra.mxu0 0
  %375 = vmatprep.subr.bf16.mxu0 0
  %376 = vmatpush1.bf16.msra.mxu0 0
  %377 = vmatprep.subr.bf16.mxu0 0
  %378 = vmatpush1.bf16.msra.mxu0 0
  %379 = vmatprep.subr.bf16.mxu0 0
  %380 = vmatpush1.bf16.msra.mxu0 0
  %381 = vmatprep.subr.bf16.mxu0 0
  %382 = vmatpush1.bf16.msra.mxu0 0
  %383 = vmatprep.subr.bf16.mxu0 0
  %384 = vmatpush1.bf16.msra.mxu0 0
  %385 = vmatprep.subr.bf16.mxu0 0
  %386 = vmatpush1.bf16.msra.mxu0 0
  %387 = vmatprep.subr.bf16.mxu0 0
  %388 = vmatpush1.bf16.msra.mxu0 0
  %389 = vmatprep.subr.bf16.mxu0 0
  %390 = vmatpush1.bf16.msra.mxu0 0
  %391 = vmatprep.subr.bf16.mxu0 0
  %392 = vmatpush1.bf16.msra.mxu0 0
  %393 = vmatprep.subr.bf16.mxu0 0
  %394 = vmatpush1.bf16.msra.mxu0 0
  %395 = vmatprep.subr.bf16.mxu0 0
  %396 = vmatpush1.bf16.msra.mxu0 0
  %397 = vmatprep.subr.bf16.mxu0 0
  %398 = vmatpush1.bf16.msra.mxu0 0
  %399 = vmatprep.mubr.bf16.mxu0 0
  %400 = vmatmul.mubr.bf16.gmra.mrb[0].mxu0 %v188
  %v401 = vpop.f32.mrb[0].mxu0
  %v402 = vadd.f32 0.0, %v401
  %v403 = vpop.f32.mrb[0].mxu0
  %v404 = vadd.f32 0.0, %v403
  %v405 = vpop.f32.mrb[0].mxu0
  %v406 = vadd.f32 0.0, %v405
  %v407 = vpop.f32.mrb[0].mxu0
  %v408 = vadd.f32 0.0, %v407
  %409 = vmatprep.mubr.bf16.mxu0 0
  %410 = vmatmul.mubr.bf16.gmra.mrb[0].mxu0 %v191
  %v411 = vpop.f32.mrb[0].mxu0
  %v412 = vadd.f32 0.0, %v411
  %v413 = vpop.f32.mrb[0].mxu0
  %v414 = vadd.f32 0.0, %v413
  %v415 = vpop.f32.mrb[0].mxu0
  %v416 = vadd.f32 0.0, %v415
  %v417 = vpop.f32.mrb[0].mxu0
  %v418 = vadd.f32 0.0, %v417
  %419 = vmatprep.mubr.bf16.mxu0 0
  %420 = vmatmul.mubr.bf16.gmra.mrb[0].mxu0 %v194
  %v421 = vpop.f32.mrb[0].mxu0
  %v422 = vadd.f32 0.0, %v421
  %v423 = vpop.f32.mrb[0].mxu0
  %v424 = vadd.f32 0.0, %v423
  %v425 = vpop.f32.mrb[0].mxu0
  %v426 = vadd.f32 0.0, %v425
  %v427 = vpop.f32.mrb[0].mxu0
  %v428 = vadd.f32 0.0, %v427
  %429 = vmatprep.mubr.bf16.mxu0 0
  %430 = vmatmul.mubr.bf16.gmra.mrb[0].mxu0 %v197
  %v431 = vpop.f32.mrb[0].mxu0
  %v432 = vadd.f32 0.0, %v431
  %v433 = vpop.f32.mrb[0].mxu0
  %v434 = vadd.f32 0.0, %v433
  %v435 = vpop.f32.mrb[0].mxu0
  %v436 = vadd.f32 0.0, %v435
  %v437 = vpop.f32.mrb[0].mxu0
  %v438 = vadd.f32 0.0, %v437
  %439 = vdwg.mxu0
  %440 = vmatprep.subr.bf16.mxu0 0
  %441 = vmatpush1.bf16.msra.mxu0 %v157
  %442 = vmatprep.subr.bf16.mxu0 0
  %443 = vmatpush1.bf16.msra.mxu0 %v164
  %444 = vmatprep.subr.bf16.mxu0 0
  %445 = vmatpush1.bf16.msra.mxu0 %v219
  %446 = vmatprep.subr.bf16.mxu0 0
  %447 = vmatpush1.bf16.msra.mxu0 0
  %448 = vmatprep.subr.bf16.mxu0 0
  %449 = vmatpush1.bf16.msra.mxu0 0
  %450 = vmatprep.subr.bf16.mxu0 0
  %451 = vmatpush1.bf16.msra.mxu0 0
  %452 = vmatprep.subr.bf16.mxu0 0
  %453 = vmatpush1.bf16.msra.mxu0 0
  %454 = vmatprep.subr.bf16.mxu0 0
  %455 = vmatpush1.bf16.msra.mxu0 0
  %456 = vmatprep.subr.bf16.mxu0 0
  %457 = vmatpush1.bf16.msra.mxu0 0
  %458 = vmatprep.subr.bf16.mxu0 0
  %459 = vmatpush1.bf16.msra.mxu0 0
  %460 = vmatprep.subr.bf16.mxu0 0
  %461 = vmatpush1.bf16.msra.mxu0 0
  %462 = vmatprep.subr.bf16.mxu0 0
  %463 = vmatpush1.bf16.msra.mxu0 0
  %464 = vmatprep.subr.bf16.mxu0 0
  %465 = vmatpush1.bf16.msra.mxu0 0
  %466 = vmatprep.subr.bf16.mxu0 0
  %467 = vmatpush1.bf16.msra.mxu0 0
  %468 = vmatprep.subr.bf16.mxu0 0
  %469 = vmatpush1.bf16.msra.mxu0 0
  %470 = vmatprep.subr.bf16.mxu0 0
  %471 = vmatpush1.bf16.msra.mxu0 0
  %472 = vmatprep.mubr.bf16.mxu0 0
  %473 = vmatmul.mubr.bf16.gmra.mrb[0].mxu0 %v188
  %v474 = vpop.f32.mrb[0].mxu0
  %v475 = vadd.f32 0.0, %v474
  %v476 = vpop.f32.mrb[0].mxu0
  %v477 = vpop.f32.mrb[0].mxu0
  %v478 = vadd.f32 0.0, %v477
  %v479 = vpop.f32.mrb[0].mxu0
  %480 = vmatprep.mubr.bf16.mxu0 0
  %481 = vmatmul.mubr.bf16.gmra.mrb[0].mxu0 %v191
  %v482 = vpop.f32.mrb[0].mxu0
  %v483 = vadd.f32 0.0, %v482
  %v484 = vpop.f32.mrb[0].mxu0
  %v485 = vpop.f32.mrb[0].mxu0
  %v486 = vadd.f32 0.0, %v485
  %v487 = vpop.f32.mrb[0].mxu0
  %488 = vmatprep.mubr.bf16.mxu0 0
  %489 = vmatmul.mubr.bf16.gmra.mrb[0].mxu0 %v194
  %v490 = vpop.f32.mrb[0].mxu0
  %v491 = vadd.f32 0.0, %v490
  %v492 = vpop.f32.mrb[0].mxu0
  %v493 = vpop.f32.mrb[0].mxu0
  %v494 = vadd.f32 0.0, %v493
  %v495 = vpop.f32.mrb[0].mxu0
  %496 = vmatprep.mubr.bf16.mxu0 0
  %497 = vmatmul.mubr.bf16.gmra.mrb[0].mxu0 %v197
  %v498 = vpop.f32.mrb[0].mxu0
  %v499 = vadd.f32 0.0, %v498
  %v500 = vpop.f32.mrb[0].mxu0
  %v501 = vpop.f32.mrb[0].mxu0
  %v502 = vadd.f32 0.0, %v501
  %v503 = vpop.f32.mrb[0].mxu0
  %504 = vdwg.mxu0
  %v505 = vpack.c.bf16 %v256, %v256
  %v506 = vpack.c.bf16 %v260, %v260
  %v507 = vpack.c.bf16 %v266, %v266
  %v508 = vpack.c.bf16 %v270, %v270
  %v509 = vpack.c.bf16 %v276, %v276
  %v510 = vpack.c.bf16 %v280, %v280
  %v511 = vpack.c.bf16 %v286, %v286
  %v512 = vpack.c.bf16 %v290, %v290
  %513 = vst [vmem:[#allocation2] sm:$0xf] %v505
  %514 = vst [vmem:[#allocation2 + $0x4] sm:$0xf] %v506
  %515 = vst [vmem:[#allocation2 + $0x8] sm:$0xf] %v507
  %516 = vst [vmem:[#allocation2 + $0xc] sm:$0xf] %v508
  %517 = vst [vmem:[#allocation2 + $0x10] sm:$0xf] %v509
  %518 = vst [vmem:[#allocation2 + $0x14] sm:$0xf] %v510
  %519 = vst [vmem:[#allocation2 + $0x18] sm:$0xf] %v511
  %520 = vst [vmem:[#allocation2 + $0x1c] sm:$0xf] %v512
  %v522 = vlaneseq
  %v523 = vshrl.u32 %v522, 7
  %v524 = vsub.s32 0, %v523
  %v525 = vrot.slane %v67, %v524
  %v526 = vlaneseq
  %v527 = vshrl.u32 %v526, 7
  %v528 = vsub.s32 1, %v527
  %v529 = vrot.slane %v67, %v528
  %v530 = vlaneseq
  %v531 = vshrl.u32 %v530, 7
  %v532 = vsub.s32 2, %v531
  %v533 = vrot.slane %v67, %v532
  %v534 = vlaneseq
  %v535 = vshrl.u32 %v534, 7
  %v536 = vsub.s32 3, %v535
  %v537 = vrot.slane %v67, %v536
  %v538 = vlaneseq
  %v539 = vshrl.u32 %v538, 7
  %v540 = vsub.s32 4, %v539
  %v541 = vrot.slane %v67, %v540
  %v542 = vlaneseq
  %v543 = vshrl.u32 %v542, 7
  %v544 = vsub.s32 5, %v543
  %v545 = vrot.slane %v67, %v544
  %v552 = vadd.f32 %v258, %v525
  %v553 = vadd.f32 %v329, %v529
  %v554 = vadd.f32 %v331, %v533
  %v555 = vadd.f32 %v402, %v537
  %v556 = vadd.f32 %v404, %v541
  %v557 = vadd.f32 %v475, %v545
  %v558 = vadd.f32 %v262, %v525
  %v559 = vadd.f32 %v333, %v529
  %v560 = vadd.f32 %v335, %v533
  %v561 = vadd.f32 %v406, %v537
  %v562 = vadd.f32 %v408, %v541
  %v563 = vadd.f32 %v478, %v545
  %v564 = vadd.f32 %v268, %v525
  %v565 = vadd.f32 %v339, %v529
  %v566 = vadd.f32 %v341, %v533
  %v567 = vadd.f32 %v412, %v537
  %v568 = vadd.f32 %v414, %v541
  %v569 = vadd.f32 %v483, %v545
  %v570 = vadd.f32 %v272, %v525
  %v571 = vadd.f32 %v343, %v529
  %v572 = vadd.f32 %v345, %v533
  %v573 = vadd.f32 %v416, %v537
  %v574 = vadd.f32 %v418, %v541
  %v575 = vadd.f32 %v486, %v545
  %v576 = vadd.f32 %v278, %v525
  %v577 = vadd.f32 %v349, %v529
  %v578 = vadd.f32 %v351, %v533
  %v579 = vadd.f32 %v422, %v537
  %v580 = vadd.f32 %v424, %v541
  %v581 = vadd.f32 %v491, %v545
  %v582 = vadd.f32 %v282, %v525
  %v583 = vadd.f32 %v353, %v529
  %v584 = vadd.f32 %v355, %v533
  %v585 = vadd.f32 %v426, %v537
  %v586 = vadd.f32 %v428, %v541
  %v587 = vadd.f32 %v494, %v545
  %v588 = vadd.f32 %v288, %v525
  %v589 = vadd.f32 %v359, %v529
  %v590 = vadd.f32 %v361, %v533
  %v591 = vadd.f32 %v432, %v537
  %v592 = vadd.f32 %v434, %v541
  %v593 = vadd.f32 %v499, %v545
  %v594 = vadd.f32 %v292, %v525
  %v595 = vadd.f32 %v363, %v529
  %v596 = vadd.f32 %v365, %v533
  %v597 = vadd.f32 %v436, %v537
  %v598 = vadd.f32 %v438, %v541
  %v599 = vadd.f32 %v502, %v545
  %v600 = vpack.c.bf16 %v552, %v552
  %v601 = vpack.c.bf16 %v553, %v553
  %v602 = vpack.c.bf16 %v554, %v554
  %v603 = vpack.c.bf16 %v555, %v555
  %v604 = vpack.c.bf16 %v556, %v556
  %v605 = vpack.c.bf16 %v557, %v557
  %v606 = vpack.c.bf16 %v558, %v558
  %v607 = vpack.c.bf16 %v559, %v559
  %v608 = vpack.c.bf16 %v560, %v560
  %v609 = vpack.c.bf16 %v561, %v561
  %v610 = vpack.c.bf16 %v562, %v562
  %v611 = vpack.c.bf16 %v563, %v563
  %v612 = vpack.c.bf16 %v564, %v564
  %v613 = vpack.c.bf16 %v565, %v565
  %v614 = vpack.c.bf16 %v566, %v566
  %v615 = vpack.c.bf16 %v567, %v567
  %v616 = vpack.c.bf16 %v568, %v568
  %v617 = vpack.c.bf16 %v569, %v569
  %v618 = vpack.c.bf16 %v570, %v570
  %v619 = vpack.c.bf16 %v571, %v571
  %v620 = vpack.c.bf16 %v572, %v572
  %v621 = vpack.c.bf16 %v573, %v573
  %v622 = vpack.c.bf16 %v574, %v574
  %v623 = vpack.c.bf16 %v575, %v575
  %v624 = vpack.c.bf16 %v576, %v576
  %v625 = vpack.c.bf16 %v577, %v577
  %v626 = vpack.c.bf16 %v578, %v578
  %v627 = vpack.c.bf16 %v579, %v579
  %v628 = vpack.c.bf16 %v580, %v580
  %v629 = vpack.c.bf16 %v581, %v581
  %v630 = vpack.c.bf16 %v582, %v582
  %v631 = vpack.c.bf16 %v583, %v583
  %v632 = vpack.c.bf16 %v584, %v584
  %v633 = vpack.c.bf16 %v585, %v585
  %v634 = vpack.c.bf16 %v586, %v586
  %v635 = vpack.c.bf16 %v587, %v587
  %v636 = vpack.c.bf16 %v588, %v588
  %v637 = vpack.c.bf16 %v589, %v589
  %v638 = vpack.c.bf16 %v590, %v590
  %v639 = vpack.c.bf16 %v591, %v591
  %v640 = vpack.c.bf16 %v592, %v592
  %v641 = vpack.c.bf16 %v593, %v593
  %v642 = vpack.c.bf16 %v594, %v594
  %v643 = vpack.c.bf16 %v595, %v595
  %v644 = vpack.c.bf16 %v596, %v596
  %v645 = vpack.c.bf16 %v597, %v597
  %v646 = vpack.c.bf16 %v598, %v598
  %v647 = vpack.c.bf16 %v599, %v599
  %v696 = vunpack.c.l.b16 %v600
  %v697 = vunpack.c.l.b16 %v601
  %v698 = vunpack.c.l.b16 %v602
  %v699 = vunpack.c.l.b16 %v603
  %v700 = vunpack.c.l.b16 %v604
  %v701 = vunpack.c.l.b16 %v605
  %v702 = vunpack.c.l.b16 %v606
  %v703 = vunpack.c.l.b16 %v607
  %v704 = vunpack.c.l.b16 %v608
  %v705 = vunpack.c.l.b16 %v609
  %v706 = vunpack.c.l.b16 %v610
  %v707 = vunpack.c.l.b16 %v611
  %v708 = vunpack.c.l.b16 %v612
  %v709 = vunpack.c.l.b16 %v613
  %v710 = vunpack.c.l.b16 %v614
  %v711 = vunpack.c.l.b16 %v615
  %v712 = vunpack.c.l.b16 %v616
  %v713 = vunpack.c.l.b16 %v617
  %v714 = vunpack.c.l.b16 %v618
  %v715 = vunpack.c.l.b16 %v619
  %v716 = vunpack.c.l.b16 %v620
  %v717 = vunpack.c.l.b16 %v621
  %v718 = vunpack.c.l.b16 %v622
  %v719 = vunpack.c.l.b16 %v623
  %v720 = vunpack.c.l.b16 %v624
  %v721 = vunpack.c.l.b16 %v625
  %v722 = vunpack.c.l.b16 %v626
  %v723 = vunpack.c.l.b16 %v627
  %v724 = vunpack.c.l.b16 %v628
  %v725 = vunpack.c.l.b16 %v629
  %v726 = vunpack.c.l.b16 %v630
  %v727 = vunpack.c.l.b16 %v631
  %v728 = vunpack.c.l.b16 %v632
  %v729 = vunpack.c.l.b16 %v633
  %v730 = vunpack.c.l.b16 %v634
  %v731 = vunpack.c.l.b16 %v635
  %v732 = vunpack.c.l.b16 %v636
  %v733 = vunpack.c.l.b16 %v637
  %v734 = vunpack.c.l.b16 %v638
  %v735 = vunpack.c.l.b16 %v639
  %v736 = vunpack.c.l.b16 %v640
  %v737 = vunpack.c.l.b16 %v641
  %v738 = vunpack.c.l.b16 %v642
  %v739 = vunpack.c.l.b16 %v643
  %v740 = vunpack.c.l.b16 %v644
  %v741 = vunpack.c.l.b16 %v645
  %v742 = vunpack.c.l.b16 %v646
  %v743 = vunpack.c.l.b16 %v647
  %v744 = vpack.c.b16 %v697, %v696
  %v745 = vpack.c.b16 %v699, %v698
  %v746 = vpack.c.b16 %v701, %v700
  %v747 = vpack.c.b16 %v703, %v702
  %v748 = vpack.c.b16 %v705, %v704
  %v749 = vpack.c.b16 %v707, %v706
  %v750 = vpack.c.b16 %v709, %v708
  %v751 = vpack.c.b16 %v711, %v710
  %v752 = vpack.c.b16 %v713, %v712
  %v753 = vpack.c.b16 %v715, %v714
  %v754 = vpack.c.b16 %v717, %v716
  %v755 = vpack.c.b16 %v719, %v718
  %v756 = vpack.c.b16 %v721, %v720
  %v757 = vpack.c.b16 %v723, %v722
  %v758 = vpack.c.b16 %v725, %v724
  %v759 = vpack.c.b16 %v727, %v726
  %v760 = vpack.c.b16 %v729, %v728
  %v761 = vpack.c.b16 %v731, %v730
  %v762 = vpack.c.b16 %v733, %v732
  %v763 = vpack.c.b16 %v735, %v734
  %v764 = vpack.c.b16 %v737, %v736
  %v765 = vpack.c.b16 %v739, %v738
  %v766 = vpack.c.b16 %v741, %v740
  %v767 = vpack.c.b16 %v743, %v742
  %792 = vst [vmem:[#allocation3] sm:$0xff] %v744
  %793 = vst [vmem:[#allocation3 + $0x8] sm:$0xff] %v745
  %794 = vst [vmem:[#allocation3 + $0x10] sm:$0xff] %v746
  %795 = vst [vmem:[#allocation3 + $0x18] sm:$0xff] %v747
  %796 = vst [vmem:[#allocation3 + $0x20] sm:$0xff] %v748
  %797 = vst [vmem:[#allocation3 + $0x28] sm:$0xff] %v749
  %798 = vst [vmem:[#allocation3 + $0x30] sm:$0xff] %v750
  %799 = vst [vmem:[#allocation3 + $0x38] sm:$0xff] %v751
  %800 = vst [vmem:[#allocation3 + $0x40] sm:$0xff] %v752
  %801 = vst [vmem:[#allocation3 + $0x48] sm:$0xff] %v753
  %802 = vst [vmem:[#allocation3 + $0x50] sm:$0xff] %v754
  %803 = vst [vmem:[#allocation3 + $0x58] sm:$0xff] %v755
  %804 = vst [vmem:[#allocation3 + $0x60] sm:$0xff] %v756
  %805 = vst [vmem:[#allocation3 + $0x68] sm:$0xff] %v757
  %806 = vst [vmem:[#allocation3 + $0x70] sm:$0xff] %v758
  %807 = vst [vmem:[#allocation3 + $0x78] sm:$0xff] %v759
  %808 = vst [vmem:[#allocation3 + $0x80] sm:$0xff] %v760
  %809 = vst [vmem:[#allocation3 + $0x88] sm:$0xff] %v761
  %810 = vst [vmem:[#allocation3 + $0x90] sm:$0xff] %v762
  %811 = vst [vmem:[#allocation3 + $0x98] sm:$0xff] %v763
  %812 = vst [vmem:[#allocation3 + $0xa0] sm:$0xff] %v764
  %813 = vst [vmem:[#allocation3 + $0xa8] sm:$0xff] %v765
  %814 = vst [vmem:[#allocation3 + $0xb0] sm:$0xff] %v766
  %815 = vst [vmem:[#allocation3 + $0xb8] sm:$0xff] %v767
  %v816 = vld [vmem:[%s4] sm:$0xff]
  %v817 = vld [vmem:[%s4 + $0x8] sm:$0xff]
  %v818 = vld [vmem:[%s4 + $0x10] sm:$0xff]
  %v819 = vld [vmem:[%s4 + $0x18] sm:$0xff]
  %v820 = vld [vmem:[%s4 + $0x20] sm:$0xff]
  %v821 = vld [vmem:[%s4 + $0x28] sm:$0xff]
  %v822 = vld [vmem:[%s4 + $0x30] sm:$0xff]
  %v823 = vld [vmem:[%s4 + $0x38] sm:$0xff]
  %v824 = vld [vmem:[%s4 + $0x40] sm:$0xff]
  %v825 = vld [vmem:[%s4 + $0x48] sm:$0xff]
  %v826 = vld [vmem:[%s4 + $0x50] sm:$0xff]
  %v827 = vld [vmem:[%s4 + $0x58] sm:$0xff]
  %v828 = vld [vmem:[%s4 + $0x60] sm:$0xff]
  %v829 = vld [vmem:[%s4 + $0x68] sm:$0xff]
  %v830 = vld [vmem:[%s4 + $0x70] sm:$0xff]
  %v831 = vld [vmem:[%s4 + $0x78] sm:$0xff]
  %v832 = vld [vmem:[%s4 + $0x80] sm:$0xff]
  %v833 = vld [vmem:[%s4 + $0x88] sm:$0xff]
  %v834 = vld [vmem:[%s4 + $0x90] sm:$0xff]
  %v835 = vld [vmem:[%s4 + $0x98] sm:$0xff]
  %v836 = vld [vmem:[%s4 + $0xa0] sm:$0xff]
  %v837 = vld [vmem:[%s4 + $0xa8] sm:$0xff]
  %v838 = vld [vmem:[%s4 + $0xb0] sm:$0xff]
  %v839 = vld [vmem:[%s4 + $0xb8] sm:$0xff]
  %v840 = vld [vmem:[%s4 + $0xc0] sm:$0xff]
  %v841 = vld [vmem:[%s4 + $0xc8] sm:$0xff]
  %v842 = vld [vmem:[%s4 + $0xd0] sm:$0xff]
  %v843 = vld [vmem:[%s4 + $0xd8] sm:$0xff]
  %v844 = vld [vmem:[%s4 + $0xe0] sm:$0xff]
  %v845 = vld [vmem:[%s4 + $0xe8] sm:$0xff]
  %v846 = vld [vmem:[%s4 + $0xf0] sm:$0xff]
  %v847 = vld [vmem:[%s4 + $0xf8] sm:$0xff]
  %v848 = vld [vmem:[%s4 + $0x100] sm:$0xff]
  %v849 = vld [vmem:[%s4 + $0x108] sm:$0xff]
  %v850 = vld [vmem:[%s4 + $0x110] sm:$0xff]
  %v851 = vld [vmem:[%s4 + $0x118] sm:$0xff]
  %v852 = vld [vmem:[%s4 + $0x120] sm:$0xff]
  %v853 = vld [vmem:[%s4 + $0x128] sm:$0xff]
  %v854 = vld [vmem:[%s4 + $0x130] sm:$0xff]
  %v855 = vld [vmem:[%s4 + $0x138] sm:$0xff]
  %v856 = vld [vmem:[%s4 + $0x140] sm:$0xff]
  %v857 = vld [vmem:[%s4 + $0x148] sm:$0xff]
  %v858 = vld [vmem:[%s4 + $0x150] sm:$0xff]
  %v859 = vld [vmem:[%s4 + $0x158] sm:$0xff]
  %v860 = vld [vmem:[%s4 + $0x160] sm:$0xff]
  %v861 = vld [vmem:[%s4 + $0x168] sm:$0xff]
  %v862 = vld [vmem:[%s4 + $0x170] sm:$0xff]
  %v863 = vld [vmem:[%s4 + $0x178] sm:$0xff]
  %v864 = vld [vmem:[%s4 + $0x180] sm:$0xff]
  %v865 = vld [vmem:[%s4 + $0x188] sm:$0xff]
  %v866 = vld [vmem:[%s4 + $0x190] sm:$0xff]
  %v867 = vld [vmem:[%s4 + $0x198] sm:$0xff]
  %v868 = vld [vmem:[%s4 + $0x1a0] sm:$0xff]
  %v869 = vld [vmem:[%s4 + $0x1a8] sm:$0xff]
  %v870 = vld [vmem:[%s4 + $0x1b0] sm:$0xff]
  %v871 = vld [vmem:[%s4 + $0x1b8] sm:$0xff]
  %v872 = vld [vmem:[%s4 + $0x1c0] sm:$0xff]
  %v873 = vld [vmem:[%s4 + $0x1c8] sm:$0xff]
  %v874 = vld [vmem:[%s4 + $0x1d0] sm:$0xff]
  %v875 = vld [vmem:[%s4 + $0x1d8] sm:$0xff]
  %v876 = vld [vmem:[%s4 + $0x1e0] sm:$0xff]
  %v877 = vld [vmem:[%s4 + $0x1e8] sm:$0xff]
  %v878 = vld [vmem:[%s4 + $0x1f0] sm:$0xff]
  %v879 = vld [vmem:[%s4 + $0x1f8] sm:$0xff]
  %v880 = vld [vmem:[%s4 + $0x200] sm:$0xff]
  %v881 = vld [vmem:[%s4 + $0x208] sm:$0xff]
  %v882 = vld [vmem:[%s4 + $0x210] sm:$0xff]
  %v883 = vld [vmem:[%s4 + $0x218] sm:$0xff]
  %v884 = vld [vmem:[%s4 + $0x220] sm:$0xff]
  %v885 = vld [vmem:[%s4 + $0x228] sm:$0xff]
  %v886 = vld [vmem:[%s4 + $0x230] sm:$0xff]
  %v887 = vld [vmem:[%s4 + $0x238] sm:$0xff]
  %v888 = vld [vmem:[%s4 + $0x240] sm:$0xff]
  %v889 = vld [vmem:[%s4 + $0x248] sm:$0xff]
  %v890 = vld [vmem:[%s4 + $0x250] sm:$0xff]
  %v891 = vld [vmem:[%s4 + $0x258] sm:$0xff]
  %v892 = vld [vmem:[%s4 + $0x260] sm:$0xff]
  %v893 = vld [vmem:[%s4 + $0x268] sm:$0xff]
  %v894 = vld [vmem:[%s4 + $0x270] sm:$0xff]
  %v895 = vld [vmem:[%s4 + $0x278] sm:$0xff]
  %v896 = vld [vmem:[%s4 + $0x280] sm:$0xff]
  %v897 = vld [vmem:[%s4 + $0x288] sm:$0xff]
  %v898 = vld [vmem:[%s4 + $0x290] sm:$0xff]
  %v899 = vld [vmem:[%s4 + $0x298] sm:$0xff]
  %v900 = vld [vmem:[%s4 + $0x2a0] sm:$0xff]
  %v901 = vld [vmem:[%s4 + $0x2a8] sm:$0xff]
  %v902 = vld [vmem:[%s4 + $0x2b0] sm:$0xff]
  %v903 = vld [vmem:[%s4 + $0x2b8] sm:$0xff]
  %v904 = vld [vmem:[%s4 + $0x2c0] sm:$0xff]
  %v905 = vld [vmem:[%s4 + $0x2c8] sm:$0xff]
  %v906 = vld [vmem:[%s4 + $0x2d0] sm:$0xff]
  %v907 = vld [vmem:[%s4 + $0x2d8] sm:$0xff]
  %v908 = vld [vmem:[%s4 + $0x2e0] sm:$0xff]
  %v909 = vld [vmem:[%s4 + $0x2e8] sm:$0xff]
  %v910 = vld [vmem:[%s4 + $0x2f0] sm:$0xff]
  %v911 = vld [vmem:[%s4 + $0x2f8] sm:$0xff]
  %v912 = vld [vmem:[%s5] sm:$0x3]
  %v914 = vlaneseq
  %v915 = vshrl.u32 %v914, 7
  %v916 = vsub.s32 0, %v915
  %v917 = vrot.slane %v912, %v916
  %v918 = vlaneseq
  %v919 = vshrl.u32 %v918, 7
  %v920 = vsub.s32 1, %v919
  %v921 = vrot.slane %v912, %v920
  %v924 = vld [vmem:[#allocation3] sm:$0xff]
  %v925 = vld [vmem:[#allocation3 + $0x8] sm:$0xff]
  %v926 = vld [vmem:[#allocation3 + $0x10] sm:$0xff]
  %v1023 = vunpack.c.l.b16 %v816
  %v1024 = vunpack.c.h.b16 %v816
  %v1025 = vunpack.c.l.b16 %v817
  %v1026 = vunpack.c.h.b16 %v817
  %v1027 = vunpack.c.l.b16 %v818
  %v1028 = vunpack.c.h.b16 %v818
  %v1029 = vunpack.c.l.b16 %v819
  %v1030 = vunpack.c.h.b16 %v819
  %v1031 = vunpack.c.l.b16 %v820
  %v1032 = vunpack.c.h.b16 %v820
  %v1033 = vunpack.c.l.b16 %v821
  %v1034 = vunpack.c.h.b16 %v821
  %v1035 = vunpack.c.l.b16 %v822
  %v1036 = vunpack.c.h.b16 %v822
  %v1037 = vunpack.c.l.b16 %v823
  %v1038 = vunpack.c.h.b16 %v823
  %v1039 = vunpack.c.l.b16 %v824
  %v1040 = vunpack.c.h.b16 %v824
  %v1041 = vunpack.c.l.b16 %v825
  %v1042 = vunpack.c.h.b16 %v825
  %v1043 = vunpack.c.l.b16 %v826
  %v1044 = vunpack.c.h.b16 %v826
  %v1045 = vunpack.c.l.b16 %v827
  %v1046 = vunpack.c.h.b16 %v827
  %v1047 = vunpack.c.l.b16 %v828
  %v1048 = vunpack.c.h.b16 %v828
  %v1049 = vunpack.c.l.b16 %v829
  %v1050 = vunpack.c.h.b16 %v829
  %v1051 = vunpack.c.l.b16 %v830
  %v1052 = vunpack.c.h.b16 %v830
  %v1053 = vunpack.c.l.b16 %v831
  %v1054 = vunpack.c.h.b16 %v831
  %v1055 = vunpack.c.l.b16 %v832
  %v1056 = vunpack.c.h.b16 %v832
  %v1057 = vunpack.c.l.b16 %v833
  %v1058 = vunpack.c.h.b16 %v833
  %v1059 = vunpack.c.l.b16 %v834
  %v1060 = vunpack.c.h.b16 %v834
  %v1061 = vunpack.c.l.b16 %v835
  %v1062 = vunpack.c.h.b16 %v835
  %v1063 = vunpack.c.l.b16 %v836
  %v1064 = vunpack.c.h.b16 %v836
  %v1065 = vunpack.c.l.b16 %v837
  %v1066 = vunpack.c.h.b16 %v837
  %v1067 = vunpack.c.l.b16 %v838
  %v1068 = vunpack.c.h.b16 %v838
  %v1069 = vunpack.c.l.b16 %v839
  %v1070 = vunpack.c.h.b16 %v839
  %v1071 = vunpack.c.l.b16 %v840
  %v1072 = vunpack.c.h.b16 %v840
  %v1073 = vunpack.c.l.b16 %v841
  %v1074 = vunpack.c.h.b16 %v841
  %v1075 = vunpack.c.l.b16 %v842
  %v1076 = vunpack.c.h.b16 %v842
  %v1077 = vunpack.c.l.b16 %v843
  %v1078 = vunpack.c.h.b16 %v843
  %v1079 = vunpack.c.l.b16 %v844
  %v1080 = vunpack.c.h.b16 %v844
  %v1081 = vunpack.c.l.b16 %v845
  %v1082 = vunpack.c.h.b16 %v845
  %v1083 = vunpack.c.l.b16 %v846
  %v1084 = vunpack.c.h.b16 %v846
  %v1085 = vunpack.c.l.b16 %v847
  %v1086 = vunpack.c.h.b16 %v847
  %v1087 = vunpack.c.l.b16 %v848
  %v1088 = vunpack.c.h.b16 %v848
  %v1089 = vunpack.c.l.b16 %v849
  %v1090 = vunpack.c.h.b16 %v849
  %v1091 = vunpack.c.l.b16 %v850
  %v1092 = vunpack.c.h.b16 %v850
  %v1093 = vunpack.c.l.b16 %v851
  %v1094 = vunpack.c.h.b16 %v851
  %v1095 = vunpack.c.l.b16 %v852
  %v1096 = vunpack.c.h.b16 %v852
  %v1097 = vunpack.c.l.b16 %v853
  %v1098 = vunpack.c.h.b16 %v853
  %v1099 = vunpack.c.l.b16 %v854
  %v1100 = vunpack.c.h.b16 %v854
  %v1101 = vunpack.c.l.b16 %v855
  %v1102 = vunpack.c.h.b16 %v855
  %v1103 = vunpack.c.l.b16 %v856
  %v1104 = vunpack.c.h.b16 %v856
  %v1105 = vunpack.c.l.b16 %v857
  %v1106 = vunpack.c.h.b16 %v857
  %v1107 = vunpack.c.l.b16 %v858
  %v1108 = vunpack.c.h.b16 %v858
  %v1109 = vunpack.c.l.b16 %v859
  %v1110 = vunpack.c.h.b16 %v859
  %v1111 = vunpack.c.l.b16 %v860
  %v1112 = vunpack.c.h.b16 %v860
  %v1113 = vunpack.c.l.b16 %v861
  %v1114 = vunpack.c.h.b16 %v861
  %v1115 = vunpack.c.l.b16 %v862
  %v1116 = vunpack.c.h.b16 %v862
  %v1117 = vunpack.c.l.b16 %v863
  %v1118 = vunpack.c.h.b16 %v863
  %v1119 = vunpack.c.l.b16 %v864
  %v1120 = vunpack.c.h.b16 %v864
  %v1121 = vunpack.c.l.b16 %v865
  %v1122 = vunpack.c.h.b16 %v865
  %v1123 = vunpack.c.l.b16 %v866
  %v1124 = vunpack.c.h.b16 %v866
  %v1125 = vunpack.c.l.b16 %v867
  %v1126 = vunpack.c.h.b16 %v867
  %v1127 = vunpack.c.l.b16 %v868
  %v1128 = vunpack.c.h.b16 %v868
  %v1129 = vunpack.c.l.b16 %v869
  %v1130 = vunpack.c.h.b16 %v869
  %v1131 = vunpack.c.l.b16 %v870
  %v1132 = vunpack.c.h.b16 %v870
  %v1133 = vunpack.c.l.b16 %v871
  %v1134 = vunpack.c.h.b16 %v871
  %v1135 = vunpack.c.l.b16 %v872
  %v1136 = vunpack.c.h.b16 %v872
  %v1137 = vunpack.c.l.b16 %v873
  %v1138 = vunpack.c.h.b16 %v873
  %v1139 = vunpack.c.l.b16 %v874
  %v1140 = vunpack.c.h.b16 %v874
  %v1141 = vunpack.c.l.b16 %v875
  %v1142 = vunpack.c.h.b16 %v875
  %v1143 = vunpack.c.l.b16 %v876
  %v1144 = vunpack.c.h.b16 %v876
  %v1145 = vunpack.c.l.b16 %v877
  %v1146 = vunpack.c.h.b16 %v877
  %v1147 = vunpack.c.l.b16 %v878
  %v1148 = vunpack.c.h.b16 %v878
  %v1149 = vunpack.c.l.b16 %v879
  %v1150 = vunpack.c.h.b16 %v879
  %v1151 = vunpack.c.l.b16 %v880
  %v1152 = vunpack.c.h.b16 %v880
  %v1153 = vunpack.c.l.b16 %v881
  %v1154 = vunpack.c.h.b16 %v881
  %v1155 = vunpack.c.l.b16 %v882
  %v1156 = vunpack.c.h.b16 %v882
  %v1157 = vunpack.c.l.b16 %v883
  %v1158 = vunpack.c.h.b16 %v883
  %v1159 = vunpack.c.l.b16 %v884
  %v1160 = vunpack.c.h.b16 %v884
  %v1161 = vunpack.c.l.b16 %v885
  %v1162 = vunpack.c.h.b16 %v885
  %v1163 = vunpack.c.l.b16 %v886
  %v1164 = vunpack.c.h.b16 %v886
  %v1165 = vunpack.c.l.b16 %v887
  %v1166 = vunpack.c.h.b16 %v887
  %v1167 = vunpack.c.l.b16 %v888
  %v1168 = vunpack.c.h.b16 %v888
  %v1169 = vunpack.c.l.b16 %v889
  %v1170 = vunpack.c.h.b16 %v889
  %v1171 = vunpack.c.l.b16 %v890
  %v1172 = vunpack.c.h.b16 %v890
  %v1173 = vunpack.c.l.b16 %v891
  %v1174 = vunpack.c.h.b16 %v891
  %v1175 = vunpack.c.l.b16 %v892
  %v1176 = vunpack.c.h.b16 %v892
  %v1177 = vunpack.c.l.b16 %v893
  %v1178 = vunpack.c.h.b16 %v893
  %v1179 = vunpack.c.l.b16 %v894
  %v1180 = vunpack.c.h.b16 %v894
  %v1181 = vunpack.c.l.b16 %v895
  %v1182 = vunpack.c.h.b16 %v895
  %v1183 = vunpack.c.l.b16 %v896
  %v1184 = vunpack.c.h.b16 %v896
  %v1185 = vunpack.c.l.b16 %v897
  %v1186 = vunpack.c.h.b16 %v897
  %v1187 = vunpack.c.l.b16 %v898
  %v1188 = vunpack.c.h.b16 %v898
  %v1189 = vunpack.c.l.b16 %v899
  %v1190 = vunpack.c.h.b16 %v899
  %v1191 = vunpack.c.l.b16 %v900
  %v1192 = vunpack.c.h.b16 %v900
  %v1193 = vunpack.c.l.b16 %v901
  %v1194 = vunpack.c.h.b16 %v901
  %v1195 = vunpack.c.l.b16 %v902
  %v1196 = vunpack.c.h.b16 %v902
  %v1197 = vunpack.c.l.b16 %v903
  %v1198 = vunpack.c.h.b16 %v903
  %v1199 = vunpack.c.l.b16 %v904
  %v1200 = vunpack.c.h.b16 %v904
  %v1201 = vunpack.c.l.b16 %v905
  %v1202 = vunpack.c.h.b16 %v905
  %v1203 = vunpack.c.l.b16 %v906
  %v1204 = vunpack.c.h.b16 %v906
  %v1205 = vunpack.c.l.b16 %v907
  %v1206 = vunpack.c.h.b16 %v907
  %v1207 = vunpack.c.l.b16 %v908
  %v1208 = vunpack.c.h.b16 %v908
  %v1209 = vunpack.c.l.b16 %v909
  %v1210 = vunpack.c.h.b16 %v909
  %v1211 = vunpack.c.l.b16 %v910
  %v1212 = vunpack.c.h.b16 %v910
  %v1213 = vunpack.c.l.b16 %v911
  %v1214 = vunpack.c.h.b16 %v911
  %v1215 = vpack.c.b16 %v1029, %v1023
  %v1216 = vpack.c.b16 %v1030, %v1024
  %v1217 = vpack.c.b16 %v1031, %v1025
  %v1218 = vpack.c.b16 %v1032, %v1026
  %v1219 = vpack.c.b16 %v1033, %v1027
  %v1220 = vpack.c.b16 %v1034, %v1028
  %v1221 = vpack.c.b16 %v1041, %v1035
  %v1222 = vpack.c.b16 %v1042, %v1036
  %v1223 = vpack.c.b16 %v1043, %v1037
  %v1224 = vpack.c.b16 %v1044, %v1038
  %v1225 = vpack.c.b16 %v1045, %v1039
  %v1226 = vpack.c.b16 %v1046, %v1040
  %v1227 = vpack.c.b16 %v1053, %v1047
  %v1228 = vpack.c.b16 %v1054, %v1048
  %v1229 = vpack.c.b16 %v1055, %v1049
  %v1230 = vpack.c.b16 %v1056, %v1050
  %v1231 = vpack.c.b16 %v1057, %v1051
  %v1232 = vpack.c.b16 %v1058, %v1052
  %v1233 = vpack.c.b16 %v1065, %v1059
  %v1234 = vpack.c.b16 %v1066, %v1060
  %v1235 = vpack.c.b16 %v1067, %v1061
  %v1236 = vpack.c.b16 %v1068, %v1062
  %v1237 = vpack.c.b16 %v1069, %v1063
  %v1238 = vpack.c.b16 %v1070, %v1064
  %v1239 = vpack.c.b16 %v1077, %v1071
  %v1240 = vpack.c.b16 %v1078, %v1072
  %v1241 = vpack.c.b16 %v1079, %v1073
  %v1242 = vpack.c.b16 %v1080, %v1074
  %v1243 = vpack.c.b16 %v1081, %v1075
  %v1244 = vpack.c.b16 %v1082, %v1076
  %v1245 = vpack.c.b16 %v1089, %v1083
  %v1246 = vpack.c.b16 %v1090, %v1084
  %v1247 = vpack.c.b16 %v1091, %v1085
  %v1248 = vpack.c.b16 %v1092, %v1086
  %v1249 = vpack.c.b16 %v1093, %v1087
  %v1250 = vpack.c.b16 %v1094, %v1088
  %v1251 = vpack.c.b16 %v1101, %v1095
  %v1252 = vpack.c.b16 %v1102, %v1096
  %v1253 = vpack.c.b16 %v1103, %v1097
  %v1254 = vpack.c.b16 %v1104, %v1098
  %v1255 = vpack.c.b16 %v1105, %v1099
  %v1256 = vpack.c.b16 %v1106, %v1100
  %v1257 = vpack.c.b16 %v1113, %v1107
  %v1258 = vpack.c.b16 %v1114, %v1108
  %v1259 = vpack.c.b16 %v1115, %v1109
  %v1260 = vpack.c.b16 %v1116, %v1110
  %v1261 = vpack.c.b16 %v1117, %v1111
  %v1262 = vpack.c.b16 %v1118, %v1112
  %v1263 = vpack.c.b16 %v1125, %v1119
  %v1264 = vpack.c.b16 %v1126, %v1120
  %v1265 = vpack.c.b16 %v1127, %v1121
  %v1266 = vpack.c.b16 %v1128, %v1122
  %v1267 = vpack.c.b16 %v1129, %v1123
  %v1268 = vpack.c.b16 %v1130, %v1124
  %v1269 = vpack.c.b16 %v1137, %v1131
  %v1270 = vpack.c.b16 %v1138, %v1132
  %v1271 = vpack.c.b16 %v1139, %v1133
  %v1272 = vpack.c.b16 %v1140, %v1134
  %v1273 = vpack.c.b16 %v1141, %v1135
  %v1274 = vpack.c.b16 %v1142, %v1136
  %v1275 = vpack.c.b16 %v1149, %v1143
  %v1276 = vpack.c.b16 %v1150, %v1144
  %v1277 = vpack.c.b16 %v1151, %v1145
  %v1278 = vpack.c.b16 %v1152, %v1146
  %v1279 = vpack.c.b16 %v1153, %v1147
  %v1280 = vpack.c.b16 %v1154, %v1148
  %v1281 = vpack.c.b16 %v1161, %v1155
  %v1282 = vpack.c.b16 %v1162, %v1156
  %v1283 = vpack.c.b16 %v1163, %v1157
  %v1284 = vpack.c.b16 %v1164, %v1158
  %v1285 = vpack.c.b16 %v1165, %v1159
  %v1286 = vpack.c.b16 %v1166, %v1160
  %v1287 = vpack.c.b16 %v1173, %v1167
  %v1288 = vpack.c.b16 %v1174, %v1168
  %v1289 = vpack.c.b16 %v1175, %v1169
  %v1290 = vpack.c.b16 %v1176, %v1170
  %v1291 = vpack.c.b16 %v1177, %v1171
  %v1292 = vpack.c.b16 %v1178, %v1172
  %v1293 = vpack.c.b16 %v1185, %v1179
  %v1294 = vpack.c.b16 %v1186, %v1180
  %v1295 = vpack.c.b16 %v1187, %v1181
  %v1296 = vpack.c.b16 %v1188, %v1182
  %v1297 = vpack.c.b16 %v1189, %v1183
  %v1298 = vpack.c.b16 %v1190, %v1184
  %v1299 = vpack.c.b16 %v1197, %v1191
  %v1300 = vpack.c.b16 %v1198, %v1192
  %v1301 = vpack.c.b16 %v1199, %v1193
  %v1302 = vpack.c.b16 %v1200, %v1194
  %v1303 = vpack.c.b16 %v1201, %v1195
  %v1304 = vpack.c.b16 %v1202, %v1196
  %v1305 = vpack.c.b16 %v1209, %v1203
  %v1306 = vpack.c.b16 %v1210, %v1204
  %v1307 = vpack.c.b16 %v1211, %v1205
  %v1308 = vpack.c.b16 %v1212, %v1206
  %v1309 = vpack.c.b16 %v1213, %v1207
  %v1310 = vpack.c.b16 %v1214, %v1208
  %1407 = vmatprep.subr.bf16.mxu0 %v1216
  %1408 = vmatpush1.bf16.msra.mxu0 %v1215
  %1409 = vmatprep.subr.bf16.mxu0 %v1222
  %1410 = vmatpush1.bf16.msra.mxu0 %v1221
  %1411 = vmatprep.subr.bf16.mxu0 %v1228
  %1412 = vmatpush1.bf16.msra.mxu0 %v1227
  %1413 = vmatprep.subr.bf16.mxu0 %v1234
  %1414 = vmatpush1.bf16.msra.mxu0 %v1233
  %1415 = vmatprep.subr.bf16.mxu0 %v1240
  %1416 = vmatpush1.bf16.msra.mxu0 %v1239
  %1417 = vmatprep.subr.bf16.mxu0 %v1246
  %1418 = vmatpush1.bf16.msra.mxu0 %v1245
  %1419 = vmatprep.subr.bf16.mxu0 %v1252
  %1420 = vmatpush1.bf16.msra.mxu0 %v1251
  %1421 = vmatprep.subr.bf16.mxu0 %v1258
  %1422 = vmatpush1.bf16.msra.mxu0 %v1257
  %1423 = vmatprep.subr.bf16.mxu0 %v1264
  %1424 = vmatpush1.bf16.msra.mxu0 %v1263
  %1425 = vmatprep.subr.bf16.mxu0 %v1270
  %1426 = vmatpush1.bf16.msra.mxu0 %v1269
  %1427 = vmatprep.subr.bf16.mxu0 %v1276
  %1428 = vmatpush1.bf16.msra.mxu0 %v1275
  %1429 = vmatprep.subr.bf16.mxu0 %v1282
  %1430 = vmatpush1.bf16.msra.mxu0 %v1281
  %1431 = vmatprep.subr.bf16.mxu0 %v1288
  %1432 = vmatpush1.bf16.msra.mxu0 %v1287
  %1433 = vmatprep.subr.bf16.mxu0 %v1294
  %1434 = vmatpush1.bf16.msra.mxu0 %v1293
  %1435 = vmatprep.subr.bf16.mxu0 %v1300
  %1436 = vmatpush1.bf16.msra.mxu0 %v1299
  %1437 = vmatprep.subr.bf16.mxu0 %v1306
  %1438 = vmatpush1.bf16.msra.mxu0 %v1305
  %1439 = vmatprep.mubr.bf16.mxu0 0
  %1440 = vmatmul.mubr.bf16.gmra.mrb[0].mxu0 0
  %v1441 = vpop.f32.mrb[0].mxu0
  %v1442 = vadd.f32 0.0, %v1441
  %v1443 = vpop.f32.mrb[0].mxu0
  %v1444 = vadd.f32 0.0, %v1443
  %v1445 = vpop.f32.mrb[0].mxu0
  %v1446 = vpop.f32.mrb[0].mxu0
  %1447 = vdwg.mxu0
  %1448 = vmatprep.subr.bf16.mxu0 %v1218
  %1449 = vmatpush1.bf16.msra.mxu0 %v1217
  %1450 = vmatprep.subr.bf16.mxu0 %v1224
  %1451 = vmatpush1.bf16.msra.mxu0 %v1223
  %1452 = vmatprep.subr.bf16.mxu0 %v1230
  %1453 = vmatpush1.bf16.msra.mxu0 %v1229
  %1454 = vmatprep.subr.bf16.mxu0 %v1236
  %1455 = vmatpush1.bf16.msra.mxu0 %v1235
  %1456 = vmatprep.subr.bf16.mxu0 %v1242
  %1457 = vmatpush1.bf16.msra.mxu0 %v1241
  %1458 = vmatprep.subr.bf16.mxu0 %v1248
  %1459 = vmatpush1.bf16.msra.mxu0 %v1247
  %1460 = vmatprep.subr.bf16.mxu0 %v1254
  %1461 = vmatpush1.bf16.msra.mxu0 %v1253
  %1462 = vmatprep.subr.bf16.mxu0 %v1260
  %1463 = vmatpush1.bf16.msra.mxu0 %v1259
  %1464 = vmatprep.subr.bf16.mxu0 %v1266
  %1465 = vmatpush1.bf16.msra.mxu0 %v1265
  %1466 = vmatprep.subr.bf16.mxu0 %v1272
  %1467 = vmatpush1.bf16.msra.mxu0 %v1271
  %1468 = vmatprep.subr.bf16.mxu0 %v1278
  %1469 = vmatpush1.bf16.msra.mxu0 %v1277
  %1470 = vmatprep.subr.bf16.mxu0 %v1284
  %1471 = vmatpush1.bf16.msra.mxu0 %v1283
  %1472 = vmatprep.subr.bf16.mxu0 %v1290
  %1473 = vmatpush1.bf16.msra.mxu0 %v1289
  %1474 = vmatprep.subr.bf16.mxu0 %v1296
  %1475 = vmatpush1.bf16.msra.mxu0 %v1295
  %1476 = vmatprep.subr.bf16.mxu0 %v1302
  %1477 = vmatpush1.bf16.msra.mxu0 %v1301
  %1478 = vmatprep.subr.bf16.mxu0 %v1308
  %1479 = vmatpush1.bf16.msra.mxu0 %v1307
  %1480 = vmatprep.mubr.bf16.mxu0 0
  %1481 = vmatmul.mubr.bf16.gmra.mrb[0].mxu0 0
  %v1482 = vpop.f32.mrb[0].mxu0
  %v1483 = vadd.f32 0.0, %v1482
  %v1484 = vpop.f32.mrb[0].mxu0
  %v1485 = vadd.f32 0.0, %v1484
  %v1486 = vpop.f32.mrb[0].mxu0
  %v1487 = vpop.f32.mrb[0].mxu0
  %1488 = vdwg.mxu0
  %1489 = vmatprep.subr.bf16.mxu0 %v1220
  %1490 = vmatpush1.bf16.msra.mxu0 %v1219
  %1491 = vmatprep.subr.bf16.mxu0 %v1226
  %1492 = vmatpush1.bf16.msra.mxu0 %v1225
  %1493 = vmatprep.subr.bf16.mxu0 %v1232
  %1494 = vmatpush1.bf16.msra.mxu0 %v1231
  %1495 = vmatprep.subr.bf16.mxu0 %v1238
  %1496 = vmatpush1.bf16.msra.mxu0 %v1237
  %1497 = vmatprep.subr.bf16.mxu0 %v1244
  %1498 = vmatpush1.bf16.msra.mxu0 %v1243
  %1499 = vmatprep.subr.bf16.mxu0 %v1250
  %1500 = vmatpush1.bf16.msra.mxu0 %v1249
  %1501 = vmatprep.subr.bf16.mxu0 %v1256
  %1502 = vmatpush1.bf16.msra.mxu0 %v1255
  %1503 = vmatprep.subr.bf16.mxu0 %v1262
  %1504 = vmatpush1.bf16.msra.mxu0 %v1261
  %1505 = vmatprep.subr.bf16.mxu0 %v1268
  %1506 = vmatpush1.bf16.msra.mxu0 %v1267
  %1507 = vmatprep.subr.bf16.mxu0 %v1274
  %1508 = vmatpush1.bf16.msra.mxu0 %v1273
  %1509 = vmatprep.subr.bf16.mxu0 %v1280
  %1510 = vmatpush1.bf16.msra.mxu0 %v1279
  %1511 = vmatprep.subr.bf16.mxu0 %v1286
  %1512 = vmatpush1.bf16.msra.mxu0 %v1285
  %1513 = vmatprep.subr.bf16.mxu0 %v1292
  %1514 = vmatpush1.bf16.msra.mxu0 %v1291
  %1515 = vmatprep.subr.bf16.mxu0 %v1298
  %1516 = vmatpush1.bf16.msra.mxu0 %v1297
  %1517 = vmatprep.subr.bf16.mxu0 %v1304
  %1518 = vmatpush1.bf16.msra.mxu0 %v1303
  %1519 = vmatprep.subr.bf16.mxu0 %v1310
  %1520 = vmatpush1.bf16.msra.mxu0 %v1309
  %1521 = vmatprep.mubr.bf16.mxu0 0
  %1522 = vmatmul.mubr.bf16.gmra.mrb[0].mxu0 0
  %v1523 = vpop.f32.mrb[0].mxu0
  %v1524 = vadd.f32 0.0, %v1523
  %v1525 = vpop.f32.mrb[0].mxu0
  %v1526 = vadd.f32 0.0, %v1525
  %v1527 = vpop.f32.mrb[0].mxu0
  %v1528 = vpop.f32.mrb[0].mxu0
  %1529 = vdwg.mxu0
  %v1530 = vunpack.c.l.bf16 %v924
  %v1531 = vunpack.c.h.bf16 %v924
  %v1532 = vadd.f32 %v1530, %v1442
  %v1533 = vadd.f32 %v1531, %v1444
  %v1534 = vxor.u32 %v1532, 2147483648
  %v1535 = vxor.u32 %v1533, 2147483648
  %v1536 = vmul.f32 %v1534, 1.442695
  %v1537 = vpow.pop %v1536
  %v1538 = vmul.f32 %v1535, 1.442695
  %v1539 = vpow.pop %v1538
  %v1540 = vadd.f32 %v1537, 1.0
  %v1541 = vadd.f32 %v1539, 1.0
  %v1542 = vrcp.pop %v1540
  %v1543 = vmul.f32 1.0, %v1542
  %v1544 = vrcp.pop %v1541
  %v1545 = vmul.f32 1.0, %v1544
  %v1546 = vunpack.c.l.bf16 %v925
  %v1547 = vunpack.c.h.bf16 %v925
  %v1548 = vadd.f32 %v1546, %v1483
  %v1549 = vadd.f32 %v1547, %v1485
  %v1550 = vxor.u32 %v1548, 2147483648
  %v1551 = vxor.u32 %v1549, 2147483648
  %v1552 = vmul.f32 %v1550, 1.442695
  %v1553 = vpow.pop %v1552
  %v1554 = vmul.f32 %v1551, 1.442695
  %v1555 = vpow.pop %v1554
  %v1556 = vadd.f32 %v1553, 1.0
  %v1557 = vadd.f32 %v1555, 1.0
  %v1558 = vrcp.pop %v1556
  %v1559 = vmul.f32 1.0, %v1558
  %v1560 = vrcp.pop %v1557
  %v1561 = vmul.f32 1.0, %v1560
  %v1562 = vadd.f32 %v1524, %v917
  %v1563 = vadd.f32 %v1526, %v921
  %v1564 = vmul.f32 %v1543, %v1562
  %v1565 = vmul.f32 %v1545, %v1563
  %v1566 = vunpack.c.l.bf16 %v926
  %v1567 = vunpack.c.h.bf16 %v926
  %v1568 = vadd.f32 %v1566, %v1564
  %v1569 = vadd.f32 %v1567, %v1565
  %v1570 = vtanh.pop %v1568
  %v1571 = vtanh.pop %v1569
  %v1572 = vsub.f32 1.0, %v1559
  %v1573 = vsub.f32 1.0, %v1561
  %v1574 = vmul.f32 %v1572, %v1570
  %v1575 = vmul.f32 %v1573, %v1571
  %v1576 = vmul.f32 %v1559, 0.0
  %v1577 = vmul.f32 %v1561, 0.0
  %v1578 = vadd.f32 %v1574, %v1576
  %v1579 = vadd.f32 %v1575, %v1577
  %1580 = vst [vmem:[#allocation4] sm:$0xff] %v1578
  %1581 = vst [vmem:[#allocation4 + $0x8] sm:$0xff] %v1579
  %s1582 = scalar_lea.vmem [#allocation3], 24
  %v1583 = vld [vmem:[%s1582] sm:$0xff]
  %v1584 = vld [vmem:[%s1582 + $0x8] sm:$0xff]
  %v1585 = vld [vmem:[%s1582 + $0x10] sm:$0xff]
  %v1586 = vpack.c.bf16 %v1578, %v1578
  %v1587 = vpack.c.bf16 %v1579, %v1579
  %1588 = vmatprep.subr.bf16.mxu0 %v1216
  %1589 = vmatpush1.bf16.msra.mxu0 %v1215
  %1590 = vmatprep.subr.bf16.mxu0 %v1222
  %1591 = vmatpush1.bf16.msra.mxu0 %v1221
  %1592 = vmatprep.subr.bf16.mxu0 %v1228
  %1593 = vmatpush1.bf16.msra.mxu0 %v1227
  %1594 = vmatprep.subr.bf16.mxu0 %v1234
  %1595 = vmatpush1.bf16.msra.mxu0 %v1233
  %1596 = vmatprep.subr.bf16.mxu0 %v1240
  %1597 = vmatpush1.bf16.msra.mxu0 %v1239
  %1598 = vmatprep.subr.bf16.mxu0 %v1246
  %1599 = vmatpush1.bf16.msra.mxu0 %v1245
  %1600 = vmatprep.subr.bf16.mxu0 %v1252
  %1601 = vmatpush1.bf16.msra.mxu0 %v1251
  %1602 = vmatprep.subr.bf16.mxu0 %v1258
  %1603 = vmatpush1.bf16.msra.mxu0 %v1257
  %1604 = vmatprep.subr.bf16.mxu0 %v1264
  %1605 = vmatpush1.bf16.msra.mxu0 %v1263
  %1606 = vmatprep.subr.bf16.mxu0 %v1270
  %1607 = vmatpush1.bf16.msra.mxu0 %v1269
  %1608 = vmatprep.subr.bf16.mxu0 %v1276
  %1609 = vmatpush1.bf16.msra.mxu0 %v1275
  %1610 = vmatprep.subr.bf16.mxu0 %v1282
  %1611 = vmatpush1.bf16.msra.mxu0 %v1281
  %1612 = vmatprep.subr.bf16.mxu0 %v1288
  %1613 = vmatpush1.bf16.msra.mxu0 %v1287
  %1614 = vmatprep.subr.bf16.mxu0 %v1294
  %1615 = vmatpush1.bf16.msra.mxu0 %v1293
  %1616 = vmatprep.subr.bf16.mxu0 %v1300
  %1617 = vmatpush1.bf16.msra.mxu0 %v1299
  %1618 = vmatprep.subr.bf16.mxu0 %v1306
  %1619 = vmatpush1.bf16.msra.mxu0 %v1305
  %1620 = vmatprep.mubr.bf16.mxu0 %v1587
  %1621 = vmatmul.mubr.bf16.gmra.mrb[0].mxu0 %v1586
  %v1622 = vpop.f32.mrb[0].mxu0
  %v1623 = vadd.f32 0.0, %v1622
  %v1624 = vpop.f32.mrb[0].mxu0
  %v1625 = vadd.f32 0.0, %v1624
  %v1626 = vpop.f32.mrb[0].mxu0
  %v1627 = vpop.f32.mrb[0].mxu0
  %1628 = vdwg.mxu0
  %1629 = vmatprep.subr.bf16.mxu0 %v1218
  %1630 = vmatpush1.bf16.msra.mxu0 %v1217
  %1631 = vmatprep.subr.bf16.mxu0 %v1224
  %1632 = vmatpush1.bf16.msra.mxu0 %v1223
  %1633 = vmatprep.subr.bf16.mxu0 %v1230
  %1634 = vmatpush1.bf16.msra.mxu0 %v1229
  %1635 = vmatprep.subr.bf16.mxu0 %v1236
  %1636 = vmatpush1.bf16.msra.mxu0 %v1235
  %1637 = vmatprep.subr.bf16.mxu0 %v1242
  %1638 = vmatpush1.bf16.msra.mxu0 %v1241
  %1639 = vmatprep.subr.bf16.mxu0 %v1248
  %1640 = vmatpush1.bf16.msra.mxu0 %v1247
  %1641 = vmatprep.subr.bf16.mxu0 %v1254
  %1642 = vmatpush1.bf16.msra.mxu0 %v1253
  %1643 = vmatprep.subr.bf16.mxu0 %v1260
  %1644 = vmatpush1.bf16.msra.mxu0 %v1259
  %1645 = vmatprep.subr.bf16.mxu0 %v1266
  %1646 = vmatpush1.bf16.msra.mxu0 %v1265
  %1647 = vmatprep.subr.bf16.mxu0 %v1272
  %1648 = vmatpush1.bf16.msra.mxu0 %v1271
  %1649 = vmatprep.subr.bf16.mxu0 %v1278
  %1650 = vmatpush1.bf16.msra.mxu0 %v1277
  %1651 = vmatprep.subr.bf16.mxu0 %v1284
  %1652 = vmatpush1.bf16.msra.mxu0 %v1283
  %1653 = vmatprep.subr.bf16.mxu0 %v1290
  %1654 = vmatpush1.bf16.msra.mxu0 %v1289
  %1655 = vmatprep.subr.bf16.mxu0 %v1296
  %1656 = vmatpush1.bf16.msra.mxu0 %v1295
  %1657 = vmatprep.subr.bf16.mxu0 %v1302
  %1658 = vmatpush1.bf16.msra.mxu0 %v1301
  %1659 = vmatprep.subr.bf16.mxu0 %v1308
  %1660 = vmatpush1.bf16.msra.mxu0 %v1307
  %1661 = vmatprep.mubr.bf16.mxu0 %v1587
  %1662 = vmatmul.mubr.bf16.gmra.mrb[0].mxu0 %v1586
  %v1663 = vpop.f32.mrb[0].mxu0
  %v1664 = vadd.f32 0.0, %v1663
  %v1665 = vpop.f32.mrb[0].mxu0
  %v1666 = vadd.f32 0.0, %v1665
  %v1667 = vpop.f32.mrb[0].mxu0
  %v1668 = vpop.f32.mrb[0].mxu0
  %1669 = vdwg.mxu0
  %1670 = vmatprep.subr.bf16.mxu0 %v1220
  %1671 = vmatpush1.bf16.msra.mxu0 %v1219
  %1672 = vmatprep.subr.bf16.mxu0 %v1226
  %1673 = vmatpush1.bf16.msra.mxu0 %v1225
  %1674 = vmatprep.subr.bf16.mxu0 %v1232
  %1675 = vmatpush1.bf16.msra.mxu0 %v1231
  %1676 = vmatprep.subr.bf16.mxu0 %v1238
  %1677 = vmatpush1.bf16.msra.mxu0 %v1237
  %1678 = vmatprep.subr.bf16.mxu0 %v1244
  %1679 = vmatpush1.bf16.msra.mxu0 %v1243
  %1680 = vmatprep.subr.bf16.mxu0 %v1250
  %1681 = vmatpush1.bf16.msra.mxu0 %v1249
  %1682 = vmatprep.subr.bf16.mxu0 %v1256
  %1683 = vmatpush1.bf16.msra.mxu0 %v1255
  %1684 = vmatprep.subr.bf16.mxu0 %v1262
  %1685 = vmatpush1.bf16.msra.mxu0 %v1261
  %1686 = vmatprep.subr.bf16.mxu0 %v1268
  %1687 = vmatpush1.bf16.msra.mxu0 %v1267
  %1688 = vmatprep.subr.bf16.mxu0 %v1274
  %1689 = vmatpush1.bf16.msra.mxu0 %v1273
  %1690 = vmatprep.subr.bf16.mxu0 %v1280
  %1691 = vmatpush1.bf16.msra.mxu0 %v1279
  %1692 = vmatprep.subr.bf16.mxu0 %v1286
  %1693 = vmatpush1.bf16.msra.mxu0 %v1285
  %1694 = vmatprep.subr.bf16.mxu0 %v1292
  %1695 = vmatpush1.bf16.msra.mxu0 %v1291
  %1696 = vmatprep.subr.bf16.mxu0 %v1298
  %1697 = vmatpush1.bf16.msra.mxu0 %v1297
  %1698 = vmatprep.subr.bf16.mxu0 %v1304
  %1699 = vmatpush1.bf16.msra.mxu0 %v1303
  %1700 = vmatprep.subr.bf16.mxu0 %v1310
  %1701 = vmatpush1.bf16.msra.mxu0 %v1309
  %1702 = vmatprep.mubr.bf16.mxu0 %v1587
  %1703 = vmatmul.mubr.bf16.gmra.mrb[0].mxu0 %v1586
  %v1704 = vpop.f32.mrb[0].mxu0
  %v1705 = vadd.f32 0.0, %v1704
  %v1706 = vpop.f32.mrb[0].mxu0
  %v1707 = vadd.f32 0.0, %v1706
  %v1708 = vpop.f32.mrb[0].mxu0
  %v1709 = vpop.f32.mrb[0].mxu0
  %1710 = vdwg.mxu0
  %v1711 = vunpack.c.l.bf16 %v1583
  %v1712 = vunpack.c.h.bf16 %v1583
  %v1713 = vadd.f32 %v1711, %v1623
  %v1714 = vadd.f32 %v1712, %v1625
  %v1715 = vxor.u32 %v1713, 2147483648
  %v1716 = vxor.u32 %v1714, 2147483648
  %v1717 = vmul.f32 %v1715, 1.442695
  %v1718 = vpow.pop %v1717
  %v1719 = vmul.f32 %v1716, 1.442695
  %v1720 = vpow.pop %v1719
  %v1721 = vadd.f32 %v1718, 1.0
  %v1722 = vadd.f32 %v1720, 1.0
  %v1723 = vrcp.pop %v1721
  %v1724 = vmul.f32 1.0, %v1723
  %v1725 = vrcp.pop %v1722
  %v1726 = vmul.f32 1.0, %v1725
  %v1727 = vunpack.c.l.bf16 %v1584
  %v1728 = vunpack.c.h.bf16 %v1584
  %v1729 = vadd.f32 %v1727, %v1664
  %v1730 = vadd.f32 %v1728, %v1666
  %v1731 = vxor.u32 %v1729, 2147483648
  %v1732 = vxor.u32 %v1730, 2147483648
  %v1733 = vmul.f32 %v1731, 1.442695
  %v1734 = vpow.pop %v1733
  %v1735 = vmul.f32 %v1732, 1.442695
  %v1736 = vpow.pop %v1735
  %v1737 = vadd.f32 %v1734, 1.0
  %v1738 = vadd.f32 %v1736, 1.0
  %v1739 = vrcp.pop %v1737
  %v1740 = vmul.f32 1.0, %v1739
  %v1741 = vrcp.pop %v1738
  %v1742 = vmul.f32 1.0, %v1741
  %v1743 = vadd.f32 %v1705, %v917
  %v1744 = vadd.f32 %v1707, %v921
  %v1745 = vmul.f32 %v1724, %v1743
  %v1746 = vmul.f32 %v1726, %v1744
  %v1747 = vunpack.c.l.bf16 %v1585
  %v1748 = vunpack.c.h.bf16 %v1585
  %v1749 = vadd.f32 %v1747, %v1745
  %v1750 = vadd.f32 %v1748, %v1746
  %v1751 = vtanh.pop %v1749
  %v1752 = vtanh.pop %v1750
  %v1753 = vsub.f32 1.0, %v1740
  %v1754 = vsub.f32 1.0, %v1742
  %v1755 = vmul.f32 %v1753, %v1751
  %v1756 = vmul.f32 %v1754, %v1752
  %v1757 = vmul.f32 %v1740, %v1578
  %v1758 = vmul.f32 %v1742, %v1579
  %v1759 = vadd.f32 %v1755, %v1757
  %v1760 = vadd.f32 %v1756, %v1758
  %s1761 = scalar_lea.vmem [#allocation4], 16
  %1762 = vst [vmem:[%s1761] sm:$0xff] %v1759
  %1763 = vst [vmem:[%s1761 + $0x8] sm:$0xff] %v1760
  %s1764 = scalar_lea.vmem [#allocation3], 48
  %v1765 = vld [vmem:[%s1764] sm:$0xff]
  %v1766 = vld [vmem:[%s1764 + $0x8] sm:$0xff]
  %v1767 = vld [vmem:[%s1764 + $0x10] sm:$0xff]
  %v1768 = vpack.c.bf16 %v1759, %v1759
  %v1769 = vpack.c.bf16 %v1760, %v1760
  %1770 = vmatprep.subr.bf16.mxu0 %v1216
  %1771 = vmatpush1.bf16.msra.mxu0 %v1215
  %1772 = vmatprep.subr.bf16.mxu0 %v1222
  %1773 = vmatpush1.bf16.msra.mxu0 %v1221
  %1774 = vmatprep.subr.bf16.mxu0 %v1228
  %1775 = vmatpush1.bf16.msra.mxu0 %v1227
  %1776 = vmatprep.subr.bf16.mxu0 %v1234
  %1777 = vmatpush1.bf16.msra.mxu0 %v1233
  %1778 = vmatprep.subr.bf16.mxu0 %v1240
  %1779 = vmatpush1.bf16.msra.mxu0 %v1239
  %1780 = vmatprep.subr.bf16.mxu0 %v1246
  %1781 = vmatpush1.bf16.msra.mxu0 %v1245
  %1782 = vmatprep.subr.bf16.mxu0 %v1252
  %1783 = vmatpush1.bf16.msra.mxu0 %v1251
  %1784 = vmatprep.subr.bf16.mxu0 %v1258
  %1785 = vmatpush1.bf16.msra.mxu0 %v1257
  %1786 = vmatprep.subr.bf16.mxu0 %v1264
  %1787 = vmatpush1.bf16.msra.mxu0 %v1263
  %1788 = vmatprep.subr.bf16.mxu0 %v1270
  %1789 = vmatpush1.bf16.msra.mxu0 %v1269
  %1790 = vmatprep.subr.bf16.mxu0 %v1276
  %1791 = vmatpush1.bf16.msra.mxu0 %v1275
  %1792 = vmatprep.subr.bf16.mxu0 %v1282
  %1793 = vmatpush1.bf16.msra.mxu0 %v1281
  %1794 = vmatprep.subr.bf16.mxu0 %v1288
  %1795 = vmatpush1.bf16.msra.mxu0 %v1287
  %1796 = vmatprep.subr.bf16.mxu0 %v1294
  %1797 = vmatpush1.bf16.msra.mxu0 %v1293
  %1798 = vmatprep.subr.bf16.mxu0 %v1300
  %1799 = vmatpush1.bf16.msra.mxu0 %v1299
  %1800 = vmatprep.subr.bf16.mxu0 %v1306
  %1801 = vmatpush1.bf16.msra.mxu0 %v1305
  %1802 = vmatprep.mubr.bf16.mxu0 %v1769
  %1803 = vmatmul.mubr.bf16.gmra.mrb[0].mxu0 %v1768
  %v1804 = vpop.f32.mrb[0].mxu0
  %v1805 = vadd.f32 0.0, %v1804
  %v1806 = vpop.f32.mrb[0].mxu0
  %v1807 = vadd.f32 0.0, %v1806
  %v1808 = vpop.f32.mrb[0].mxu0
  %v1809 = vpop.f32.mrb[0].mxu0
  %1810 = vdwg.mxu0
  %1811 = vmatprep.subr.bf16.mxu0 %v1218
  %1812 = vmatpush1.bf16.msra.mxu0 %v1217
  %1813 = vmatprep.subr.bf16.mxu0 %v1224
  %1814 = vmatpush1.bf16.msra.mxu0 %v1223
  %1815 = vmatprep.subr.bf16.mxu0 %v1230
  %1816 = vmatpush1.bf16.msra.mxu0 %v1229
  %1817 = vmatprep.subr.bf16.mxu0 %v1236
  %1818 = vmatpush1.bf16.msra.mxu0 %v1235
  %1819 = vmatprep.subr.bf16.mxu0 %v1242
  %1820 = vmatpush1.bf16.msra.mxu0 %v1241
  %1821 = vmatprep.subr.bf16.mxu0 %v1248
  %1822 = vmatpush1.bf16.msra.mxu0 %v1247
  %1823 = vmatprep.subr.bf16.mxu0 %v1254
  %1824 = vmatpush1.bf16.msra.mxu0 %v1253
  %1825 = vmatprep.subr.bf16.mxu0 %v1260
  %1826 = vmatpush1.bf16.msra.mxu0 %v1259
  %1827 = vmatprep.subr.bf16.mxu0 %v1266
  %1828 = vmatpush1.bf16.msra.mxu0 %v1265
  %1829 = vmatprep.subr.bf16.mxu0 %v1272
  %1830 = vmatpush1.bf16.msra.mxu0 %v1271
  %1831 = vmatprep.subr.bf16.mxu0 %v1278
  %1832 = vmatpush1.bf16.msra.mxu0 %v1277
  %1833 = vmatprep.subr.bf16.mxu0 %v1284
  %1834 = vmatpush1.bf16.msra.mxu0 %v1283
  %1835 = vmatprep.subr.bf16.mxu0 %v1290
  %1836 = vmatpush1.bf16.msra.mxu0 %v1289
  %1837 = vmatprep.subr.bf16.mxu0 %v1296
  %1838 = vmatpush1.bf16.msra.mxu0 %v1295
  %1839 = vmatprep.subr.bf16.mxu0 %v1302
  %1840 = vmatpush1.bf16.msra.mxu0 %v1301
  %1841 = vmatprep.subr.bf16.mxu0 %v1308
  %1842 = vmatpush1.bf16.msra.mxu0 %v1307
  %1843 = vmatprep.mubr.bf16.mxu0 %v1769
  %1844 = vmatmul.mubr.bf16.gmra.mrb[0].mxu0 %v1768
  %v1845 = vpop.f32.mrb[0].mxu0
  %v1846 = vadd.f32 0.0, %v1845
  %v1847 = vpop.f32.mrb[0].mxu0
  %v1848 = vadd.f32 0.0, %v1847
  %v1849 = vpop.f32.mrb[0].mxu0
  %v1850 = vpop.f32.mrb[0].mxu0
  %1851 = vdwg.mxu0
  %1852 = vmatprep.subr.bf16.mxu0 %v1220
  %1853 = vmatpush1.bf16.msra.mxu0 %v1219
  %1854 = vmatprep.subr.bf16.mxu0 %v1226
  %1855 = vmatpush1.bf16.msra.mxu0 %v1225
  %1856 = vmatprep.subr.bf16.mxu0 %v1232
  %1857 = vmatpush1.bf16.msra.mxu0 %v1231
  %1858 = vmatprep.subr.bf16.mxu0 %v1238
  %1859 = vmatpush1.bf16.msra.mxu0 %v1237
  %1860 = vmatprep.subr.bf16.mxu0 %v1244
  %1861 = vmatpush1.bf16.msra.mxu0 %v1243
  %1862 = vmatprep.subr.bf16.mxu0 %v1250
  %1863 = vmatpush1.bf16.msra.mxu0 %v1249
  %1864 = vmatprep.subr.bf16.mxu0 %v1256
  %1865 = vmatpush1.bf16.msra.mxu0 %v1255
  %1866 = vmatprep.subr.bf16.mxu0 %v1262
  %1867 = vmatpush1.bf16.msra.mxu0 %v1261
  %1868 = vmatprep.subr.bf16.mxu0 %v1268
  %1869 = vmatpush1.bf16.msra.mxu0 %v1267
  %1870 = vmatprep.subr.bf16.mxu0 %v1274
  %1871 = vmatpush1.bf16.msra.mxu0 %v1273
  %1872 = vmatprep.subr.bf16.mxu0 %v1280
  %1873 = vmatpush1.bf16.msra.mxu0 %v1279
  %1874 = vmatprep.subr.bf16.mxu0 %v1286
  %1875 = vmatpush1.bf16.msra.mxu0 %v1285
  %1876 = vmatprep.subr.bf16.mxu0 %v1292
  %1877 = vmatpush1.bf16.msra.mxu0 %v1291
  %1878 = vmatprep.subr.bf16.mxu0 %v1298
  %1879 = vmatpush1.bf16.msra.mxu0 %v1297
  %1880 = vmatprep.subr.bf16.mxu0 %v1304
  %1881 = vmatpush1.bf16.msra.mxu0 %v1303
  %1882 = vmatprep.subr.bf16.mxu0 %v1310
  %1883 = vmatpush1.bf16.msra.mxu0 %v1309
  %1884 = vmatprep.mubr.bf16.mxu0 %v1769
  %1885 = vmatmul.mubr.bf16.gmra.mrb[0].mxu0 %v1768
  %v1886 = vpop.f32.mrb[0].mxu0
  %v1887 = vadd.f32 0.0, %v1886
  %v1888 = vpop.f32.mrb[0].mxu0
  %v1889 = vadd.f32 0.0, %v1888
  %v1890 = vpop.f32.mrb[0].mxu0
  %v1891 = vpop.f32.mrb[0].mxu0
  %1892 = vdwg.mxu0
  %v1893 = vunpack.c.l.bf16 %v1765
  %v1894 = vunpack.c.h.bf16 %v1765
  %v1895 = vadd.f32 %v1893, %v1805
  %v1896 = vadd.f32 %v1894, %v1807
  %v1897 = vxor.u32 %v1895, 2147483648
  %v1898 = vxor.u32 %v1896, 2147483648
  %v1899 = vmul.f32 %v1897, 1.442695
  %v1900 = vpow.pop %v1899
  %v1901 = vmul.f32 %v1898, 1.442695
  %v1902 = vpow.pop %v1901
  %v1903 = vadd.f32 %v1900, 1.0
  %v1904 = vadd.f32 %v1902, 1.0
  %v1905 = vrcp.pop %v1903
  %v1906 = vmul.f32 1.0, %v1905
  %v1907 = vrcp.pop %v1904
  %v1908 = vmul.f32 1.0, %v1907
  %v1909 = vunpack.c.l.bf16 %v1766
  %v1910 = vunpack.c.h.bf16 %v1766
  %v1911 = vadd.f32 %v1909, %v1846
  %v1912 = vadd.f32 %v1910, %v1848
  %v1913 = vxor.u32 %v1911, 2147483648
  %v1914 = vxor.u32 %v1912, 2147483648
  %v1915 = vmul.f32 %v1913, 1.442695
  %v1916 = vpow.pop %v1915
  %v1917 = vmul.f32 %v1914, 1.442695
  %v1918 = vpow.pop %v1917
  %v1919 = vadd.f32 %v1916, 1.0
  %v1920 = vadd.f32 %v1918, 1.0
  %v1921 = vrcp.pop %v1919
  %v1922 = vmul.f32 1.0, %v1921
  %v1923 = vrcp.pop %v1920
  %v1924 = vmul.f32 1.0, %v1923
  %v1925 = vadd.f32 %v1887, %v917
  %v1926 = vadd.f32 %v1889, %v921
  %v1927 = vmul.f32 %v1906, %v1925
  %v1928 = vmul.f32 %v1908, %v1926
  %v1929 = vunpack.c.l.bf16 %v1767
  %v1930 = vunpack.c.h.bf16 %v1767
  %v1931 = vadd.f32 %v1929, %v1927
  %v1932 = vadd.f32 %v1930, %v1928
  %v1933 = vtanh.pop %v1931
  %v1934 = vtanh.pop %v1932
  %v1935 = vsub.f32 1.0, %v1922
  %v1936 = vsub.f32 1.0, %v1924
  %v1937 = vmul.f32 %v1935, %v1933
  %v1938 = vmul.f32 %v1936, %v1934
  %v1939 = vmul.f32 %v1922, %v1759
  %v1940 = vmul.f32 %v1924, %v1760
  %v1941 = vadd.f32 %v1937, %v1939
  %v1942 = vadd.f32 %v1938, %v1940
  %s1943 = scalar_lea.vmem [#allocation4], 32
  %1944 = vst [vmem:[%s1943] sm:$0xff] %v1941
  %1945 = vst [vmem:[%s1943 + $0x8] sm:$0xff] %v1942
  %s1946 = scalar_lea.vmem [#allocation3], 72
  %v1947 = vld [vmem:[%s1946] sm:$0xff]
  %v1948 = vld [vmem:[%s1946 + $0x8] sm:$0xff]
  %v1949 = vld [vmem:[%s1946 + $0x10] sm:$0xff]
  %v1950 = vpack.c.bf16 %v1941, %v1941
  %v1951 = vpack.c.bf16 %v1942, %v1942
  %1952 = vmatprep.subr.bf16.mxu0 %v1216
  %1953 = vmatpush1.bf16.msra.mxu0 %v1215
  %1954 = vmatprep.subr.bf16.mxu0 %v1222
  %1955 = vmatpush1.bf16.msra.mxu0 %v1221
  %1956 = vmatprep.subr.bf16.mxu0 %v1228
  %1957 = vmatpush1.bf16.msra.mxu0 %v1227
  %1958 = vmatprep.subr.bf16.mxu0 %v1234
  %1959 = vmatpush1.bf16.msra.mxu0 %v1233
  %1960 = vmatprep.subr.bf16.mxu0 %v1240
  %1961 = vmatpush1.bf16.msra.mxu0 %v1239
  %1962 = vmatprep.subr.bf16.mxu0 %v1246
  %1963 = vmatpush1.bf16.msra.mxu0 %v1245
  %1964 = vmatprep.subr.bf16.mxu0 %v1252
  %1965 = vmatpush1.bf16.msra.mxu0 %v1251
  %1966 = vmatprep.subr.bf16.mxu0 %v1258
  %1967 = vmatpush1.bf16.msra.mxu0 %v1257
  %1968 = vmatprep.subr.bf16.mxu0 %v1264
  %1969 = vmatpush1.bf16.msra.mxu0 %v1263
  %1970 = vmatprep.subr.bf16.mxu0 %v1270
  %1971 = vmatpush1.bf16.msra.mxu0 %v1269
  %1972 = vmatprep.subr.bf16.mxu0 %v1276
  %1973 = vmatpush1.bf16.msra.mxu0 %v1275
  %1974 = vmatprep.subr.bf16.mxu0 %v1282
  %1975 = vmatpush1.bf16.msra.mxu0 %v1281
  %1976 = vmatprep.subr.bf16.mxu0 %v1288
  %1977 = vmatpush1.bf16.msra.mxu0 %v1287
  %1978 = vmatprep.subr.bf16.mxu0 %v1294
  %1979 = vmatpush1.bf16.msra.mxu0 %v1293
  %1980 = vmatprep.subr.bf16.mxu0 %v1300
  %1981 = vmatpush1.bf16.msra.mxu0 %v1299
  %1982 = vmatprep.subr.bf16.mxu0 %v1306
  %1983 = vmatpush1.bf16.msra.mxu0 %v1305
  %1984 = vmatprep.mubr.bf16.mxu0 %v1951
  %1985 = vmatmul.mubr.bf16.gmra.mrb[0].mxu0 %v1950
  %v1986 = vpop.f32.mrb[0].mxu0
  %v1987 = vadd.f32 0.0, %v1986
  %v1988 = vpop.f32.mrb[0].mxu0
  %v1989 = vadd.f32 0.0, %v1988
  %v1990 = vpop.f32.mrb[0].mxu0
  %v1991 = vpop.f32.mrb[0].mxu0
  %1992 = vdwg.mxu0
  %1993 = vmatprep.subr.bf16.mxu0 %v1218
  %1994 = vmatpush1.bf16.msra.mxu0 %v1217
  %1995 = vmatprep.subr.bf16.mxu0 %v1224
  %1996 = vmatpush1.bf16.msra.mxu0 %v1223
  %1997 = vmatprep.subr.bf16.mxu0 %v1230
  %1998 = vmatpush1.bf16.msra.mxu0 %v1229
  %1999 = vmatprep.subr.bf16.mxu0 %v1236
  %2000 = vmatpush1.bf16.msra.mxu0 %v1235
  %2001 = vmatprep.subr.bf16.mxu0 %v1242
  %2002 = vmatpush1.bf16.msra.mxu0 %v1241
  %2003 = vmatprep.subr.bf16.mxu0 %v1248
  %2004 = vmatpush1.bf16.msra.mxu0 %v1247
  %2005 = vmatprep.subr.bf16.mxu0 %v1254
  %2006 = vmatpush1.bf16.msra.mxu0 %v1253
  %2007 = vmatprep.subr.bf16.mxu0 %v1260
  %2008 = vmatpush1.bf16.msra.mxu0 %v1259
  %2009 = vmatprep.subr.bf16.mxu0 %v1266
  %2010 = vmatpush1.bf16.msra.mxu0 %v1265
  %2011 = vmatprep.subr.bf16.mxu0 %v1272
  %2012 = vmatpush1.bf16.msra.mxu0 %v1271
  %2013 = vmatprep.subr.bf16.mxu0 %v1278
  %2014 = vmatpush1.bf16.msra.mxu0 %v1277
  %2015 = vmatprep.subr.bf16.mxu0 %v1284
  %2016 = vmatpush1.bf16.msra.mxu0 %v1283
  %2017 = vmatprep.subr.bf16.mxu0 %v1290
  %2018 = vmatpush1.bf16.msra.mxu0 %v1289
  %2019 = vmatprep.subr.bf16.mxu0 %v1296
  %2020 = vmatpush1.bf16.msra.mxu0 %v1295
  %2021 = vmatprep.subr.bf16.mxu0 %v1302
  %2022 = vmatpush1.bf16.msra.mxu0 %v1301
  %2023 = vmatprep.subr.bf16.mxu0 %v1308
  %2024 = vmatpush1.bf16.msra.mxu0 %v1307
  %2025 = vmatprep.mubr.bf16.mxu0 %v1951
  %2026 = vmatmul.mubr.bf16.gmra.mrb[0].mxu0 %v1950
  %v2027 = vpop.f32.mrb[0].mxu0
  %v2028 = vadd.f32 0.0, %v2027
  %v2029 = vpop.f32.mrb[0].mxu0
  %v2030 = vadd.f32 0.0, %v2029
  %v2031 = vpop.f32.mrb[0].mxu0
  %v2032 = vpop.f32.mrb[0].mxu0
  %2033 = vdwg.mxu0
  %2034 = vmatprep.subr.bf16.mxu0 %v1220
  %2035 = vmatpush1.bf16.msra.mxu0 %v1219
  %2036 = vmatprep.subr.bf16.mxu0 %v1226
  %2037 = vmatpush1.bf16.msra.mxu0 %v1225
  %2038 = vmatprep.subr.bf16.mxu0 %v1232
  %2039 = vmatpush1.bf16.msra.mxu0 %v1231
  %2040 = vmatprep.subr.bf16.mxu0 %v1238
  %2041 = vmatpush1.bf16.msra.mxu0 %v1237
  %2042 = vmatprep.subr.bf16.mxu0 %v1244
  %2043 = vmatpush1.bf16.msra.mxu0 %v1243
  %2044 = vmatprep.subr.bf16.mxu0 %v1250
  %2045 = vmatpush1.bf16.msra.mxu0 %v1249
  %2046 = vmatprep.subr.bf16.mxu0 %v1256
  %2047 = vmatpush1.bf16.msra.mxu0 %v1255
  %2048 = vmatprep.subr.bf16.mxu0 %v1262
  %2049 = vmatpush1.bf16.msra.mxu0 %v1261
  %2050 = vmatprep.subr.bf16.mxu0 %v1268
  %2051 = vmatpush1.bf16.msra.mxu0 %v1267
  %2052 = vmatprep.subr.bf16.mxu0 %v1274
  %2053 = vmatpush1.bf16.msra.mxu0 %v1273
  %2054 = vmatprep.subr.bf16.mxu0 %v1280
  %2055 = vmatpush1.bf16.msra.mxu0 %v1279
  %2056 = vmatprep.subr.bf16.mxu0 %v1286
  %2057 = vmatpush1.bf16.msra.mxu0 %v1285
  %2058 = vmatprep.subr.bf16.mxu0 %v1292
  %2059 = vmatpush1.bf16.msra.mxu0 %v1291
  %2060 = vmatprep.subr.bf16.mxu0 %v1298
  %2061 = vmatpush1.bf16.msra.mxu0 %v1297
  %2062 = vmatprep.subr.bf16.mxu0 %v1304
  %2063 = vmatpush1.bf16.msra.mxu0 %v1303
  %2064 = vmatprep.subr.bf16.mxu0 %v1310
  %2065 = vmatpush1.bf16.msra.mxu0 %v1309
  %2066 = vmatprep.mubr.bf16.mxu0 %v1951
  %2067 = vmatmul.mubr.bf16.gmra.mrb[0].mxu0 %v1950
  %v2068 = vpop.f32.mrb[0].mxu0
  %v2069 = vadd.f32 0.0, %v2068
  %v2070 = vpop.f32.mrb[0].mxu0
  %v2071 = vadd.f32 0.0, %v2070
  %v2072 = vpop.f32.mrb[0].mxu0
  %v2073 = vpop.f32.mrb[0].mxu0
  %2074 = vdwg.mxu0
  %v2075 = vunpack.c.l.bf16 %v1947
  %v2076 = vunpack.c.h.bf16 %v1947
  %v2077 = vadd.f32 %v2075, %v1987
  %v2078 = vadd.f32 %v2076, %v1989
  %v2079 = vxor.u32 %v2077, 2147483648
  %v2080 = vxor.u32 %v2078, 2147483648
  %v2081 = vmul.f32 %v2079, 1.442695
  %v2082 = vpow.pop %v2081
  %v2083 = vmul.f32 %v2080, 1.442695
  %v2084 = vpow.pop %v2083
  %v2085 = vadd.f32 %v2082, 1.0
  %v2086 = vadd.f32 %v2084, 1.0
  %v2087 = vrcp.pop %v2085
  %v2088 = vmul.f32 1.0, %v2087
  %v2089 = vrcp.pop %v2086
  %v2090 = vmul.f32 1.0, %v2089
  %v2091 = vunpack.c.l.bf16 %v1948
  %v2092 = vunpack.c.h.bf16 %v1948
  %v2093 = vadd.f32 %v2091, %v2028
  %v2094 = vadd.f32 %v2092, %v2030
  %v2095 = vxor.u32 %v2093, 2147483648
  %v2096 = vxor.u32 %v2094, 2147483648
  %v2097 = vmul.f32 %v2095, 1.442695
  %v2098 = vpow.pop %v2097
  %v2099 = vmul.f32 %v2096, 1.442695
  %v2100 = vpow.pop %v2099
  %v2101 = vadd.f32 %v2098, 1.0
  %v2102 = vadd.f32 %v2100, 1.0
  %v2103 = vrcp.pop %v2101
  %v2104 = vmul.f32 1.0, %v2103
  %v2105 = vrcp.pop %v2102
  %v2106 = vmul.f32 1.0, %v2105
  %v2107 = vadd.f32 %v2069, %v917
  %v2108 = vadd.f32 %v2071, %v921
  %v2109 = vmul.f32 %v2088, %v2107
  %v2110 = vmul.f32 %v2090, %v2108
  %v2111 = vunpack.c.l.bf16 %v1949
  %v2112 = vunpack.c.h.bf16 %v1949
  %v2113 = vadd.f32 %v2111, %v2109
  %v2114 = vadd.f32 %v2112, %v2110
  %v2115 = vtanh.pop %v2113
  %v2116 = vtanh.pop %v2114
  %v2117 = vsub.f32 1.0, %v2104
  %v2118 = vsub.f32 1.0, %v2106
  %v2119 = vmul.f32 %v2117, %v2115
  %v2120 = vmul.f32 %v2118, %v2116
  %v2121 = vmul.f32 %v2104, %v1941
  %v2122 = vmul.f32 %v2106, %v1942
  %v2123 = vadd.f32 %v2119, %v2121
  %v2124 = vadd.f32 %v2120, %v2122
  %s2125 = scalar_lea.vmem [#allocation4], 48
  %2126 = vst [vmem:[%s2125] sm:$0xff] %v2123
  %2127 = vst [vmem:[%s2125 + $0x8] sm:$0xff] %v2124
  %s2128 = scalar_lea.vmem [#allocation3], 96
  %v2129 = vld [vmem:[%s2128] sm:$0xff]
  %v2130 = vld [vmem:[%s2128 + $0x8] sm:$0xff]
  %v2131 = vld [vmem:[%s2128 + $0x10] sm:$0xff]
  %v2132 = vpack.c.bf16 %v2123, %v2123
  %v2133 = vpack.c.bf16 %v2124, %v2124
  %2134 = vmatprep.subr.bf16.mxu0 %v1216
  %2135 = vmatpush1.bf16.msra.mxu0 %v1215
  %2136 = vmatprep.subr.bf16.mxu0 %v1222
  %2137 = vmatpush1.bf16.msra.mxu0 %v1221
  %2138 = vmatprep.subr.bf16.mxu0 %v1228
  %2139 = vmatpush1.bf16.msra.mxu0 %v1227
  %2140 = vmatprep.subr.bf16.mxu0 %v1234
  %2141 = vmatpush1.bf16.msra.mxu0 %v1233
  %2142 = vmatprep.subr.bf16.mxu0 %v1240
  %2143 = vmatpush1.bf16.msra.mxu0 %v1239
  %2144 = vmatprep.subr.bf16.mxu0 %v1246
  %2145 = vmatpush1.bf16.msra.mxu0 %v1245
  %2146 = vmatprep.subr.bf16.mxu0 %v1252
  %2147 = vmatpush1.bf16.msra.mxu0 %v1251
  %2148 = vmatprep.subr.bf16.mxu0 %v1258
  %2149 = vmatpush1.bf16.msra.mxu0 %v1257
  %2150 = vmatprep.subr.bf16.mxu0 %v1264
  %2151 = vmatpush1.bf16.msra.mxu0 %v1263
  %2152 = vmatprep.subr.bf16.mxu0 %v1270
  %2153 = vmatpush1.bf16.msra.mxu0 %v1269
  %2154 = vmatprep.subr.bf16.mxu0 %v1276
  %2155 = vmatpush1.bf16.msra.mxu0 %v1275
  %2156 = vmatprep.subr.bf16.mxu0 %v1282
  %2157 = vmatpush1.bf16.msra.mxu0 %v1281
  %2158 = vmatprep.subr.bf16.mxu0 %v1288
  %2159 = vmatpush1.bf16.msra.mxu0 %v1287
  %2160 = vmatprep.subr.bf16.mxu0 %v1294
  %2161 = vmatpush1.bf16.msra.mxu0 %v1293
  %2162 = vmatprep.subr.bf16.mxu0 %v1300
  %2163 = vmatpush1.bf16.msra.mxu0 %v1299
  %2164 = vmatprep.subr.bf16.mxu0 %v1306
  %2165 = vmatpush1.bf16.msra.mxu0 %v1305
  %2166 = vmatprep.mubr.bf16.mxu0 %v2133
  %2167 = vmatmul.mubr.bf16.gmra.mrb[0].mxu0 %v2132
  %v2168 = vpop.f32.mrb[0].mxu0
  %v2169 = vadd.f32 0.0, %v2168
  %v2170 = vpop.f32.mrb[0].mxu0
  %v2171 = vadd.f32 0.0, %v2170
  %v2172 = vpop.f32.mrb[0].mxu0
  %v2173 = vpop.f32.mrb[0].mxu0
  %2174 = vdwg.mxu0
  %2175 = vmatprep.subr.bf16.mxu0 %v1218
  %2176 = vmatpush1.bf16.msra.mxu0 %v1217
  %2177 = vmatprep.subr.bf16.mxu0 %v1224
  %2178 = vmatpush1.bf16.msra.mxu0 %v1223
  %2179 = vmatprep.subr.bf16.mxu0 %v1230
  %2180 = vmatpush1.bf16.msra.mxu0 %v1229
  %2181 = vmatprep.subr.bf16.mxu0 %v1236
  %2182 = vmatpush1.bf16.msra.mxu0 %v1235
  %2183 = vmatprep.subr.bf16.mxu0 %v1242
  %2184 = vmatpush1.bf16.msra.mxu0 %v1241
  %2185 = vmatprep.subr.bf16.mxu0 %v1248
  %2186 = vmatpush1.bf16.msra.mxu0 %v1247
  %2187 = vmatprep.subr.bf16.mxu0 %v1254
  %2188 = vmatpush1.bf16.msra.mxu0 %v1253
  %2189 = vmatprep.subr.bf16.mxu0 %v1260
  %2190 = vmatpush1.bf16.msra.mxu0 %v1259
  %2191 = vmatprep.subr.bf16.mxu0 %v1266
  %2192 = vmatpush1.bf16.msra.mxu0 %v1265
  %2193 = vmatprep.subr.bf16.mxu0 %v1272
  %2194 = vmatpush1.bf16.msra.mxu0 %v1271
  %2195 = vmatprep.subr.bf16.mxu0 %v1278
  %2196 = vmatpush1.bf16.msra.mxu0 %v1277
  %2197 = vmatprep.subr.bf16.mxu0 %v1284
  %2198 = vmatpush1.bf16.msra.mxu0 %v1283
  %2199 = vmatprep.subr.bf16.mxu0 %v1290
  %2200 = vmatpush1.bf16.msra.mxu0 %v1289
  %2201 = vmatprep.subr.bf16.mxu0 %v1296
  %2202 = vmatpush1.bf16.msra.mxu0 %v1295
  %2203 = vmatprep.subr.bf16.mxu0 %v1302
  %2204 = vmatpush1.bf16.msra.mxu0 %v1301
  %2205 = vmatprep.subr.bf16.mxu0 %v1308
  %2206 = vmatpush1.bf16.msra.mxu0 %v1307
  %2207 = vmatprep.mubr.bf16.mxu0 %v2133
  %2208 = vmatmul.mubr.bf16.gmra.mrb[0].mxu0 %v2132
  %v2209 = vpop.f32.mrb[0].mxu0
  %v2210 = vadd.f32 0.0, %v2209
  %v2211 = vpop.f32.mrb[0].mxu0
  %v2212 = vadd.f32 0.0, %v2211
  %v2213 = vpop.f32.mrb[0].mxu0
  %v2214 = vpop.f32.mrb[0].mxu0
  %2215 = vdwg.mxu0
  %2216 = vmatprep.subr.bf16.mxu0 %v1220
  %2217 = vmatpush1.bf16.msra.mxu0 %v1219
  %2218 = vmatprep.subr.bf16.mxu0 %v1226
  %2219 = vmatpush1.bf16.msra.mxu0 %v1225
  %2220 = vmatprep.subr.bf16.mxu0 %v1232
  %2221 = vmatpush1.bf16.msra.mxu0 %v1231
  %2222 = vmatprep.subr.bf16.mxu0 %v1238
  %2223 = vmatpush1.bf16.msra.mxu0 %v1237
  %2224 = vmatprep.subr.bf16.mxu0 %v1244
  %2225 = vmatpush1.bf16.msra.mxu0 %v1243
  %2226 = vmatprep.subr.bf16.mxu0 %v1250
  %2227 = vmatpush1.bf16.msra.mxu0 %v1249
  %2228 = vmatprep.subr.bf16.mxu0 %v1256
  %2229 = vmatpush1.bf16.msra.mxu0 %v1255
  %2230 = vmatprep.subr.bf16.mxu0 %v1262
  %2231 = vmatpush1.bf16.msra.mxu0 %v1261
  %2232 = vmatprep.subr.bf16.mxu0 %v1268
  %2233 = vmatpush1.bf16.msra.mxu0 %v1267
  %2234 = vmatprep.subr.bf16.mxu0 %v1274
  %2235 = vmatpush1.bf16.msra.mxu0 %v1273
  %2236 = vmatprep.subr.bf16.mxu0 %v1280
  %2237 = vmatpush1.bf16.msra.mxu0 %v1279
  %2238 = vmatprep.subr.bf16.mxu0 %v1286
  %2239 = vmatpush1.bf16.msra.mxu0 %v1285
  %2240 = vmatprep.subr.bf16.mxu0 %v1292
  %2241 = vmatpush1.bf16.msra.mxu0 %v1291
  %2242 = vmatprep.subr.bf16.mxu0 %v1298
  %2243 = vmatpush1.bf16.msra.mxu0 %v1297
  %2244 = vmatprep.subr.bf16.mxu0 %v1304
  %2245 = vmatpush1.bf16.msra.mxu0 %v1303
  %2246 = vmatprep.subr.bf16.mxu0 %v1310
  %2247 = vmatpush1.bf16.msra.mxu0 %v1309
  %2248 = vmatprep.mubr.bf16.mxu0 %v2133
  %2249 = vmatmul.mubr.bf16.gmra.mrb[0].mxu0 %v2132
  %v2250 = vpop.f32.mrb[0].mxu0
  %v2251 = vadd.f32 0.0, %v2250
  %v2252 = vpop.f32.mrb[0].mxu0
  %v2253 = vadd.f32 0.0, %v2252
  %v2254 = vpop.f32.mrb[0].mxu0
  %v2255 = vpop.f32.mrb[0].mxu0
  %2256 = vdwg.mxu0
  %v2257 = vunpack.c.l.bf16 %v2129
  %v2258 = vunpack.c.h.bf16 %v2129
  %v2259 = vadd.f32 %v2257, %v2169
  %v2260 = vadd.f32 %v2258, %v2171
  %v2261 = vxor.u32 %v2259, 2147483648
  %v2262 = vxor.u32 %v2260, 2147483648
  %v2263 = vmul.f32 %v2261, 1.442695
  %v2264 = vpow.pop %v2263
  %v2265 = vmul.f32 %v2262, 1.442695
  %v2266 = vpow.pop %v2265
  %v2267 = vadd.f32 %v2264, 1.0
  %v2268 = vadd.f32 %v2266, 1.0
  %v2269 = vrcp.pop %v2267
  %v2270 = vmul.f32 1.0, %v2269
  %v2271 = vrcp.pop %v2268
  %v2272 = vmul.f32 1.0, %v2271
  %v2273 = vunpack.c.l.bf16 %v2130
  %v2274 = vunpack.c.h.bf16 %v2130
  %v2275 = vadd.f32 %v2273, %v2210
  %v2276 = vadd.f32 %v2274, %v2212
  %v2277 = vxor.u32 %v2275, 2147483648
  %v2278 = vxor.u32 %v2276, 2147483648
  %v2279 = vmul.f32 %v2277, 1.442695
  %v2280 = vpow.pop %v2279
  %v2281 = vmul.f32 %v2278, 1.442695
  %v2282 = vpow.pop %v2281
  %v2283 = vadd.f32 %v2280, 1.0
  %v2284 = vadd.f32 %v2282, 1.0
  %v2285 = vrcp.pop %v2283
  %v2286 = vmul.f32 1.0, %v2285
  %v2287 = vrcp.pop %v2284
  %v2288 = vmul.f32 1.0, %v2287
  %v2289 = vadd.f32 %v2251, %v917
  %v2290 = vadd.f32 %v2253, %v921
  %v2291 = vmul.f32 %v2270, %v2289
  %v2292 = vmul.f32 %v2272, %v2290
  %v2293 = vunpack.c.l.bf16 %v2131
  %v2294 = vunpack.c.h.bf16 %v2131
  %v2295 = vadd.f32 %v2293, %v2291
  %v2296 = vadd.f32 %v2294, %v2292
  %v2297 = vtanh.pop %v2295
  %v2298 = vtanh.pop %v2296
  %v2299 = vsub.f32 1.0, %v2286
  %v2300 = vsub.f32 1.0, %v2288
  %v2301 = vmul.f32 %v2299, %v2297
  %v2302 = vmul.f32 %v2300, %v2298
  %v2303 = vmul.f32 %v2286, %v2123
  %v2304 = vmul.f32 %v2288, %v2124
  %v2305 = vadd.f32 %v2301, %v2303
  %v2306 = vadd.f32 %v2302, %v2304
  %s2307 = scalar_lea.vmem [#allocation4], 64
  %2308 = vst [vmem:[%s2307] sm:$0xff] %v2305
  %2309 = vst [vmem:[%s2307 + $0x8] sm:$0xff] %v2306
  %s2310 = scalar_lea.vmem [#allocation3], 120
  %v2311 = vld [vmem:[%s2310] sm:$0xff]
  %v2312 = vld [vmem:[%s2310 + $0x8] sm:$0xff]
  %v2313 = vld [vmem:[%s2310 + $0x10] sm:$0xff]
  %v2314 = vpack.c.bf16 %v2305, %v2305
  %v2315 = vpack.c.bf16 %v2306, %v2306
  %2316 = vmatprep.subr.bf16.mxu0 %v1216
  %2317 = vmatpush1.bf16.msra.mxu0 %v1215
  %2318 = vmatprep.subr.bf16.mxu0 %v1222
  %2319 = vmatpush1.bf16.msra.mxu0 %v1221
  %2320 = vmatprep.subr.bf16.mxu0 %v1228
  %2321 = vmatpush1.bf16.msra.mxu0 %v1227
  %2322 = vmatprep.subr.bf16.mxu0 %v1234
  %2323 = vmatpush1.bf16.msra.mxu0 %v1233
  %2324 = vmatprep.subr.bf16.mxu0 %v1240
  %2325 = vmatpush1.bf16.msra.mxu0 %v1239
  %2326 = vmatprep.subr.bf16.mxu0 %v1246
  %2327 = vmatpush1.bf16.msra.mxu0 %v1245
  %2328 = vmatprep.subr.bf16.mxu0 %v1252
  %2329 = vmatpush1.bf16.msra.mxu0 %v1251
  %2330 = vmatprep.subr.bf16.mxu0 %v1258
  %2331 = vmatpush1.bf16.msra.mxu0 %v1257
  %2332 = vmatprep.subr.bf16.mxu0 %v1264
  %2333 = vmatpush1.bf16.msra.mxu0 %v1263
  %2334 = vmatprep.subr.bf16.mxu0 %v1270
  %2335 = vmatpush1.bf16.msra.mxu0 %v1269
  %2336 = vmatprep.subr.bf16.mxu0 %v1276
  %2337 = vmatpush1.bf16.msra.mxu0 %v1275
  %2338 = vmatprep.subr.bf16.mxu0 %v1282
  %2339 = vmatpush1.bf16.msra.mxu0 %v1281
  %2340 = vmatprep.subr.bf16.mxu0 %v1288
  %2341 = vmatpush1.bf16.msra.mxu0 %v1287
  %2342 = vmatprep.subr.bf16.mxu0 %v1294
  %2343 = vmatpush1.bf16.msra.mxu0 %v1293
  %2344 = vmatprep.subr.bf16.mxu0 %v1300
  %2345 = vmatpush1.bf16.msra.mxu0 %v1299
  %2346 = vmatprep.subr.bf16.mxu0 %v1306
  %2347 = vmatpush1.bf16.msra.mxu0 %v1305
  %2348 = vmatprep.mubr.bf16.mxu0 %v2315
  %2349 = vmatmul.mubr.bf16.gmra.mrb[0].mxu0 %v2314
  %v2350 = vpop.f32.mrb[0].mxu0
  %v2351 = vadd.f32 0.0, %v2350
  %v2352 = vpop.f32.mrb[0].mxu0
  %v2353 = vadd.f32 0.0, %v2352
  %v2354 = vpop.f32.mrb[0].mxu0
  %v2355 = vpop.f32.mrb[0].mxu0
  %2356 = vdwg.mxu0
  %2357 = vmatprep.subr.bf16.mxu0 %v1218
  %2358 = vmatpush1.bf16.msra.mxu0 %v1217
  %2359 = vmatprep.subr.bf16.mxu0 %v1224
  %2360 = vmatpush1.bf16.msra.mxu0 %v1223
  %2361 = vmatprep.subr.bf16.mxu0 %v1230
  %2362 = vmatpush1.bf16.msra.mxu0 %v1229
  %2363 = vmatprep.subr.bf16.mxu0 %v1236
  %2364 = vmatpush1.bf16.msra.mxu0 %v1235
  %2365 = vmatprep.subr.bf16.mxu0 %v1242
  %2366 = vmatpush1.bf16.msra.mxu0 %v1241
  %2367 = vmatprep.subr.bf16.mxu0 %v1248
  %2368 = vmatpush1.bf16.msra.mxu0 %v1247
  %2369 = vmatprep.subr.bf16.mxu0 %v1254
  %2370 = vmatpush1.bf16.msra.mxu0 %v1253
  %2371 = vmatprep.subr.bf16.mxu0 %v1260
  %2372 = vmatpush1.bf16.msra.mxu0 %v1259
  %2373 = vmatprep.subr.bf16.mxu0 %v1266
  %2374 = vmatpush1.bf16.msra.mxu0 %v1265
  %2375 = vmatprep.subr.bf16.mxu0 %v1272
  %2376 = vmatpush1.bf16.msra.mxu0 %v1271
  %2377 = vmatprep.subr.bf16.mxu0 %v1278
  %2378 = vmatpush1.bf16.msra.mxu0 %v1277
  %2379 = vmatprep.subr.bf16.mxu0 %v1284
  %2380 = vmatpush1.bf16.msra.mxu0 %v1283
  %2381 = vmatprep.subr.bf16.mxu0 %v1290
  %2382 = vmatpush1.bf16.msra.mxu0 %v1289
  %2383 = vmatprep.subr.bf16.mxu0 %v1296
  %2384 = vmatpush1.bf16.msra.mxu0 %v1295
  %2385 = vmatprep.subr.bf16.mxu0 %v1302
  %2386 = vmatpush1.bf16.msra.mxu0 %v1301
  %2387 = vmatprep.subr.bf16.mxu0 %v1308
  %2388 = vmatpush1.bf16.msra.mxu0 %v1307
  %2389 = vmatprep.mubr.bf16.mxu0 %v2315
  %2390 = vmatmul.mubr.bf16.gmra.mrb[0].mxu0 %v2314
  %v2391 = vpop.f32.mrb[0].mxu0
  %v2392 = vadd.f32 0.0, %v2391
  %v2393 = vpop.f32.mrb[0].mxu0
  %v2394 = vadd.f32 0.0, %v2393
  %v2395 = vpop.f32.mrb[0].mxu0
  %v2396 = vpop.f32.mrb[0].mxu0
  %2397 = vdwg.mxu0
  %2398 = vmatprep.subr.bf16.mxu0 %v1220
  %2399 = vmatpush1.bf16.msra.mxu0 %v1219
  %2400 = vmatprep.subr.bf16.mxu0 %v1226
  %2401 = vmatpush1.bf16.msra.mxu0 %v1225
  %2402 = vmatprep.subr.bf16.mxu0 %v1232
  %2403 = vmatpush1.bf16.msra.mxu0 %v1231
  %2404 = vmatprep.subr.bf16.mxu0 %v1238
  %2405 = vmatpush1.bf16.msra.mxu0 %v1237
  %2406 = vmatprep.subr.bf16.mxu0 %v1244
  %2407 = vmatpush1.bf16.msra.mxu0 %v1243
  %2408 = vmatprep.subr.bf16.mxu0 %v1250
  %2409 = vmatpush1.bf16.msra.mxu0 %v1249
  %2410 = vmatprep.subr.bf16.mxu0 %v1256
  %2411 = vmatpush1.bf16.msra.mxu0 %v1255
  %2412 = vmatprep.subr.bf16.mxu0 %v1262
  %2413 = vmatpush1.bf16.msra.mxu0 %v1261
  %2414 = vmatprep.subr.bf16.mxu0 %v1268
  %2415 = vmatpush1.bf16.msra.mxu0 %v1267
  %2416 = vmatprep.subr.bf16.mxu0 %v1274
  %2417 = vmatpush1.bf16.msra.mxu0 %v1273
  %2418 = vmatprep.subr.bf16.mxu0 %v1280
  %2419 = vmatpush1.bf16.msra.mxu0 %v1279
  %2420 = vmatprep.subr.bf16.mxu0 %v1286
  %2421 = vmatpush1.bf16.msra.mxu0 %v1285
  %2422 = vmatprep.subr.bf16.mxu0 %v1292
  %2423 = vmatpush1.bf16.msra.mxu0 %v1291
  %2424 = vmatprep.subr.bf16.mxu0 %v1298
  %2425 = vmatpush1.bf16.msra.mxu0 %v1297
  %2426 = vmatprep.subr.bf16.mxu0 %v1304
  %2427 = vmatpush1.bf16.msra.mxu0 %v1303
  %2428 = vmatprep.subr.bf16.mxu0 %v1310
  %2429 = vmatpush1.bf16.msra.mxu0 %v1309
  %2430 = vmatprep.mubr.bf16.mxu0 %v2315
  %2431 = vmatmul.mubr.bf16.gmra.mrb[0].mxu0 %v2314
  %v2432 = vpop.f32.mrb[0].mxu0
  %v2433 = vadd.f32 0.0, %v2432
  %v2434 = vpop.f32.mrb[0].mxu0
  %v2435 = vadd.f32 0.0, %v2434
  %v2436 = vpop.f32.mrb[0].mxu0
  %v2437 = vpop.f32.mrb[0].mxu0
  %2438 = vdwg.mxu0
  %v2439 = vunpack.c.l.bf16 %v2311
  %v2440 = vunpack.c.h.bf16 %v2311
  %v2441 = vadd.f32 %v2439, %v2351
  %v2442 = vadd.f32 %v2440, %v2353
  %v2443 = vxor.u32 %v2441, 2147483648
  %v2444 = vxor.u32 %v2442, 2147483648
  %v2445 = vmul.f32 %v2443, 1.442695
  %v2446 = vpow.pop %v2445
  %v2447 = vmul.f32 %v2444, 1.442695
  %v2448 = vpow.pop %v2447
  %v2449 = vadd.f32 %v2446, 1.0
  %v2450 = vadd.f32 %v2448, 1.0
  %v2451 = vrcp.pop %v2449
  %v2452 = vmul.f32 1.0, %v2451
  %v2453 = vrcp.pop %v2450
  %v2454 = vmul.f32 1.0, %v2453
  %v2455 = vunpack.c.l.bf16 %v2312
  %v2456 = vunpack.c.h.bf16 %v2312
  %v2457 = vadd.f32 %v2455, %v2392
  %v2458 = vadd.f32 %v2456, %v2394
  %v2459 = vxor.u32 %v2457, 2147483648
  %v2460 = vxor.u32 %v2458, 2147483648
  %v2461 = vmul.f32 %v2459, 1.442695
  %v2462 = vpow.pop %v2461
  %v2463 = vmul.f32 %v2460, 1.442695
  %v2464 = vpow.pop %v2463
  %v2465 = vadd.f32 %v2462, 1.0
  %v2466 = vadd.f32 %v2464, 1.0
  %v2467 = vrcp.pop %v2465
  %v2468 = vmul.f32 1.0, %v2467
  %v2469 = vrcp.pop %v2466
  %v2470 = vmul.f32 1.0, %v2469
  %v2471 = vadd.f32 %v2433, %v917
  %v2472 = vadd.f32 %v2435, %v921
  %v2473 = vmul.f32 %v2452, %v2471
  %v2474 = vmul.f32 %v2454, %v2472
  %v2475 = vunpack.c.l.bf16 %v2313
  %v2476 = vunpack.c.h.bf16 %v2313
  %v2477 = vadd.f32 %v2475, %v2473
  %v2478 = vadd.f32 %v2476, %v2474
  %v2479 = vtanh.pop %v2477
  %v2480 = vtanh.pop %v2478
  %v2481 = vsub.f32 1.0, %v2468
  %v2482 = vsub.f32 1.0, %v2470
  %v2483 = vmul.f32 %v2481, %v2479
  %v2484 = vmul.f32 %v2482, %v2480
  %v2485 = vmul.f32 %v2468, %v2305
  %v2486 = vmul.f32 %v2470, %v2306
  %v2487 = vadd.f32 %v2483, %v2485
  %v2488 = vadd.f32 %v2484, %v2486
  %s2489 = scalar_lea.vmem [#allocation4], 80
  %2490 = vst [vmem:[%s2489] sm:$0xff] %v2487
  %2491 = vst [vmem:[%s2489 + $0x8] sm:$0xff] %v2488
  %s2492 = scalar_lea.vmem [#allocation3], 144
  %v2493 = vld [vmem:[%s2492] sm:$0xff]
  %v2494 = vld [vmem:[%s2492 + $0x8] sm:$0xff]
  %v2495 = vld [vmem:[%s2492 + $0x10] sm:$0xff]
  %v2496 = vpack.c.bf16 %v2487, %v2487
  %v2497 = vpack.c.bf16 %v2488, %v2488
  %2498 = vmatprep.subr.bf16.mxu0 %v1216
  %2499 = vmatpush1.bf16.msra.mxu0 %v1215
  %2500 = vmatprep.subr.bf16.mxu0 %v1222
  %2501 = vmatpush1.bf16.msra.mxu0 %v1221
  %2502 = vmatprep.subr.bf16.mxu0 %v1228
  %2503 = vmatpush1.bf16.msra.mxu0 %v1227
  %2504 = vmatprep.subr.bf16.mxu0 %v1234
  %2505 = vmatpush1.bf16.msra.mxu0 %v1233
  %2506 = vmatprep.subr.bf16.mxu0 %v1240
  %2507 = vmatpush1.bf16.msra.mxu0 %v1239
  %2508 = vmatprep.subr.bf16.mxu0 %v1246
  %2509 = vmatpush1.bf16.msra.mxu0 %v1245
  %2510 = vmatprep.subr.bf16.mxu0 %v1252
  %2511 = vmatpush1.bf16.msra.mxu0 %v1251
  %2512 = vmatprep.subr.bf16.mxu0 %v1258
  %2513 = vmatpush1.bf16.msra.mxu0 %v1257
  %2514 = vmatprep.subr.bf16.mxu0 %v1264
  %2515 = vmatpush1.bf16.msra.mxu0 %v1263
  %2516 = vmatprep.subr.bf16.mxu0 %v1270
  %2517 = vmatpush1.bf16.msra.mxu0 %v1269
  %2518 = vmatprep.subr.bf16.mxu0 %v1276
  %2519 = vmatpush1.bf16.msra.mxu0 %v1275
  %2520 = vmatprep.subr.bf16.mxu0 %v1282
  %2521 = vmatpush1.bf16.msra.mxu0 %v1281
  %2522 = vmatprep.subr.bf16.mxu0 %v1288
  %2523 = vmatpush1.bf16.msra.mxu0 %v1287
  %2524 = vmatprep.subr.bf16.mxu0 %v1294
  %2525 = vmatpush1.bf16.msra.mxu0 %v1293
  %2526 = vmatprep.subr.bf16.mxu0 %v1300
  %2527 = vmatpush1.bf16.msra.mxu0 %v1299
  %2528 = vmatprep.subr.bf16.mxu0 %v1306
  %2529 = vmatpush1.bf16.msra.mxu0 %v1305
  %2530 = vmatprep.mubr.bf16.mxu0 %v2497
  %2531 = vmatmul.mubr.bf16.gmra.mrb[0].mxu0 %v2496
  %v2532 = vpop.f32.mrb[0].mxu0
  %v2533 = vadd.f32 0.0, %v2532
  %v2534 = vpop.f32.mrb[0].mxu0
  %v2535 = vadd.f32 0.0, %v2534
  %v2536 = vpop.f32.mrb[0].mxu0
  %v2537 = vpop.f32.mrb[0].mxu0
  %2538 = vdwg.mxu0
  %2539 = vmatprep.subr.bf16.mxu0 %v1218
  %2540 = vmatpush1.bf16.msra.mxu0 %v1217
  %2541 = vmatprep.subr.bf16.mxu0 %v1224
  %2542 = vmatpush1.bf16.msra.mxu0 %v1223
  %2543 = vmatprep.subr.bf16.mxu0 %v1230
  %2544 = vmatpush1.bf16.msra.mxu0 %v1229
  %2545 = vmatprep.subr.bf16.mxu0 %v1236
  %2546 = vmatpush1.bf16.msra.mxu0 %v1235
  %2547 = vmatprep.subr.bf16.mxu0 %v1242
  %2548 = vmatpush1.bf16.msra.mxu0 %v1241
  %2549 = vmatprep.subr.bf16.mxu0 %v1248
  %2550 = vmatpush1.bf16.msra.mxu0 %v1247
  %2551 = vmatprep.subr.bf16.mxu0 %v1254
  %2552 = vmatpush1.bf16.msra.mxu0 %v1253
  %2553 = vmatprep.subr.bf16.mxu0 %v1260
  %2554 = vmatpush1.bf16.msra.mxu0 %v1259
  %2555 = vmatprep.subr.bf16.mxu0 %v1266
  %2556 = vmatpush1.bf16.msra.mxu0 %v1265
  %2557 = vmatprep.subr.bf16.mxu0 %v1272
  %2558 = vmatpush1.bf16.msra.mxu0 %v1271
  %2559 = vmatprep.subr.bf16.mxu0 %v1278
  %2560 = vmatpush1.bf16.msra.mxu0 %v1277
  %2561 = vmatprep.subr.bf16.mxu0 %v1284
  %2562 = vmatpush1.bf16.msra.mxu0 %v1283
  %2563 = vmatprep.subr.bf16.mxu0 %v1290
  %2564 = vmatpush1.bf16.msra.mxu0 %v1289
  %2565 = vmatprep.subr.bf16.mxu0 %v1296
  %2566 = vmatpush1.bf16.msra.mxu0 %v1295
  %2567 = vmatprep.subr.bf16.mxu0 %v1302
  %2568 = vmatpush1.bf16.msra.mxu0 %v1301
  %2569 = vmatprep.subr.bf16.mxu0 %v1308
  %2570 = vmatpush1.bf16.msra.mxu0 %v1307
  %2571 = vmatprep.mubr.bf16.mxu0 %v2497
  %2572 = vmatmul.mubr.bf16.gmra.mrb[0].mxu0 %v2496
  %v2573 = vpop.f32.mrb[0].mxu0
  %v2574 = vadd.f32 0.0, %v2573
  %v2575 = vpop.f32.mrb[0].mxu0
  %v2576 = vadd.f32 0.0, %v2575
  %v2577 = vpop.f32.mrb[0].mxu0
  %v2578 = vpop.f32.mrb[0].mxu0
  %2579 = vdwg.mxu0
  %2580 = vmatprep.subr.bf16.mxu0 %v1220
  %2581 = vmatpush1.bf16.msra.mxu0 %v1219
  %2582 = vmatprep.subr.bf16.mxu0 %v1226
  %2583 = vmatpush1.bf16.msra.mxu0 %v1225
  %2584 = vmatprep.subr.bf16.mxu0 %v1232
  %2585 = vmatpush1.bf16.msra.mxu0 %v1231
  %2586 = vmatprep.subr.bf16.mxu0 %v1238
  %2587 = vmatpush1.bf16.msra.mxu0 %v1237
  %2588 = vmatprep.subr.bf16.mxu0 %v1244
  %2589 = vmatpush1.bf16.msra.mxu0 %v1243
  %2590 = vmatprep.subr.bf16.mxu0 %v1250
  %2591 = vmatpush1.bf16.msra.mxu0 %v1249
  %2592 = vmatprep.subr.bf16.mxu0 %v1256
  %2593 = vmatpush1.bf16.msra.mxu0 %v1255
  %2594 = vmatprep.subr.bf16.mxu0 %v1262
  %2595 = vmatpush1.bf16.msra.mxu0 %v1261
  %2596 = vmatprep.subr.bf16.mxu0 %v1268
  %2597 = vmatpush1.bf16.msra.mxu0 %v1267
  %2598 = vmatprep.subr.bf16.mxu0 %v1274
  %2599 = vmatpush1.bf16.msra.mxu0 %v1273
  %2600 = vmatprep.subr.bf16.mxu0 %v1280
  %2601 = vmatpush1.bf16.msra.mxu0 %v1279
  %2602 = vmatprep.subr.bf16.mxu0 %v1286
  %2603 = vmatpush1.bf16.msra.mxu0 %v1285
  %2604 = vmatprep.subr.bf16.mxu0 %v1292
  %2605 = vmatpush1.bf16.msra.mxu0 %v1291
  %2606 = vmatprep.subr.bf16.mxu0 %v1298
  %2607 = vmatpush1.bf16.msra.mxu0 %v1297
  %2608 = vmatprep.subr.bf16.mxu0 %v1304
  %2609 = vmatpush1.bf16.msra.mxu0 %v1303
  %2610 = vmatprep.subr.bf16.mxu0 %v1310
  %2611 = vmatpush1.bf16.msra.mxu0 %v1309
  %2612 = vmatprep.mubr.bf16.mxu0 %v2497
  %2613 = vmatmul.mubr.bf16.gmra.mrb[0].mxu0 %v2496
  %v2614 = vpop.f32.mrb[0].mxu0
  %v2615 = vadd.f32 0.0, %v2614
  %v2616 = vpop.f32.mrb[0].mxu0
  %v2617 = vadd.f32 0.0, %v2616
  %v2618 = vpop.f32.mrb[0].mxu0
  %v2619 = vpop.f32.mrb[0].mxu0
  %2620 = vdwg.mxu0
  %v2621 = vunpack.c.l.bf16 %v2493
  %v2622 = vunpack.c.h.bf16 %v2493
  %v2623 = vadd.f32 %v2621, %v2533
  %v2624 = vadd.f32 %v2622, %v2535
  %v2625 = vxor.u32 %v2623, 2147483648
  %v2626 = vxor.u32 %v2624, 2147483648
  %v2627 = vmul.f32 %v2625, 1.442695
  %v2628 = vpow.pop %v2627
  %v2629 = vmul.f32 %v2626, 1.442695
  %v2630 = vpow.pop %v2629
  %v2631 = vadd.f32 %v2628, 1.0
  %v2632 = vadd.f32 %v2630, 1.0
  %v2633 = vrcp.pop %v2631
  %v2634 = vmul.f32 1.0, %v2633
  %v2635 = vrcp.pop %v2632
  %v2636 = vmul.f32 1.0, %v2635
  %v2637 = vunpack.c.l.bf16 %v2494
  %v2638 = vunpack.c.h.bf16 %v2494
  %v2639 = vadd.f32 %v2637, %v2574
  %v2640 = vadd.f32 %v2638, %v2576
  %v2641 = vxor.u32 %v2639, 2147483648
  %v2642 = vxor.u32 %v2640, 2147483648
  %v2643 = vmul.f32 %v2641, 1.442695
  %v2644 = vpow.pop %v2643
  %v2645 = vmul.f32 %v2642, 1.442695
  %v2646 = vpow.pop %v2645
  %v2647 = vadd.f32 %v2644, 1.0
  %v2648 = vadd.f32 %v2646, 1.0
  %v2649 = vrcp.pop %v2647
  %v2650 = vmul.f32 1.0, %v2649
  %v2651 = vrcp.pop %v2648
  %v2652 = vmul.f32 1.0, %v2651
  %v2653 = vadd.f32 %v2615, %v917
  %v2654 = vadd.f32 %v2617, %v921
  %v2655 = vmul.f32 %v2634, %v2653
  %v2656 = vmul.f32 %v2636, %v2654
  %v2657 = vunpack.c.l.bf16 %v2495
  %v2658 = vunpack.c.h.bf16 %v2495
  %v2659 = vadd.f32 %v2657, %v2655
  %v2660 = vadd.f32 %v2658, %v2656
  %v2661 = vtanh.pop %v2659
  %v2662 = vtanh.pop %v2660
  %v2663 = vsub.f32 1.0, %v2650
  %v2664 = vsub.f32 1.0, %v2652
  %v2665 = vmul.f32 %v2663, %v2661
  %v2666 = vmul.f32 %v2664, %v2662
  %v2667 = vmul.f32 %v2650, %v2487
  %v2668 = vmul.f32 %v2652, %v2488
  %v2669 = vadd.f32 %v2665, %v2667
  %v2670 = vadd.f32 %v2666, %v2668
  %s2671 = scalar_lea.vmem [#allocation4], 96
  %2672 = vst [vmem:[%s2671] sm:$0xff] %v2669
  %2673 = vst [vmem:[%s2671 + $0x8] sm:$0xff] %v2670
  %s2674 = scalar_lea.vmem [#allocation3], 168
  %v2675 = vld [vmem:[%s2674] sm:$0xff]
  %v2676 = vld [vmem:[%s2674 + $0x8] sm:$0xff]
  %v2677 = vld [vmem:[%s2674 + $0x10] sm:$0xff]
  %v2678 = vpack.c.bf16 %v2669, %v2669
  %v2679 = vpack.c.bf16 %v2670, %v2670
  %2680 = vmatprep.subr.bf16.mxu0 %v1216
  %2681 = vmatpush1.bf16.msra.mxu0 %v1215
  %2682 = vmatprep.subr.bf16.mxu0 %v1222
  %2683 = vmatpush1.bf16.msra.mxu0 %v1221
  %2684 = vmatprep.subr.bf16.mxu0 %v1228
  %2685 = vmatpush1.bf16.msra.mxu0 %v1227
  %2686 = vmatprep.subr.bf16.mxu0 %v1234
  %2687 = vmatpush1.bf16.msra.mxu0 %v1233
  %2688 = vmatprep.subr.bf16.mxu0 %v1240
  %2689 = vmatpush1.bf16.msra.mxu0 %v1239
  %2690 = vmatprep.subr.bf16.mxu0 %v1246
  %2691 = vmatpush1.bf16.msra.mxu0 %v1245
  %2692 = vmatprep.subr.bf16.mxu0 %v1252
  %2693 = vmatpush1.bf16.msra.mxu0 %v1251
  %2694 = vmatprep.subr.bf16.mxu0 %v1258
  %2695 = vmatpush1.bf16.msra.mxu0 %v1257
  %2696 = vmatprep.subr.bf16.mxu0 %v1264
  %2697 = vmatpush1.bf16.msra.mxu0 %v1263
  %2698 = vmatprep.subr.bf16.mxu0 %v1270
  %2699 = vmatpush1.bf16.msra.mxu0 %v1269
  %2700 = vmatprep.subr.bf16.mxu0 %v1276
  %2701 = vmatpush1.bf16.msra.mxu0 %v1275
  %2702 = vmatprep.subr.bf16.mxu0 %v1282
  %2703 = vmatpush1.bf16.msra.mxu0 %v1281
  %2704 = vmatprep.subr.bf16.mxu0 %v1288
  %2705 = vmatpush1.bf16.msra.mxu0 %v1287
  %2706 = vmatprep.subr.bf16.mxu0 %v1294
  %2707 = vmatpush1.bf16.msra.mxu0 %v1293
  %2708 = vmatprep.subr.bf16.mxu0 %v1300
  %2709 = vmatpush1.bf16.msra.mxu0 %v1299
  %2710 = vmatprep.subr.bf16.mxu0 %v1306
  %2711 = vmatpush1.bf16.msra.mxu0 %v1305
  %2712 = vmatprep.mubr.bf16.mxu0 %v2679
  %2713 = vmatmul.mubr.bf16.gmra.mrb[0].mxu0 %v2678
  %v2714 = vpop.f32.mrb[0].mxu0
  %v2715 = vadd.f32 0.0, %v2714
  %v2716 = vpop.f32.mrb[0].mxu0
  %v2717 = vadd.f32 0.0, %v2716
  %v2718 = vpop.f32.mrb[0].mxu0
  %v2719 = vpop.f32.mrb[0].mxu0
  %2720 = vdwg.mxu0
  %2721 = vmatprep.subr.bf16.mxu0 %v1218
  %2722 = vmatpush1.bf16.msra.mxu0 %v1217
  %2723 = vmatprep.subr.bf16.mxu0 %v1224
  %2724 = vmatpush1.bf16.msra.mxu0 %v1223
  %2725 = vmatprep.subr.bf16.mxu0 %v1230
  %2726 = vmatpush1.bf16.msra.mxu0 %v1229
  %2727 = vmatprep.subr.bf16.mxu0 %v1236
  %2728 = vmatpush1.bf16.msra.mxu0 %v1235
  %2729 = vmatprep.subr.bf16.mxu0 %v1242
  %2730 = vmatpush1.bf16.msra.mxu0 %v1241
  %2731 = vmatprep.subr.bf16.mxu0 %v1248
  %2732 = vmatpush1.bf16.msra.mxu0 %v1247
  %2733 = vmatprep.subr.bf16.mxu0 %v1254
  %2734 = vmatpush1.bf16.msra.mxu0 %v1253
  %2735 = vmatprep.subr.bf16.mxu0 %v1260
  %2736 = vmatpush1.bf16.msra.mxu0 %v1259
  %2737 = vmatprep.subr.bf16.mxu0 %v1266
  %2738 = vmatpush1.bf16.msra.mxu0 %v1265
  %2739 = vmatprep.subr.bf16.mxu0 %v1272
  %2740 = vmatpush1.bf16.msra.mxu0 %v1271
  %2741 = vmatprep.subr.bf16.mxu0 %v1278
  %2742 = vmatpush1.bf16.msra.mxu0 %v1277
  %2743 = vmatprep.subr.bf16.mxu0 %v1284
  %2744 = vmatpush1.bf16.msra.mxu0 %v1283
  %2745 = vmatprep.subr.bf16.mxu0 %v1290
  %2746 = vmatpush1.bf16.msra.mxu0 %v1289
  %2747 = vmatprep.subr.bf16.mxu0 %v1296
  %2748 = vmatpush1.bf16.msra.mxu0 %v1295
  %2749 = vmatprep.subr.bf16.mxu0 %v1302
  %2750 = vmatpush1.bf16.msra.mxu0 %v1301
  %2751 = vmatprep.subr.bf16.mxu0 %v1308
  %2752 = vmatpush1.bf16.msra.mxu0 %v1307
  %2753 = vmatprep.mubr.bf16.mxu0 %v2679
  %2754 = vmatmul.mubr.bf16.gmra.mrb[0].mxu0 %v2678
  %v2755 = vpop.f32.mrb[0].mxu0
  %v2756 = vadd.f32 0.0, %v2755
  %v2757 = vpop.f32.mrb[0].mxu0
  %v2758 = vadd.f32 0.0, %v2757
  %v2759 = vpop.f32.mrb[0].mxu0
  %v2760 = vpop.f32.mrb[0].mxu0
  %2761 = vdwg.mxu0
  %2762 = vmatprep.subr.bf16.mxu0 %v1220
  %2763 = vmatpush1.bf16.msra.mxu0 %v1219
  %2764 = vmatprep.subr.bf16.mxu0 %v1226
  %2765 = vmatpush1.bf16.msra.mxu0 %v1225
  %2766 = vmatprep.subr.bf16.mxu0 %v1232
  %2767 = vmatpush1.bf16.msra.mxu0 %v1231
  %2768 = vmatprep.subr.bf16.mxu0 %v1238
  %2769 = vmatpush1.bf16.msra.mxu0 %v1237
  %2770 = vmatprep.subr.bf16.mxu0 %v1244
  %2771 = vmatpush1.bf16.msra.mxu0 %v1243
  %2772 = vmatprep.subr.bf16.mxu0 %v1250
  %2773 = vmatpush1.bf16.msra.mxu0 %v1249
  %2774 = vmatprep.subr.bf16.mxu0 %v1256
  %2775 = vmatpush1.bf16.msra.mxu0 %v1255
  %2776 = vmatprep.subr.bf16.mxu0 %v1262
  %2777 = vmatpush1.bf16.msra.mxu0 %v1261
  %2778 = vmatprep.subr.bf16.mxu0 %v1268
  %2779 = vmatpush1.bf16.msra.mxu0 %v1267
  %2780 = vmatprep.subr.bf16.mxu0 %v1274
  %2781 = vmatpush1.bf16.msra.mxu0 %v1273
  %2782 = vmatprep.subr.bf16.mxu0 %v1280
  %2783 = vmatpush1.bf16.msra.mxu0 %v1279
  %2784 = vmatprep.subr.bf16.mxu0 %v1286
  %2785 = vmatpush1.bf16.msra.mxu0 %v1285
  %2786 = vmatprep.subr.bf16.mxu0 %v1292
  %2787 = vmatpush1.bf16.msra.mxu0 %v1291
  %2788 = vmatprep.subr.bf16.mxu0 %v1298
  %2789 = vmatpush1.bf16.msra.mxu0 %v1297
  %2790 = vmatprep.subr.bf16.mxu0 %v1304
  %2791 = vmatpush1.bf16.msra.mxu0 %v1303
  %2792 = vmatprep.subr.bf16.mxu0 %v1310
  %2793 = vmatpush1.bf16.msra.mxu0 %v1309
  %2794 = vmatprep.mubr.bf16.mxu0 %v2679
  %2795 = vmatmul.mubr.bf16.gmra.mrb[0].mxu0 %v2678
  %v2796 = vpop.f32.mrb[0].mxu0
  %v2797 = vadd.f32 0.0, %v2796
  %v2798 = vpop.f32.mrb[0].mxu0
  %v2799 = vadd.f32 0.0, %v2798
  %v2800 = vpop.f32.mrb[0].mxu0
  %v2801 = vpop.f32.mrb[0].mxu0
  %2802 = vdwg.mxu0
  %v2803 = vunpack.c.l.bf16 %v2675
  %v2804 = vunpack.c.h.bf16 %v2675
  %v2805 = vadd.f32 %v2803, %v2715
  %v2806 = vadd.f32 %v2804, %v2717
  %v2807 = vxor.u32 %v2805, 2147483648
  %v2808 = vxor.u32 %v2806, 2147483648
  %v2809 = vmul.f32 %v2807, 1.442695
  %v2810 = vpow.pop %v2809
  %v2811 = vmul.f32 %v2808, 1.442695
  %v2812 = vpow.pop %v2811
  %v2813 = vadd.f32 %v2810, 1.0
  %v2814 = vadd.f32 %v2812, 1.0
  %v2815 = vrcp.pop %v2813
  %v2816 = vmul.f32 1.0, %v2815
  %v2817 = vrcp.pop %v2814
  %v2818 = vmul.f32 1.0, %v2817
  %v2819 = vunpack.c.l.bf16 %v2676
  %v2820 = vunpack.c.h.bf16 %v2676
  %v2821 = vadd.f32 %v2819, %v2756
  %v2822 = vadd.f32 %v2820, %v2758
  %v2823 = vxor.u32 %v2821, 2147483648
  %v2824 = vxor.u32 %v2822, 2147483648
  %v2825 = vmul.f32 %v2823, 1.442695
  %v2826 = vpow.pop %v2825
  %v2827 = vmul.f32 %v2824, 1.442695
  %v2828 = vpow.pop %v2827
  %v2829 = vadd.f32 %v2826, 1.0
  %v2830 = vadd.f32 %v2828, 1.0
  %v2831 = vrcp.pop %v2829
  %v2832 = vmul.f32 1.0, %v2831
  %v2833 = vrcp.pop %v2830
  %v2834 = vmul.f32 1.0, %v2833
  %v2835 = vadd.f32 %v2797, %v917
  %v2836 = vadd.f32 %v2799, %v921
  %v2837 = vmul.f32 %v2816, %v2835
  %v2838 = vmul.f32 %v2818, %v2836
  %v2839 = vunpack.c.l.bf16 %v2677
  %v2840 = vunpack.c.h.bf16 %v2677
  %v2841 = vadd.f32 %v2839, %v2837
  %v2842 = vadd.f32 %v2840, %v2838
  %v2843 = vtanh.pop %v2841
  %v2844 = vtanh.pop %v2842
  %v2845 = vsub.f32 1.0, %v2832
  %v2846 = vsub.f32 1.0, %v2834
  %v2847 = vmul.f32 %v2845, %v2843
  %v2848 = vmul.f32 %v2846, %v2844
  %v2849 = vmul.f32 %v2832, %v2669
  %v2850 = vmul.f32 %v2834, %v2670
  %v2851 = vadd.f32 %v2847, %v2849
  %v2852 = vadd.f32 %v2848, %v2850
  %s2853 = scalar_lea.vmem [#allocation4], 112
  %2854 = vst [vmem:[%s2853] sm:$0xff] %v2851
  %2855 = vst [vmem:[%s2853 + $0x8] sm:$0xff] %v2852
  %v2856 = vld [vmem:[%s1] sm:$0xff]
  %v2857 = vld [vmem:[#allocation4] sm:$0xff]
  %v2858 = vld [vmem:[#allocation4 + $0x10] sm:$0xff]
  %v2859 = vld [vmem:[#allocation4 + $0x20] sm:$0xff]
  %v2860 = vld [vmem:[#allocation4 + $0x30] sm:$0xff]
  %v2861 = vld [vmem:[#allocation4 + $0x40] sm:$0xff]
  %v2862 = vld [vmem:[#allocation4 + $0x50] sm:$0xff]
  %v2863 = vld [vmem:[#allocation4 + $0x60] sm:$0xff]
  %v2864 = vld [vmem:[#allocation4 + $0x70] sm:$0xff]
  %v2865 = vld [vmem:[%s6] sm:$0x1]
  %v2867 = vlaneseq
  %v2868 = vshrl.u32 %v2867, 7
  %v2869 = vsub.s32 0, %v2868
  %v2870 = vrot.slane %v2865, %v2869
  %v2872 = vmul.f32 %v2857, %v2870
  %v2873 = vmul.f32 %v2858, %v2870
  %v2874 = vmul.f32 %v2859, %v2870
  %v2875 = vmul.f32 %v2860, %v2870
  %v2876 = vmul.f32 %v2861, %v2870
  %v2877 = vmul.f32 %v2862, %v2870
  %v2878 = vmul.f32 %v2863, %v2870
  %v2879 = vmul.f32 %v2864, %v2870
  %2880 = vadd.xlane.f32.xlu0 %v2872
  %v2881 = vpop.xlane.xlu0 %2880
  %2882 = vadd.xlane.f32.xlu0 %v2873
  %v2883 = vpop.xlane.xlu0 %2882
  %2884 = vadd.xlane.f32.xlu0 %v2874
  %v2885 = vpop.xlane.xlu0 %2884
  %2886 = vadd.xlane.f32.xlu0 %v2875
  %v2887 = vpop.xlane.xlu0 %2886
  %2888 = vadd.xlane.f32.xlu0 %v2876
  %v2889 = vpop.xlane.xlu0 %2888
  %2890 = vadd.xlane.f32.xlu0 %v2877
  %v2891 = vpop.xlane.xlu0 %2890
  %2892 = vadd.xlane.f32.xlu0 %v2878
  %v2893 = vpop.xlane.xlu0 %2892
  %2894 = vadd.xlane.f32.xlu0 %v2879
  %v2895 = vpop.xlane.xlu0 %2894
  %v2896 = vld [vmem:[#allocation5] sm:$0x1]
  %v2898 = vlaneseq
  %v2899 = vshrl.u32 %v2898, 7
  %v2900 = vsub.s32 0, %v2899
  %v2901 = vrot.slane %v2896, %v2900
  %2902 = vset.pattern.permute.xlu0 0
  %2903 = vperm.xlu0 %2902, %v2901
  %v2904 = vpop.permute.xlu0 %2903
  %v2906 = vadd.f32 %v2881, %v2904
  %v2907 = vadd.f32 %v2883, %v2904
  %v2908 = vadd.f32 %v2885, %v2904
  %v2909 = vadd.f32 %v2887, %v2904
  %v2910 = vadd.f32 %v2889, %v2904
  %v2911 = vadd.f32 %v2891, %v2904
  %v2912 = vadd.f32 %v2893, %v2904
  %v2913 = vadd.f32 %v2895, %v2904
  %vm2914 = vcmp.gt.f32.partialorder %v2856, 0.0
  %v2923 = vlaneseq
  %v2924 = vand.u32 %v2923, 127
  %v2925 = vlaneseq
  %v2926 = vshrl.u32 %v2925, 7
  %v2927 = vsub.s32 %v2924, %v2926
  %v2928 = vrot.slane %v2906, %v2927
  %v2929 = vlaneseq
  %v2930 = vshrl.u32 %v2929, 7
  %v2931 = vsub.s32 %v2924, %v2930
  %v2932 = vrot.slane %v2907, %v2931
  %v2933 = vlaneseq
  %v2934 = vshrl.u32 %v2933, 7
  %v2935 = vsub.s32 %v2924, %v2934
  %v2936 = vrot.slane %v2908, %v2935
  %v2937 = vlaneseq
  %v2938 = vshrl.u32 %v2937, 7
  %v2939 = vsub.s32 %v2924, %v2938
  %v2940 = vrot.slane %v2909, %v2939
  %v2941 = vlaneseq
  %v2942 = vshrl.u32 %v2941, 7
  %v2943 = vsub.s32 %v2924, %v2942
  %v2944 = vrot.slane %v2910, %v2943
  %v2945 = vlaneseq
  %v2946 = vshrl.u32 %v2945, 7
  %v2947 = vsub.s32 %v2924, %v2946
  %v2948 = vrot.slane %v2911, %v2947
  %v2949 = vlaneseq
  %v2950 = vshrl.u32 %v2949, 7
  %v2951 = vsub.s32 %v2924, %v2950
  %v2952 = vrot.slane %v2912, %v2951
  %v2953 = vlaneseq
  %v2954 = vshrl.u32 %v2953, 7
  %v2955 = vsub.s32 %v2924, %v2954
  %v2956 = vrot.slane %v2913, %v2955
  %vm2957 = vcmask 1041409
  %v2958 = vsel %vm2957, %v2932, %v2928
  %vm2959 = vcmask 1042434
  %v2960 = vsel %vm2959, %v2936, %v2958
  %vm2961 = vcmask 1043459
  %v2962 = vsel %vm2961, %v2940, %v2960
  %vm2963 = vcmask 1044484
  %v2964 = vsel %vm2963, %v2944, %v2962
  %vm2965 = vcmask 1045509
  %v2966 = vsel %vm2965, %v2948, %v2964
  %vm2967 = vcmask 1046534
  %v2968 = vsel %vm2967, %v2952, %v2966
  %vm2969 = vcmask 1047559
  %v2970 = vsel %vm2969, %v2956, %v2968
  %v2972 = vsel %vm2914, %v2970, -1e+30
  %vm2973 = vcmask 64512
  %v2974 = vsel %vm2973, %v2972, -inf
  %v2975 = vrot.slane %v2974, 4
  %v2976 = vmax.f32 %v2974, %v2975
  %v2977 = vrot.slane %v2976, 2
  %v2978 = vmax.f32 %v2976, %v2977
  %v2979 = vrot.slane %v2978, 1
  %v2980 = vmax.f32 %v2978, %v2979
  %2983 = vbcast.lane.b32.xlu0 %v2980, 256
  %v2984 = vpop.permute.xlu0 %2983
  %v2986 = vsub.f32 %v2906, %v2984
  %v2987 = vsub.f32 %v2907, %v2984
  %v2988 = vsub.f32 %v2908, %v2984
  %v2989 = vsub.f32 %v2909, %v2984
  %v2990 = vsub.f32 %v2910, %v2984
  %v2991 = vsub.f32 %v2911, %v2984
  %v2992 = vsub.f32 %v2912, %v2984
  %v2993 = vsub.f32 %v2913, %v2984
  %v2994 = vmul.f32 %v2986, 1.442695
  %v2995 = vpow.pop %v2994
  %v2996 = vmul.f32 %v2987, 1.442695
  %v2997 = vpow.pop %v2996
  %v2998 = vmul.f32 %v2988, 1.442695
  %v2999 = vpow.pop %v2998
  %v3000 = vmul.f32 %v2989, 1.442695
  %v3001 = vpow.pop %v3000
  %v3002 = vmul.f32 %v2990, 1.442695
  %v3003 = vpow.pop %v3002
  %v3004 = vmul.f32 %v2991, 1.442695
  %v3005 = vpow.pop %v3004
  %v3006 = vmul.f32 %v2992, 1.442695
  %v3007 = vpow.pop %v3006
  %v3008 = vmul.f32 %v2993, 1.442695
  %v3009 = vpow.pop %v3008
  %3018 = vset.pattern.permute.xlu0 0
  %3019 = vperm.xlu0 %3018, %v2995
  %v3020 = vpop.permute.xlu0 %3019
  %3021 = vset.pattern.permute.xlu0 0
  %3022 = vperm.xlu0 %3021, %v2997
  %v3023 = vpop.permute.xlu0 %3022
  %3024 = vset.pattern.permute.xlu0 0
  %3025 = vperm.xlu0 %3024, %v2999
  %v3026 = vpop.permute.xlu0 %3025
  %3027 = vset.pattern.permute.xlu0 0
  %3028 = vperm.xlu0 %3027, %v3001
  %v3029 = vpop.permute.xlu0 %3028
  %3030 = vset.pattern.permute.xlu0 0
  %3031 = vperm.xlu0 %3030, %v3003
  %v3032 = vpop.permute.xlu0 %3031
  %3033 = vset.pattern.permute.xlu0 0
  %3034 = vperm.xlu0 %3033, %v3005
  %v3035 = vpop.permute.xlu0 %3034
  %3036 = vset.pattern.permute.xlu0 0
  %3037 = vperm.xlu0 %3036, %v3007
  %v3038 = vpop.permute.xlu0 %3037
  %3039 = vset.pattern.permute.xlu0 0
  %3040 = vperm.xlu0 %3039, %v3009
  %v3041 = vpop.permute.xlu0 %3040
  %v3042 = vlaneseq
  %v3043 = vshrl.u32 %v3042, 7
  %v3044 = vsub.s32 %v2924, %v3043
  %v3045 = vrot.slane %v3020, %v3044
  %v3046 = vlaneseq
  %v3047 = vshrl.u32 %v3046, 7
  %v3048 = vsub.s32 %v2924, %v3047
  %v3049 = vrot.slane %v3023, %v3048
  %v3050 = vlaneseq
  %v3051 = vshrl.u32 %v3050, 7
  %v3052 = vsub.s32 %v2924, %v3051
  %v3053 = vrot.slane %v3026, %v3052
  %v3054 = vlaneseq
  %v3055 = vshrl.u32 %v3054, 7
  %v3056 = vsub.s32 %v2924, %v3055
  %v3057 = vrot.slane %v3029, %v3056
  %v3058 = vlaneseq
  %v3059 = vshrl.u32 %v3058, 7
  %v3060 = vsub.s32 %v2924, %v3059
  %v3061 = vrot.slane %v3032, %v3060
  %v3062 = vlaneseq
  %v3063 = vshrl.u32 %v3062, 7
  %v3064 = vsub.s32 %v2924, %v3063
  %v3065 = vrot.slane %v3035, %v3064
  %v3066 = vlaneseq
  %v3067 = vshrl.u32 %v3066, 7
  %v3068 = vsub.s32 %v2924, %v3067
  %v3069 = vrot.slane %v3038, %v3068
  %v3070 = vlaneseq
  %v3071 = vshrl.u32 %v3070, 7
  %v3072 = vsub.s32 %v2924, %v3071
  %v3073 = vrot.slane %v3041, %v3072
  %v3074 = vsel %vm2957, %v3049, %v3045
  %v3075 = vsel %vm2959, %v3053, %v3074
  %v3076 = vsel %vm2961, %v3057, %v3075
  %v3077 = vsel %vm2963, %v3061, %v3076
  %v3078 = vsel %vm2965, %v3065, %v3077
  %v3079 = vsel %vm2967, %v3069, %v3078
  %v3080 = vsel %vm2969, %v3073, %v3079
  %v3082 = vsel %vm2914, %v3080, 0.0
  %v3083 = vsel %vm2973, %v3082, 0.0
  %v3084 = vrot.slane %v3083, 4
  %v3085 = vadd.f32 %v3083, %v3084
  %v3086 = vrot.slane %v3085, 2
  %v3087 = vadd.f32 %v3085, %v3086
  %v3088 = vrot.slane %v3087, 1
  %v3089 = vadd.f32 %v3087, %v3088
  %v3090 = vmax.f32 %v3089, 1e-30
  %v3091 = vrcp.pop %v3090
  %v3092 = vmul.f32 %v3082, %v3091
  %3093 = vst.msk [vmem:[%s13] sm:$0xff] %vm2973, %v3092
  %v3094 = vld [vmem:[#allocation4 + $0x8] sm:$0xff]
  %v3095 = vld [vmem:[#allocation4 + $0x18] sm:$0xff]
  %v3096 = vld [vmem:[#allocation4 + $0x28] sm:$0xff]
  %v3097 = vld [vmem:[#allocation4 + $0x38] sm:$0xff]
  %v3098 = vld [vmem:[#allocation4 + $0x48] sm:$0xff]
  %v3099 = vld [vmem:[#allocation4 + $0x58] sm:$0xff]
  %v3100 = vld [vmem:[#allocation4 + $0x68] sm:$0xff]
  %v3101 = vld [vmem:[#allocation4 + $0x78] sm:$0xff]
  %v3102 = vpack.c.bf16 %v3095, %v3094
  %v3103 = vpack.c.bf16 %v3097, %v3096
  %v3104 = vpack.c.bf16 %v3099, %v3098
  %v3105 = vpack.c.bf16 %v3101, %v3100
  %v3106 = vld [vmem:[%s8] sm:$0xf]
  %v3107 = vld [vmem:[%s8 + $0x4] sm:$0xf]
  %v3108 = vld [vmem:[%s8 + $0x8] sm:$0xf]
  %v3109 = vld [vmem:[%s8 + $0xc] sm:$0xf]
  %v3110 = vld [vmem:[%s8 + $0x10] sm:$0xf]
  %v3111 = vld [vmem:[%s8 + $0x14] sm:$0xf]
  %v3112 = vld [vmem:[%s8 + $0x18] sm:$0xf]
  %v3113 = vld [vmem:[%s8 + $0x1c] sm:$0xf]
  %v3114 = vld [vmem:[%s8 + $0x20] sm:$0xf]
  %v3115 = vld [vmem:[%s8 + $0x24] sm:$0xf]
  %v3116 = vld [vmem:[%s8 + $0x28] sm:$0xf]
  %v3117 = vld [vmem:[%s8 + $0x2c] sm:$0xf]
  %v3118 = vld [vmem:[%s8 + $0x30] sm:$0xf]
  %v3119 = vld [vmem:[%s8 + $0x34] sm:$0xf]
  %v3120 = vld [vmem:[%s8 + $0x38] sm:$0xf]
  %v3121 = vld [vmem:[%s8 + $0x3c] sm:$0xf]
  %v3122 = vld [vmem:[%s9] sm:$0x1]
  %v3124 = vlaneseq
  %v3125 = vshrl.u32 %v3124, 7
  %v3126 = vsub.s32 0, %v3125
  %v3127 = vrot.slane %v3122, %v3126
  %v3145 = vunpack.c.l.b16 %v3106
  %v3146 = vunpack.c.l.b16 %v3107
  %v3147 = vunpack.c.l.b16 %v3108
  %v3148 = vunpack.c.l.b16 %v3109
  %v3149 = vunpack.c.l.b16 %v3110
  %v3150 = vunpack.c.l.b16 %v3111
  %v3151 = vunpack.c.l.b16 %v3112
  %v3152 = vunpack.c.l.b16 %v3113
  %v3153 = vunpack.c.l.b16 %v3114
  %v3154 = vunpack.c.l.b16 %v3115
  %v3155 = vunpack.c.l.b16 %v3116
  %v3156 = vunpack.c.l.b16 %v3117
  %v3157 = vunpack.c.l.b16 %v3118
  %v3158 = vunpack.c.l.b16 %v3119
  %v3159 = vunpack.c.l.b16 %v3120
  %v3160 = vunpack.c.l.b16 %v3121
  %v3161 = vpack.c.b16 %v3146, %v3145
  %v3162 = vpack.c.b16 %v3148, %v3147
  %v3163 = vpack.c.b16 %v3150, %v3149
  %v3164 = vpack.c.b16 %v3152, %v3151
  %v3165 = vpack.c.b16 %v3154, %v3153
  %v3166 = vpack.c.b16 %v3156, %v3155
  %v3167 = vpack.c.b16 %v3158, %v3157
  %v3168 = vpack.c.b16 %v3160, %v3159
  %3177 = vmatprep.subr.bf16.mxu0 0
  %3178 = vmatpush1.bf16.msra.mxu0 %v3161
  %3179 = vmatprep.subr.bf16.mxu0 0
  %3180 = vmatpush1.bf16.msra.mxu0 %v3162
  %3181 = vmatprep.subr.bf16.mxu0 0
  %3182 = vmatpush1.bf16.msra.mxu0 %v3163
  %3183 = vmatprep.subr.bf16.mxu0 0
  %3184 = vmatpush1.bf16.msra.mxu0 %v3164
  %3185 = vmatprep.subr.bf16.mxu0 0
  %3186 = vmatpush1.bf16.msra.mxu0 %v3165
  %3187 = vmatprep.subr.bf16.mxu0 0
  %3188 = vmatpush1.bf16.msra.mxu0 %v3166
  %3189 = vmatprep.subr.bf16.mxu0 0
  %3190 = vmatpush1.bf16.msra.mxu0 %v3167
  %3191 = vmatprep.subr.bf16.mxu0 0
  %3192 = vmatpush1.bf16.msra.mxu0 %v3168
  %3193 = vmatprep.subr.bf16.mxu0 0
  %3194 = vmatpush1.bf16.msra.mxu0 0
  %3195 = vmatprep.subr.bf16.mxu0 0
  %3196 = vmatpush1.bf16.msra.mxu0 0
  %3197 = vmatprep.subr.bf16.mxu0 0
  %3198 = vmatpush1.bf16.msra.mxu0 0
  %3199 = vmatprep.subr.bf16.mxu0 0
  %3200 = vmatpush1.bf16.msra.mxu0 0
  %3201 = vmatprep.subr.bf16.mxu0 0
  %3202 = vmatpush1.bf16.msra.mxu0 0
  %3203 = vmatprep.subr.bf16.mxu0 0
  %3204 = vmatpush1.bf16.msra.mxu0 0
  %3205 = vmatprep.subr.bf16.mxu0 0
  %3206 = vmatpush1.bf16.msra.mxu0 0
  %3207 = vmatprep.subr.bf16.mxu0 0
  %3208 = vmatpush1.bf16.msra.mxu0 0
  %3209 = vmatprep.mubr.bf16.mxu0 0
  %3210 = vmatmul.mubr.bf16.gmra.mrb[0].mxu0 %v3102
  %v3211 = vpop.f32.mrb[0].mxu0
  %v3212 = vadd.f32 %v3127, %v3211
  %v3213 = vpop.f32.mrb[0].mxu0
  %v3214 = vpop.f32.mrb[0].mxu0
  %v3215 = vadd.f32 %v3127, %v3214
  %v3216 = vpop.f32.mrb[0].mxu0
  %3217 = vmatprep.mubr.bf16.mxu0 0
  %3218 = vmatmul.mubr.bf16.gmra.mrb[0].mxu0 %v3103
  %v3219 = vpop.f32.mrb[0].mxu0
  %v3220 = vadd.f32 %v3127, %v3219
  %v3221 = vpop.f32.mrb[0].mxu0
  %v3222 = vpop.f32.mrb[0].mxu0
  %v3223 = vadd.f32 %v3127, %v3222
  %v3224 = vpop.f32.mrb[0].mxu0
  %3225 = vmatprep.mubr.bf16.mxu0 0
  %3226 = vmatmul.mubr.bf16.gmra.mrb[0].mxu0 %v3104
  %v3227 = vpop.f32.mrb[0].mxu0
  %v3228 = vadd.f32 %v3127, %v3227
  %v3229 = vpop.f32.mrb[0].mxu0
  %v3230 = vpop.f32.mrb[0].mxu0
  %v3231 = vadd.f32 %v3127, %v3230
  %v3232 = vpop.f32.mrb[0].mxu0
  %3233 = vmatprep.mubr.bf16.mxu0 0
  %3234 = vmatmul.mubr.bf16.gmra.mrb[0].mxu0 %v3105
  %v3235 = vpop.f32.mrb[0].mxu0
  %v3236 = vadd.f32 %v3127, %v3235
  %v3237 = vpop.f32.mrb[0].mxu0
  %v3238 = vpop.f32.mrb[0].mxu0
  %v3239 = vadd.f32 %v3127, %v3238
  %v3240 = vpop.f32.mrb[0].mxu0
  %3241 = vdwg.mxu0
  %v3242 = vlaneseq
  %v3243 = vshrl.u32 %v3242, 7
  %v3244 = vsub.s32 0, %v3243
  %v3245 = vrot.slane %v2856, %v3244
  %3247 = vbcast.lane.b32.xlu0 %v3245, 256
  %v3248 = vpop.permute.xlu0 %3247
  %v3249 = vlaneseq
  %v3250 = vshrl.u32 %v3249, 7
  %v3251 = vsub.s32 1, %v3250
  %v3252 = vrot.slane %v2856, %v3251
  %3254 = vbcast.lane.b32.xlu0 %v3252, 256
  %v3255 = vpop.permute.xlu0 %3254
  %v3256 = vlaneseq
  %v3257 = vshrl.u32 %v3256, 7
  %v3258 = vsub.s32 2, %v3257
  %v3259 = vrot.slane %v2856, %v3258
  %3261 = vbcast.lane.b32.xlu0 %v3259, 256
  %v3262 = vpop.permute.xlu0 %3261
  %v3263 = vlaneseq
  %v3264 = vshrl.u32 %v3263, 7
  %v3265 = vsub.s32 3, %v3264
  %v3266 = vrot.slane %v2856, %v3265
  %3268 = vbcast.lane.b32.xlu0 %v3266, 256
  %v3269 = vpop.permute.xlu0 %3268
  %v3270 = vlaneseq
  %v3271 = vshrl.u32 %v3270, 7
  %v3272 = vsub.s32 4, %v3271
  %v3273 = vrot.slane %v2856, %v3272
  %3275 = vbcast.lane.b32.xlu0 %v3273, 256
  %v3276 = vpop.permute.xlu0 %3275
  %v3277 = vlaneseq
  %v3278 = vshrl.u32 %v3277, 7
  %v3279 = vsub.s32 5, %v3278
  %v3280 = vrot.slane %v2856, %v3279
  %3282 = vbcast.lane.b32.xlu0 %v3280, 256
  %v3283 = vpop.permute.xlu0 %3282
  %v3284 = vlaneseq
  %v3285 = vshrl.u32 %v3284, 7
  %v3286 = vsub.s32 6, %v3285
  %v3287 = vrot.slane %v2856, %v3286
  %3289 = vbcast.lane.b32.xlu0 %v3287, 256
  %v3290 = vpop.permute.xlu0 %3289
  %v3291 = vlaneseq
  %v3292 = vshrl.u32 %v3291, 7
  %v3293 = vsub.s32 7, %v3292
  %v3294 = vrot.slane %v2856, %v3293
  %3296 = vbcast.lane.b32.xlu0 %v3294, 256
  %v3297 = vpop.permute.xlu0 %3296
  %v3298 = vmul.f32 %v3212, %v3248
  %v3299 = vmul.f32 %v3215, %v3255
  %v3300 = vmul.f32 %v3220, %v3262
  %v3301 = vmul.f32 %v3223, %v3269
  %v3302 = vmul.f32 %v3228, %v3276
  %v3303 = vmul.f32 %v3231, %v3283
  %v3304 = vmul.f32 %v3236, %v3290
  %v3305 = vmul.f32 %v3239, %v3297
  %v3306 = vtanh.pop %v3298
  %v3307 = vtanh.pop %v3299
  %v3308 = vtanh.pop %v3300
  %v3309 = vtanh.pop %v3301
  %v3310 = vtanh.pop %v3302
  %v3311 = vtanh.pop %v3303
  %v3312 = vtanh.pop %v3304
  %v3313 = vtanh.pop %v3305
  %v3314 = vpack.c.bf16 %v3306, %v3306
  %v3315 = vpack.c.bf16 %v3307, %v3307
  %v3316 = vpack.c.bf16 %v3308, %v3308
  %v3317 = vpack.c.bf16 %v3309, %v3309
  %v3318 = vpack.c.bf16 %v3310, %v3310
  %v3319 = vpack.c.bf16 %v3311, %v3311
  %v3320 = vpack.c.bf16 %v3312, %v3312
  %v3321 = vpack.c.bf16 %v3313, %v3313
  %vm3322 = vcmask 257024
  %3323 = vst.msk [vmem:[%s14] sm:$0xf] %vm3322, %v3314
  %3324 = vst.msk [vmem:[%s14 + $0x4] sm:$0xf] %vm3322, %v3315
  %3325 = vst.msk [vmem:[%s14 + $0x8] sm:$0xf] %vm3322, %v3316
  %3326 = vst.msk [vmem:[%s14 + $0xc] sm:$0xf] %vm3322, %v3317
  %3327 = vst.msk [vmem:[%s14 + $0x10] sm:$0xf] %vm3322, %v3318
  %3328 = vst.msk [vmem:[%s14 + $0x14] sm:$0xf] %vm3322, %v3319
  %3329 = vst.msk [vmem:[%s14 + $0x18] sm:$0xf] %vm3322, %v3320
  %3330 = vst.msk [vmem:[%s14 + $0x1c] sm:$0xf] %vm3322, %v3321
  %v3331 = vlaneseq
  %v3332 = vshrl.u32 %v3331, 7
  %v3333 = vsub.s32 0, %v3332
  %v3334 = vrot.slane %v3092, %v3333
  %3336 = vbcast.lane.b32.xlu0 %v3334, 256
  %v3337 = vpop.permute.xlu0 %3336
  %v3338 = vlaneseq
  %v3339 = vshrl.u32 %v3338, 7
  %v3340 = vsub.s32 1, %v3339
  %v3341 = vrot.slane %v3092, %v3340
  %3343 = vbcast.lane.b32.xlu0 %v3341, 256
  %v3344 = vpop.permute.xlu0 %3343
  %v3345 = vlaneseq
  %v3346 = vshrl.u32 %v3345, 7
  %v3347 = vsub.s32 2, %v3346
  %v3348 = vrot.slane %v3092, %v3347
  %3350 = vbcast.lane.b32.xlu0 %v3348, 256
  %v3351 = vpop.permute.xlu0 %3350
  %v3352 = vlaneseq
  %v3353 = vshrl.u32 %v3352, 7
  %v3354 = vsub.s32 3, %v3353
  %v3355 = vrot.slane %v3092, %v3354
  %3357 = vbcast.lane.b32.xlu0 %v3355, 256
  %v3358 = vpop.permute.xlu0 %3357
  %v3359 = vlaneseq
  %v3360 = vshrl.u32 %v3359, 7
  %v3361 = vsub.s32 4, %v3360
  %v3362 = vrot.slane %v3092, %v3361
  %3364 = vbcast.lane.b32.xlu0 %v3362, 256
  %v3365 = vpop.permute.xlu0 %3364
  %v3366 = vlaneseq
  %v3367 = vshrl.u32 %v3366, 7
  %v3368 = vsub.s32 5, %v3367
  %v3369 = vrot.slane %v3092, %v3368
  %3371 = vbcast.lane.b32.xlu0 %v3369, 256
  %v3372 = vpop.permute.xlu0 %3371
  %v3373 = vlaneseq
  %v3374 = vshrl.u32 %v3373, 7
  %v3375 = vsub.s32 6, %v3374
  %v3376 = vrot.slane %v3092, %v3375
  %3378 = vbcast.lane.b32.xlu0 %v3376, 256
  %v3379 = vpop.permute.xlu0 %3378
  %v3380 = vlaneseq
  %v3381 = vshrl.u32 %v3380, 7
  %v3382 = vsub.s32 7, %v3381
  %v3383 = vrot.slane %v3092, %v3382
  %3385 = vbcast.lane.b32.xlu0 %v3383, 256
  %v3386 = vpop.permute.xlu0 %3385
  %v3387 = vmul.f32 %v3337, %v3306
  %v3388 = vmul.f32 %v3344, %v3307
  %v3389 = vmul.f32 %v3351, %v3308
  %v3390 = vmul.f32 %v3358, %v3309
  %v3391 = vmul.f32 %v3365, %v3310
  %v3392 = vmul.f32 %v3372, %v3311
  %v3393 = vmul.f32 %v3379, %v3312
  %v3394 = vmul.f32 %v3386, %v3313
  %v3395 = vld [vmem:[#allocation2] sm:$0xf]
  %v3396 = vld [vmem:[#allocation2 + $0x4] sm:$0xf]
  %v3397 = vld [vmem:[#allocation2 + $0x8] sm:$0xf]
  %v3398 = vld [vmem:[#allocation2 + $0xc] sm:$0xf]
  %v3399 = vld [vmem:[#allocation2 + $0x10] sm:$0xf]
  %v3400 = vld [vmem:[#allocation2 + $0x14] sm:$0xf]
  %v3401 = vld [vmem:[#allocation2 + $0x18] sm:$0xf]
  %v3402 = vld [vmem:[#allocation2 + $0x1c] sm:$0xf]
  %v3403 = vunpack.c.l.bf16 %v3395
  %v3404 = vunpack.c.l.bf16 %v3396
  %v3405 = vunpack.c.l.bf16 %v3397
  %v3406 = vunpack.c.l.bf16 %v3398
  %v3407 = vunpack.c.l.bf16 %v3399
  %v3408 = vunpack.c.l.bf16 %v3400
  %v3409 = vunpack.c.l.bf16 %v3401
  %v3410 = vunpack.c.l.bf16 %v3402
  %v3411 = vmul.f32 %v3387, %v3403
  %v3412 = vmul.f32 %v3388, %v3404
  %v3413 = vmul.f32 %v3389, %v3405
  %v3414 = vmul.f32 %v3390, %v3406
  %v3415 = vmul.f32 %v3391, %v3407
  %v3416 = vmul.f32 %v3392, %v3408
  %v3417 = vmul.f32 %v3393, %v3409
  %v3418 = vmul.f32 %v3394, %v3410
  %v3419 = vadd.f32 %v3411, %v3412
  %v3420 = vadd.f32 %v3419, %v3413
  %v3421 = vadd.f32 %v3420, %v3414
  %v3422 = vadd.f32 %v3421, %v3415
  %v3423 = vadd.f32 %v3422, %v3416
  %v3424 = vadd.f32 %v3423, %v3417
  %v3425 = vadd.f32 %v3424, %v3418
  %v3426 = vpack.c.bf16 %v3425, %v3425
  %v3427 = vld [vmem:[%s10] sm:$0xf]
  %v3428 = vld [vmem:[%s10 + $0x4] sm:$0xf]
  %v3429 = vld [vmem:[%s10 + $0x8] sm:$0xf]
  %v3430 = vld [vmem:[%s10 + $0xc] sm:$0xf]
  %v3431 = vld [vmem:[%s10 + $0x10] sm:$0xf]
  %v3432 = vld [vmem:[%s10 + $0x14] sm:$0xf]
  %v3433 = vld [vmem:[%s10 + $0x18] sm:$0xf]
  %v3434 = vld [vmem:[%s10 + $0x1c] sm:$0xf]
  %v3435 = vld [vmem:[%s10 + $0x20] sm:$0xf]
  %v3436 = vld [vmem:[%s10 + $0x24] sm:$0xf]
  %v3437 = vld [vmem:[%s10 + $0x28] sm:$0xf]
  %v3438 = vld [vmem:[%s10 + $0x2c] sm:$0xf]
  %v3439 = vld [vmem:[%s10 + $0x30] sm:$0xf]
  %v3440 = vld [vmem:[%s10 + $0x34] sm:$0xf]
  %v3441 = vld [vmem:[%s10 + $0x38] sm:$0xf]
  %v3442 = vld [vmem:[%s10 + $0x3c] sm:$0xf]
  %v3443 = vld [vmem:[%s11] sm:$0x1]
  %v3445 = vlaneseq
  %v3446 = vshrl.u32 %v3445, 7
  %v3447 = vsub.s32 0, %v3446
  %v3448 = vrot.slane %v3443, %v3447
  %v3466 = vunpack.c.l.b16 %v3427
  %v3467 = vunpack.c.l.b16 %v3428
  %v3468 = vunpack.c.l.b16 %v3429
  %v3469 = vunpack.c.l.b16 %v3430
  %v3470 = vunpack.c.l.b16 %v3431
  %v3471 = vunpack.c.l.b16 %v3432
  %v3472 = vunpack.c.l.b16 %v3433
  %v3473 = vunpack.c.l.b16 %v3434
  %v3474 = vunpack.c.l.b16 %v3435
  %v3475 = vunpack.c.l.b16 %v3436
  %v3476 = vunpack.c.l.b16 %v3437
  %v3477 = vunpack.c.l.b16 %v3438
  %v3478 = vunpack.c.l.b16 %v3439
  %v3479 = vunpack.c.l.b16 %v3440
  %v3480 = vunpack.c.l.b16 %v3441
  %v3481 = vunpack.c.l.b16 %v3442
  %v3482 = vpack.c.b16 %v3467, %v3466
  %v3483 = vpack.c.b16 %v3469, %v3468
  %v3484 = vpack.c.b16 %v3471, %v3470
  %v3485 = vpack.c.b16 %v3473, %v3472
  %v3486 = vpack.c.b16 %v3475, %v3474
  %v3487 = vpack.c.b16 %v3477, %v3476
  %v3488 = vpack.c.b16 %v3479, %v3478
  %v3489 = vpack.c.b16 %v3481, %v3480
  %3498 = vmatprep.subr.bf16.mxu0 0
  %3499 = vmatpush1.bf16.msra.mxu0 %v3482
  %3500 = vmatprep.subr.bf16.mxu0 0
  %3501 = vmatpush1.bf16.msra.mxu0 %v3483
  %3502 = vmatprep.subr.bf16.mxu0 0
  %3503 = vmatpush1.bf16.msra.mxu0 %v3484
  %3504 = vmatprep.subr.bf16.mxu0 0
  %3505 = vmatpush1.bf16.msra.mxu0 %v3485
  %3506 = vmatprep.subr.bf16.mxu0 0
  %3507 = vmatpush1.bf16.msra.mxu0 %v3486
  %3508 = vmatprep.subr.bf16.mxu0 0
  %3509 = vmatpush1.bf16.msra.mxu0 %v3487
  %3510 = vmatprep.subr.bf16.mxu0 0
  %3511 = vmatpush1.bf16.msra.mxu0 %v3488
  %3512 = vmatprep.subr.bf16.mxu0 0
  %3513 = vmatpush1.bf16.msra.mxu0 %v3489
  %3514 = vmatprep.subr.bf16.mxu0 0
  %3515 = vmatpush1.bf16.msra.mxu0 0
  %3516 = vmatprep.subr.bf16.mxu0 0
  %3517 = vmatpush1.bf16.msra.mxu0 0
  %3518 = vmatprep.subr.bf16.mxu0 0
  %3519 = vmatpush1.bf16.msra.mxu0 0
  %3520 = vmatprep.subr.bf16.mxu0 0
  %3521 = vmatpush1.bf16.msra.mxu0 0
  %3522 = vmatprep.subr.bf16.mxu0 0
  %3523 = vmatpush1.bf16.msra.mxu0 0
  %3524 = vmatprep.subr.bf16.mxu0 0
  %3525 = vmatpush1.bf16.msra.mxu0 0
  %3526 = vmatprep.subr.bf16.mxu0 0
  %3527 = vmatpush1.bf16.msra.mxu0 0
  %3528 = vmatprep.subr.bf16.mxu0 0
  %3529 = vmatpush1.bf16.msra.mxu0 0
  %3530 = vmatprep.mubr.bf16.mxu0 0
  %3531 = vmatmul.mubr.bf16.gmra.mrb[0].mxu0 %v3426
  %v3532 = vpop.f32.mrb[0].mxu0
  %v3533 = vadd.f32 %v3448, %v3532
  %v3534 = vpop.f32.mrb[0].mxu0
  %v3535 = vpop.f32.mrb[0].mxu0
  %v3536 = vpop.f32.mrb[0].mxu0
  %3537 = vdwg.mxu0
  %vm3538 = vcmask 15360
  %3539 = vst.msk [vmem:[%s12] sm:$0xff] %vm3538, %v3533
  // Predicated region
  $region50: #{retain_forward.1} parent=0 // pred_check
    _
  $region51: #{retain_forward.1} parent=0 // pred_check_branch
    %3541 = sbr.rel (0) target = $region53
  $region52: #{retain_forward.1} parent=0 // pred_region
    _
  $region53: #{retain_forward.1} parent=0 // pred_fallthru
    _
  // Predicated region
  $region54: #{retain_forward.1} parent=0 // pred_check
    _
  $region55: #{retain_forward.1} parent=0 // pred_check_branch
    %3543 = sbr.rel (0) target = $region57
  $region56: #{retain_forward.1} parent=0 // pred_region
    _
  $region57: #{retain_forward.1} parent=0 // pred_fallthru
    _
  // Predicated region
  $region58: #{retain_forward.1} parent=0 // pred_check
    _
  $region59: #{retain_forward.1} parent=0 // pred_check_branch
    %3545 = sbr.rel (0) target = $region61
  $region60: #{retain_forward.1} parent=0 // pred_region
    _
  $region61: #{retain_forward.1} parent=0 // pred_fallthru
    _
  // Predicated region
  $region62: #{retain_forward.1} parent=0 // pred_check
    _
  $region63: #{retain_forward.1} parent=0 // pred_check_branch
    %3547 = sbr.rel (0) target = $region65
  $region64: #{retain_forward.1} parent=0 // pred_region
    _
  $region65: #{retain_forward.1} parent=0 // pred_fallthru
    _
  // Predicated region
  $region66: #{retain_forward.1} parent=0 // pred_check
    _
  $region67: #{retain_forward.1} parent=0 // pred_check_branch
    %3549 = sbr.rel (0) target = $region69
  $region68: #{retain_forward.1} parent=0 // pred_region
    _
  $region69: #{retain_forward.1} parent=0 // pred_fallthru
    _
  // Predicated region
  $region70: #{retain_forward.1} parent=0 // pred_check
    _
  $region71: #{retain_forward.1} parent=0 // pred_check_branch
    %3551 = sbr.rel (0) target = $region73
  $region72: #{retain_forward.1} parent=0 // pred_region
    _
  $region73: #{retain_forward.1} parent=0 // pred_fallthru
    _

</llo_original>
